<compile_context>
chip_gen: v7x
topology: tpu7x:2x2x1
jax: 0.10.0
libtpu: 0.0.40
codegen_flags: <defaults>
</compile_context>

<pallas_src>
import jax
import jax.numpy as jnp
from jax.experimental import pallas as pl
from jax.experimental.pallas import tpu as pltpu


def gru_wavefront_kernel(x_ref, h0_ref, wih0_ref, wrec_ref, bfold_ref,
                         bhn_ref, out_ref):
    """Fused D-layer GRU, wavefront schedule, single invocation.

    x_ref     : (L*B, E)              time-major flattened input (row = t*B + b)
    h0_ref    : (D, B, E)             initial hidden state per layer
    wih0_ref  : (E, 3E)               layer-0 input->hidden weights (gates r|z|n)
    wrec_ref  : (D*E, (2D-1)*3E)      block-diagonal recurrent weights:
                                        rows  [l*E:(l+1)*E]
                                        cols  [l*3E:(l+1)*3E]        -> Whh[l]
                                        cols  [(D+l-1)*3E:(D+l)*3E]  -> Wih[l], l>=1
                                        (rows for the Wih[l] block are layer l-1's h)
    bfold_ref : (D, 1, 3E)            [b_ih_r+b_hh_r | b_ih_z+b_hh_z | b_ih_n]
    bhn_ref   : (D, 1, E)             b_hh_n (stays separate: multiplied by r)
    out_ref   : (B, L*E)              last layer's h for all timesteps, lane-dense
    """
    D, B, E = h0_ref.shape
    LB = x_ref.shape[0]
    L = LB // B
    G = 3 * E

    wih0 = wih0_ref[...]
    wrec = wrec_ref[...]
    mm_dtype = wrec.dtype  # f32 here; bf16 weights on v6e/v7x halve weight traffic

    b_fold = [bfold_ref[l].astype(jnp.float32) for l in range(D)]   # (1, 3E) each
    b_hn = [bhn_ref[l].astype(jnp.float32) for l in range(D)]       # (1, E)  each

    # Hoisted, lane-dense layer-0 input projection for ALL timesteps at once.
    x_tm = x_ref[...].astype(jnp.float32)                           # (L*B, E)
    gi0_all = (jnp.dot(x_tm.astype(mm_dtype), wih0,
                       preferred_element_type=jnp.float32)
               + b_fold[0])                                          # (L*B, 3E)

    h = [h0_ref[l].astype(jnp.float32) for l in range(D)]           # D x (B, E)

    def gru_gate(gi, gh, h_prev, bhn):
        r = jax.nn.sigmoid(gi[:, :E] + gh[:, :E])
        z = jax.nn.sigmoid(gi[:, E:2 * E] + gh[:, E:2 * E])
        n = jnp.tanh(gi[:, 2 * E:] + r * (gh[:, 2 * E:] + bhn))
        return (1.0 - z) * n + z * h_prev

    outs = []
    for s in range(L + D - 1):
        # One fused block-diagonal dot per wavefront step:
        #   cols [0, D*G)        -> gh for every layer   (operand rows h[l])
        #   cols [D*G, (2D-1)*G) -> gi for layers 1..D-1 (operand rows h[l-1])
        # h_cat is built from the PRE-step h values, which is exactly what both
        # the recurrent (h at t-1) and inter-layer (layer l-1's output at t)
        # dependencies require under the wavefront schedule.
        h_cat = jnp.concatenate(h, axis=1)                           # (B, D*E)
        fused = jnp.dot(h_cat.astype(mm_dtype), wrec,
                        preferred_element_type=jnp.float32)          # (B, (2D-1)*3E)

        new_h = list(h)
        for l in range(D):
            t = s - l
            if t < 0 or t >= L:
                continue                                             # inactive on this diagonal
            gh = fused[:, l * G:(l + 1) * G]
            if l == 0:
                gi = gi0_all[t * B:(t + 1) * B, :]
            else:
                gi = fused[:, (D + l - 1) * G:(D + l) * G] + b_fold[l]
            new_h[l] = gru_gate(gi, gh, h[l], b_hn[l])
        h = new_h

        if s >= D - 1:                                               # last layer produced t = s-(D-1)
            outs.append(h[D - 1])

    # Single lane-dense, unmasked store (L*E = 256 lanes); wrapper reshapes.
    out_ref[...] = jnp.concatenate(outs, axis=1).astype(out_ref.dtype)


def pack_gru_params(layer_params, param_dtype=jnp.float32):
    """Packs per-layer (wih, whh, bih, bhh) into the fused kernel layout.

    Per layer (gate order r, z, n; weights already transposed so x @ wih[g]
    is the input projection):  wih, whh : (3, E, E)   bih, bhh : (3, 1, E)

    Returns:
        wih0   : (E, 3E)              layer-0 fused input weights
        wrec   : (D*E, (2D-1)*3E)     block-diagonal recurrent + inter-layer weights
        b_fold : (D, 1, 3E)           folded gi bias
        b_hn   : (D, 1, E)            b_hh_n
    Use param_dtype=jnp.bfloat16 on v6e/v7x (weights only; gate math stays f32).
    If E is ever grown, pad 3E up to a multiple of 128 here.
    """
    D = len(layer_params)
    E = layer_params[0][0].shape[1]
    G = 3 * E

    def fuse(w):  # (3, E, E) -> (E, 3E)
        return jnp.concatenate([w[0], w[1], w[2]], axis=1)

    wih0 = fuse(layer_params[0][0])

    wrec = jnp.zeros((D * E, (2 * D - 1) * G), jnp.float32)
    for l, (wih, whh, _, _) in enumerate(layer_params):
        wrec = wrec.at[l * E:(l + 1) * E, l * G:(l + 1) * G].set(fuse(whh))
        if l >= 1:
            wrec = wrec.at[(l - 1) * E:l * E,
                           (D + l - 1) * G:(D + l) * G].set(fuse(wih))

    bf, bn = [], []
    for _, _, bih, bhh in layer_params:
        bf.append(jnp.concatenate([bih[0] + bhh[0], bih[1] + bhh[1], bih[2]],
                                  axis=1))
        bn.append(bhh[2])

    return (wih0.astype(param_dtype), wrec.astype(param_dtype),
            jnp.stack(bf).astype(jnp.float32), jnp.stack(bn).astype(jnp.float32))


def gru_wrapper_gaussian_forward(tok_emb, packed_params, h0=None):
    """Equivalent of GRUWrapperGaussian.forward (returns output_emb only).

    tok_emb       : (B, L, E) batch-first, like the PyTorch module
    packed_params : output of pack_gru_params
    h0            : optional (D, B, E); defaults to zeros as in the module
    returns       : output_emb of shape (B, L, E)
    """
    B, L, E = tok_emb.shape
    wih0, wrec, b_fold, b_hn = packed_params
    D = b_fold.shape[0]
    if h0 is None:
        h0 = jnp.zeros((D, B, E), jnp.float32)

    # Free XLA-side relayout: time-major (L*B, E) so the hoisted in-kernel gi
    # matmul slices contiguous sublane row blocks per timestep.
    x_tm = jnp.transpose(tok_emb, (1, 0, 2)).reshape(L * B, E)

    vmem = pl.BlockSpec(memory_space=pltpu.MemorySpace.VMEM)
    out_flat = pl.pallas_call(
        gru_wavefront_kernel,
        out_shape=jax.ShapeDtypeStruct((B, L * E), tok_emb.dtype),
        in_specs=[vmem] * 6,
        out_specs=vmem,
    )(x_tm, h0, wih0, wrec, b_fold, b_hn)
    return out_flat.reshape(B, L, E)


def init_gru_params(key, E, D):
    """Deterministic synthetic init of D stacked GRU layers (input == hidden == E)."""
    scale = 1.0 / jnp.sqrt(jnp.float32(E))
    layers = []
    for _ in range(D):
        key, k1, k2, k3, k4 = jax.random.split(key, 5)
        wih = jax.random.uniform(k1, (3, E, E), jnp.float32, -scale, scale)
        whh = jax.random.uniform(k2, (3, E, E), jnp.float32, -scale, scale)
        bih = jax.random.uniform(k3, (3, 1, E), jnp.float32, -scale, scale)
        bhh = jax.random.uniform(k4, (3, 1, E), jnp.float32, -scale, scale)
        layers.append((wih, whh, bih, bhh))
    return layers


def gru_reference(tok_emb, layer_params):
    """Pure-JAX reference of the stacked GRU (PyTorch gate order r, z, n)."""
    B, L, E = tok_emb.shape
    x = tok_emb
    for wih, whh, bih, bhh in layer_params:
        h = jnp.zeros((B, E), jnp.float32)
        outs = []
        for t in range(L):
            xt = x[:, t, :]
            r = jax.nn.sigmoid(xt @ wih[0] + bih[0] + h @ whh[0] + bhh[0])
            z = jax.nn.sigmoid(xt @ wih[1] + bih[1] + h @ whh[1] + bhh[1])
            n = jnp.tanh(xt @ wih[2] + bih[2] + r * (h @ whh[2] + bhh[2]))
            h = (1.0 - z) * n + z * h
            outs.append(h)
        x = jnp.stack(outs, axis=1)
    return x


if __name__ == "__main__":
    # Small shapes implied by forward: (B, L, E) with D=3 GRU layers.
    B, L, E, D = 2, 8, 32, 3

    key = jax.random.PRNGKey(0)
    k_x, k_p = jax.random.split(key)
    tok_emb = jax.random.normal(k_x, (B, L, E), jnp.float32)
    layer_params = init_gru_params(k_p, E, D)

    packed = pack_gru_params(layer_params)   # f32 test path; bf16 weights in prod on v6e/v7x
    out = gru_wrapper_gaussian_forward(tok_emb, packed)
    out = jax.block_until_ready(out)

    ref = gru_reference(tok_emb, layer_params)
    assert out.shape == (B, L, E)
    assert jnp.allclose(out, ref, atol=1e-5, rtol=1e-5), "Pallas GRU mismatch vs reference"

    print("KERNEL_OK")
</pallas_src>

<mosaic_0001>
module attributes {stable_mosaic.version = 11 : i64} {
  func.func @gru_wavefront_kernel(%arg0: memref<16x32xf32, #tpu.memory_space<vmem>>, %arg1: memref<3x2x32xf32, #tpu.memory_space<vmem>>, %arg2: memref<32x96xf32, #tpu.memory_space<vmem>>, %arg3: memref<96x480xf32, #tpu.memory_space<vmem>>, %arg4: memref<3x1x96xf32, #tpu.memory_space<vmem>>, %arg5: memref<3x1x32xf32, #tpu.memory_space<vmem>>, %arg6: memref<2x256xf32, #tpu.memory_space<vmem>>) attributes {dimension_semantics = [], scalar_prefetch = 0 : i64, scratch_operands = 0 : i64, tpu.core_type = #tpu.core_type<tc>} {
    %c0 = arith.constant 0 : index
    %c0_0 = arith.constant 0 : index
    %0 = vector.load %arg2[%c0, %c0_0] : memref<32x96xf32, #tpu.memory_space<vmem>>, vector<32x96xf32>
    %c0_1 = arith.constant 0 : index
    %c0_2 = arith.constant 0 : index
    %1 = vector.load %arg3[%c0_1, %c0_2] : memref<96x480xf32, #tpu.memory_space<vmem>>, vector<96x480xf32>
    %c0_3 = arith.constant 0 : index
    %c0_4 = arith.constant 0 : index
    %c0_5 = arith.constant 0 : index
    %2 = vector.load %arg4[%c0_3, %c0_4, %c0_5] : memref<3x1x96xf32, #tpu.memory_space<vmem>>, vector<1x1x96xf32>
    %3 = vector.shape_cast %2 : vector<1x1x96xf32> to vector<1x96xf32>
    %c1 = arith.constant 1 : index
    %c0_6 = arith.constant 0 : index
    %c0_7 = arith.constant 0 : index
    %4 = vector.load %arg4[%c1, %c0_6, %c0_7] : memref<3x1x96xf32, #tpu.memory_space<vmem>>, vector<1x1x96xf32>
    %5 = vector.shape_cast %4 : vector<1x1x96xf32> to vector<1x96xf32>
    %c2 = arith.constant 2 : index
    %c0_8 = arith.constant 0 : index
    %c0_9 = arith.constant 0 : index
    %6 = vector.load %arg4[%c2, %c0_8, %c0_9] : memref<3x1x96xf32, #tpu.memory_space<vmem>>, vector<1x1x96xf32>
    %7 = vector.shape_cast %6 : vector<1x1x96xf32> to vector<1x96xf32>
    %c0_10 = arith.constant 0 : index
    %c0_11 = arith.constant 0 : index
    %c0_12 = arith.constant 0 : index
    %8 = vector.load %arg5[%c0_10, %c0_11, %c0_12] : memref<3x1x32xf32, #tpu.memory_space<vmem>>, vector<1x1x32xf32>
    %9 = vector.shape_cast %8 : vector<1x1x32xf32> to vector<1x32xf32>
    %c1_13 = arith.constant 1 : index
    %c0_14 = arith.constant 0 : index
    %c0_15 = arith.constant 0 : index
    %10 = vector.load %arg5[%c1_13, %c0_14, %c0_15] : memref<3x1x32xf32, #tpu.memory_space<vmem>>, vector<1x1x32xf32>
    %11 = vector.shape_cast %10 : vector<1x1x32xf32> to vector<1x32xf32>
    %c2_16 = arith.constant 2 : index
    %c0_17 = arith.constant 0 : index
    %c0_18 = arith.constant 0 : index
    %12 = vector.load %arg5[%c2_16, %c0_17, %c0_18] : memref<3x1x32xf32, #tpu.memory_space<vmem>>, vector<1x1x32xf32>
    %13 = vector.shape_cast %12 : vector<1x1x32xf32> to vector<1x32xf32>
    %c0_19 = arith.constant 0 : index
    %c0_20 = arith.constant 0 : index
    %14 = vector.load %arg0[%c0_19, %c0_20] : memref<16x32xf32, #tpu.memory_space<vmem>>, vector<16x32xf32>
    %cst = arith.constant dense<0.000000e+00> : vector<16x96xf32>
    %15 = tpu.matmul %14, %0, %cst {dimension_numbers = #tpu.dot_dimension_numbers<[1], [0], [0], [1], [0, 0, 1, 1], [], []>} : vector<16x32xf32>, vector<32x96xf32>, vector<16x96xf32> -> vector<16x96xf32>
    %16 = vector.broadcast %3 : vector<1x96xf32> to vector<16x96xf32>
    %17 = arith.addf %15, %16 : vector<16x96xf32>
    %c0_21 = arith.constant 0 : index
    %c0_22 = arith.constant 0 : index
    %c0_23 = arith.constant 0 : index
    %18 = vector.load %arg1[%c0_21, %c0_22, %c0_23] : memref<3x2x32xf32, #tpu.memory_space<vmem>>, vector<1x2x32xf32>
    %19 = vector.shape_cast %18 : vector<1x2x32xf32> to vector<2x32xf32>
    %c1_24 = arith.constant 1 : index
    %c0_25 = arith.constant 0 : index
    %c0_26 = arith.constant 0 : index
    %20 = vector.load %arg1[%c1_24, %c0_25, %c0_26] : memref<3x2x32xf32, #tpu.memory_space<vmem>>, vector<1x2x32xf32>
    %21 = vector.shape_cast %20 : vector<1x2x32xf32> to vector<2x32xf32>
    %c2_27 = arith.constant 2 : index
    %c0_28 = arith.constant 0 : index
    %c0_29 = arith.constant 0 : index
    %22 = vector.load %arg1[%c2_27, %c0_28, %c0_29] : memref<3x2x32xf32, #tpu.memory_space<vmem>>, vector<1x2x32xf32>
    %23 = vector.shape_cast %22 : vector<1x2x32xf32> to vector<2x32xf32>
    %24 = tpu.concatenate %19, %21, %23 in 1 : vector<2x32xf32>, vector<2x32xf32>, vector<2x32xf32> -> vector<2x96xf32>
    %cst_30 = arith.constant dense<0.000000e+00> : vector<2x480xf32>
    %25 = tpu.matmul %24, %1, %cst_30 {dimension_numbers = #tpu.dot_dimension_numbers<[1], [0], [0], [1], [0, 0, 1, 1], [], []>} : vector<2x96xf32>, vector<96x480xf32>, vector<2x480xf32> -> vector<2x480xf32>
    %26 = vector.extract_strided_slice %25 {offsets = [0, 0], sizes = [2, 96], strides = [1, 1]} : vector<2x480xf32> to vector<2x96xf32>
    %27 = vector.extract_strided_slice %17 {offsets = [0, 0], sizes = [2, 96], strides = [1, 1]} : vector<16x96xf32> to vector<2x96xf32>
    %28 = vector.extract_strided_slice %27 {offsets = [0, 0], sizes = [2, 32], strides = [1, 1]} : vector<2x96xf32> to vector<2x32xf32>
    %29 = vector.extract_strided_slice %26 {offsets = [0, 0], sizes = [2, 32], strides = [1, 1]} : vector<2x96xf32> to vector<2x32xf32>
    %30 = arith.addf %28, %29 : vector<2x32xf32>
    %31 = arith.negf %30 : vector<2x32xf32>
    %32 = math.exp %31 : vector<2x32xf32>
    %cst_31 = arith.constant 1.000000e+00 : f32
    %33 = vector.broadcast %cst_31 : f32 to vector<2x32xf32>
    %34 = arith.addf %33, %32 : vector<2x32xf32>
    %35 = arith.divf %33, %34 : vector<2x32xf32>
    %36 = vector.extract_strided_slice %27 {offsets = [0, 32], sizes = [2, 32], strides = [1, 1]} : vector<2x96xf32> to vector<2x32xf32>
    %37 = vector.extract_strided_slice %26 {offsets = [0, 32], sizes = [2, 32], strides = [1, 1]} : vector<2x96xf32> to vector<2x32xf32>
    %38 = arith.addf %36, %37 : vector<2x32xf32>
    %39 = arith.negf %38 : vector<2x32xf32>
    %40 = math.exp %39 : vector<2x32xf32>
    %cst_32 = arith.constant 1.000000e+00 : f32
    %41 = vector.broadcast %cst_32 : f32 to vector<2x32xf32>
    %42 = arith.addf %41, %40 : vector<2x32xf32>
    %43 = arith.divf %41, %42 : vector<2x32xf32>
    %44 = vector.extract_strided_slice %27 {offsets = [0, 64], sizes = [2, 32], strides = [1, 1]} : vector<2x96xf32> to vector<2x32xf32>
    %45 = vector.extract_strided_slice %26 {offsets = [0, 64], sizes = [2, 32], strides = [1, 1]} : vector<2x96xf32> to vector<2x32xf32>
    %46 = vector.broadcast %9 : vector<1x32xf32> to vector<2x32xf32>
    %47 = arith.addf %45, %46 : vector<2x32xf32>
    %48 = arith.mulf %35, %47 : vector<2x32xf32>
    %49 = arith.addf %44, %48 : vector<2x32xf32>
    %50 = math.tanh %49 : vector<2x32xf32>
    %cst_33 = arith.constant 1.000000e+00 : f32
    %51 = vector.broadcast %cst_33 : f32 to vector<2x32xf32>
    %52 = arith.subf %51, %43 : vector<2x32xf32>
    %53 = arith.mulf %52, %50 : vector<2x32xf32>
    %54 = arith.mulf %43, %19 : vector<2x32xf32>
    %55 = arith.addf %53, %54 : vector<2x32xf32>
    %56 = tpu.concatenate %55, %21, %23 in 1 : vector<2x32xf32>, vector<2x32xf32>, vector<2x32xf32> -> vector<2x96xf32>
    %cst_34 = arith.constant dense<0.000000e+00> : vector<2x480xf32>
    %57 = tpu.matmul %56, %1, %cst_34 {dimension_numbers = #tpu.dot_dimension_numbers<[1], [0], [0], [1], [0, 0, 1, 1], [], []>} : vector<2x96xf32>, vector<96x480xf32>, vector<2x480xf32> -> vector<2x480xf32>
    %58 = vector.extract_strided_slice %57 {offsets = [0, 0], sizes = [2, 96], strides = [1, 1]} : vector<2x480xf32> to vector<2x96xf32>
    %59 = vector.extract_strided_slice %17 {offsets = [2, 0], sizes = [2, 96], strides = [1, 1]} : vector<16x96xf32> to vector<2x96xf32>
    %60 = vector.extract_strided_slice %59 {offsets = [0, 0], sizes = [2, 32], strides = [1, 1]} : vector<2x96xf32> to vector<2x32xf32>
    %61 = vector.extract_strided_slice %58 {offsets = [0, 0], sizes = [2, 32], strides = [1, 1]} : vector<2x96xf32> to vector<2x32xf32>
    %62 = arith.addf %60, %61 : vector<2x32xf32>
    %63 = arith.negf %62 : vector<2x32xf32>
    %64 = math.exp %63 : vector<2x32xf32>
    %cst_35 = arith.constant 1.000000e+00 : f32
    %65 = vector.broadcast %cst_35 : f32 to vector<2x32xf32>
    %66 = arith.addf %65, %64 : vector<2x32xf32>
    %67 = arith.divf %65, %66 : vector<2x32xf32>
    %68 = vector.extract_strided_slice %59 {offsets = [0, 32], sizes = [2, 32], strides = [1, 1]} : vector<2x96xf32> to vector<2x32xf32>
    %69 = vector.extract_strided_slice %58 {offsets = [0, 32], sizes = [2, 32], strides = [1, 1]} : vector<2x96xf32> to vector<2x32xf32>
    %70 = arith.addf %68, %69 : vector<2x32xf32>
    %71 = arith.negf %70 : vector<2x32xf32>
    %72 = math.exp %71 : vector<2x32xf32>
    %cst_36 = arith.constant 1.000000e+00 : f32
    %73 = vector.broadcast %cst_36 : f32 to vector<2x32xf32>
    %74 = arith.addf %73, %72 : vector<2x32xf32>
    %75 = arith.divf %73, %74 : vector<2x32xf32>
    %76 = vector.extract_strided_slice %59 {offsets = [0, 64], sizes = [2, 32], strides = [1, 1]} : vector<2x96xf32> to vector<2x32xf32>
    %77 = vector.extract_strided_slice %58 {offsets = [0, 64], sizes = [2, 32], strides = [1, 1]} : vector<2x96xf32> to vector<2x32xf32>
    %78 = vector.broadcast %9 : vector<1x32xf32> to vector<2x32xf32>
    %79 = arith.addf %77, %78 : vector<2x32xf32>
    %80 = arith.mulf %67, %79 : vector<2x32xf32>
    %81 = arith.addf %76, %80 : vector<2x32xf32>
    %82 = math.tanh %81 : vector<2x32xf32>
    %cst_37 = arith.constant 1.000000e+00 : f32
    %83 = vector.broadcast %cst_37 : f32 to vector<2x32xf32>
    %84 = arith.subf %83, %75 : vector<2x32xf32>
    %85 = arith.mulf %84, %82 : vector<2x32xf32>
    %86 = arith.mulf %75, %55 : vector<2x32xf32>
    %87 = arith.addf %85, %86 : vector<2x32xf32>
    %88 = vector.extract_strided_slice %57 {offsets = [0, 96], sizes = [2, 96], strides = [1, 1]} : vector<2x480xf32> to vector<2x96xf32>
    %89 = vector.extract_strided_slice %57 {offsets = [0, 288], sizes = [2, 96], strides = [1, 1]} : vector<2x480xf32> to vector<2x96xf32>
    %90 = vector.broadcast %5 : vector<1x96xf32> to vector<2x96xf32>
    %91 = arith.addf %89, %90 : vector<2x96xf32>
    %92 = vector.extract_strided_slice %91 {offsets = [0, 0], sizes = [2, 32], strides = [1, 1]} : vector<2x96xf32> to vector<2x32xf32>
    %93 = vector.extract_strided_slice %88 {offsets = [0, 0], sizes = [2, 32], strides = [1, 1]} : vector<2x96xf32> to vector<2x32xf32>
    %94 = arith.addf %92, %93 : vector<2x32xf32>
    %95 = arith.negf %94 : vector<2x32xf32>
    %96 = math.exp %95 : vector<2x32xf32>
    %cst_38 = arith.constant 1.000000e+00 : f32
    %97 = vector.broadcast %cst_38 : f32 to vector<2x32xf32>
    %98 = arith.addf %97, %96 : vector<2x32xf32>
    %99 = arith.divf %97, %98 : vector<2x32xf32>
    %100 = vector.extract_strided_slice %91 {offsets = [0, 32], sizes = [2, 32], strides = [1, 1]} : vector<2x96xf32> to vector<2x32xf32>
    %101 = vector.extract_strided_slice %88 {offsets = [0, 32], sizes = [2, 32], strides = [1, 1]} : vector<2x96xf32> to vector<2x32xf32>
    %102 = arith.addf %100, %101 : vector<2x32xf32>
    %103 = arith.negf %102 : vector<2x32xf32>
    %104 = math.exp %103 : vector<2x32xf32>
    %cst_39 = arith.constant 1.000000e+00 : f32
    %105 = vector.broadcast %cst_39 : f32 to vector<2x32xf32>
    %106 = arith.addf %105, %104 : vector<2x32xf32>
    %107 = arith.divf %105, %106 : vector<2x32xf32>
    %108 = vector.extract_strided_slice %91 {offsets = [0, 64], sizes = [2, 32], strides = [1, 1]} : vector<2x96xf32> to vector<2x32xf32>
    %109 = vector.extract_strided_slice %88 {offsets = [0, 64], sizes = [2, 32], strides = [1, 1]} : vector<2x96xf32> to vector<2x32xf32>
    %110 = vector.broadcast %11 : vector<1x32xf32> to vector<2x32xf32>
    %111 = arith.addf %109, %110 : vector<2x32xf32>
    %112 = arith.mulf %99, %111 : vector<2x32xf32>
    %113 = arith.addf %108, %112 : vector<2x32xf32>
    %114 = math.tanh %113 : vector<2x32xf32>
    %cst_40 = arith.constant 1.000000e+00 : f32
    %115 = vector.broadcast %cst_40 : f32 to vector<2x32xf32>
    %116 = arith.subf %115, %107 : vector<2x32xf32>
    %117 = arith.mulf %116, %114 : vector<2x32xf32>
    %118 = arith.mulf %107, %21 : vector<2x32xf32>
    %119 = arith.addf %117, %118 : vector<2x32xf32>
    %120 = tpu.concatenate %87, %119, %23 in 1 : vector<2x32xf32>, vector<2x32xf32>, vector<2x32xf32> -> vector<2x96xf32>
    %cst_41 = arith.constant dense<0.000000e+00> : vector<2x480xf32>
    %121 = tpu.matmul %120, %1, %cst_41 {dimension_numbers = #tpu.dot_dimension_numbers<[1], [0], [0], [1], [0, 0, 1, 1], [], []>} : vector<2x96xf32>, vector<96x480xf32>, vector<2x480xf32> -> vector<2x480xf32>
    %122 = vector.extract_strided_slice %121 {offsets = [0, 0], sizes = [2, 96], strides = [1, 1]} : vector<2x480xf32> to vector<2x96xf32>
    %123 = vector.extract_strided_slice %17 {offsets = [4, 0], sizes = [2, 96], strides = [1, 1]} : vector<16x96xf32> to vector<2x96xf32>
    %124 = vector.extract_strided_slice %123 {offsets = [0, 0], sizes = [2, 32], strides = [1, 1]} : vector<2x96xf32> to vector<2x32xf32>
    %125 = vector.extract_strided_slice %122 {offsets = [0, 0], sizes = [2, 32], strides = [1, 1]} : vector<2x96xf32> to vector<2x32xf32>
    %126 = arith.addf %124, %125 : vector<2x32xf32>
    %127 = arith.negf %126 : vector<2x32xf32>
    %128 = math.exp %127 : vector<2x32xf32>
    %cst_42 = arith.constant 1.000000e+00 : f32
    %129 = vector.broadcast %cst_42 : f32 to vector<2x32xf32>
    %130 = arith.addf %129, %128 : vector<2x32xf32>
    %131 = arith.divf %129, %130 : vector<2x32xf32>
    %132 = vector.extract_strided_slice %123 {offsets = [0, 32], sizes = [2, 32], strides = [1, 1]} : vector<2x96xf32> to vector<2x32xf32>
    %133 = vector.extract_strided_slice %122 {offsets = [0, 32], sizes = [2, 32], strides = [1, 1]} : vector<2x96xf32> to vector<2x32xf32>
    %134 = arith.addf %132, %133 : vector<2x32xf32>
    %135 = arith.negf %134 : vector<2x32xf32>
    %136 = math.exp %135 : vector<2x32xf32>
    %cst_43 = arith.constant 1.000000e+00 : f32
    %137 = vector.broadcast %cst_43 : f32 to vector<2x32xf32>
    %138 = arith.addf %137, %136 : vector<2x32xf32>
    %139 = arith.divf %137, %138 : vector<2x32xf32>
    %140 = vector.extract_strided_slice %123 {offsets = [0, 64], sizes = [2, 32], strides = [1, 1]} : vector<2x96xf32> to vector<2x32xf32>
    %141 = vector.extract_strided_slice %122 {offsets = [0, 64], sizes = [2, 32], strides = [1, 1]} : vector<2x96xf32> to vector<2x32xf32>
    %142 = vector.broadcast %9 : vector<1x32xf32> to vector<2x32xf32>
    %143 = arith.addf %141, %142 : vector<2x32xf32>
    %144 = arith.mulf %131, %143 : vector<2x32xf32>
    %145 = arith.addf %140, %144 : vector<2x32xf32>
    %146 = math.tanh %145 : vector<2x32xf32>
    %cst_44 = arith.constant 1.000000e+00 : f32
    %147 = vector.broadcast %cst_44 : f32 to vector<2x32xf32>
    %148 = arith.subf %147, %139 : vector<2x32xf32>
    %149 = arith.mulf %148, %146 : vector<2x32xf32>
    %150 = arith.mulf %139, %87 : vector<2x32xf32>
    %151 = arith.addf %149, %150 : vector<2x32xf32>
    %152 = vector.extract_strided_slice %121 {offsets = [0, 96], sizes = [2, 96], strides = [1, 1]} : vector<2x480xf32> to vector<2x96xf32>
    %153 = vector.extract_strided_slice %121 {offsets = [0, 288], sizes = [2, 96], strides = [1, 1]} : vector<2x480xf32> to vector<2x96xf32>
    %154 = vector.broadcast %5 : vector<1x96xf32> to vector<2x96xf32>
    %155 = arith.addf %153, %154 : vector<2x96xf32>
    %156 = vector.extract_strided_slice %155 {offsets = [0, 0], sizes = [2, 32], strides = [1, 1]} : vector<2x96xf32> to vector<2x32xf32>
    %157 = vector.extract_strided_slice %152 {offsets = [0, 0], sizes = [2, 32], strides = [1, 1]} : vector<2x96xf32> to vector<2x32xf32>
    %158 = arith.addf %156, %157 : vector<2x32xf32>
    %159 = arith.negf %158 : vector<2x32xf32>
    %160 = math.exp %159 : vector<2x32xf32>
    %cst_45 = arith.constant 1.000000e+00 : f32
    %161 = vector.broadcast %cst_45 : f32 to vector<2x32xf32>
    %162 = arith.addf %161, %160 : vector<2x32xf32>
    %163 = arith.divf %161, %162 : vector<2x32xf32>
    %164 = vector.extract_strided_slice %155 {offsets = [0, 32], sizes = [2, 32], strides = [1, 1]} : vector<2x96xf32> to vector<2x32xf32>
    %165 = vector.extract_strided_slice %152 {offsets = [0, 32], sizes = [2, 32], strides = [1, 1]} : vector<2x96xf32> to vector<2x32xf32>
    %166 = arith.addf %164, %165 : vector<2x32xf32>
    %167 = arith.negf %166 : vector<2x32xf32>
    %168 = math.exp %167 : vector<2x32xf32>
    %cst_46 = arith.constant 1.000000e+00 : f32
    %169 = vector.broadcast %cst_46 : f32 to vector<2x32xf32>
    %170 = arith.addf %169, %168 : vector<2x32xf32>
    %171 = arith.divf %169, %170 : vector<2x32xf32>
    %172 = vector.extract_strided_slice %155 {offsets = [0, 64], sizes = [2, 32], strides = [1, 1]} : vector<2x96xf32> to vector<2x32xf32>
    %173 = vector.extract_strided_slice %152 {offsets = [0, 64], sizes = [2, 32], strides = [1, 1]} : vector<2x96xf32> to vector<2x32xf32>
    %174 = vector.broadcast %11 : vector<1x32xf32> to vector<2x32xf32>
    %175 = arith.addf %173, %174 : vector<2x32xf32>
    %176 = arith.mulf %163, %175 : vector<2x32xf32>
    %177 = arith.addf %172, %176 : vector<2x32xf32>
    %178 = math.tanh %177 : vector<2x32xf32>
    %cst_47 = arith.constant 1.000000e+00 : f32
    %179 = vector.broadcast %cst_47 : f32 to vector<2x32xf32>
    %180 = arith.subf %179, %171 : vector<2x32xf32>
    %181 = arith.mulf %180, %178 : vector<2x32xf32>
    %182 = arith.mulf %171, %119 : vector<2x32xf32>
    %183 = arith.addf %181, %182 : vector<2x32xf32>
    %184 = vector.extract_strided_slice %121 {offsets = [0, 192], sizes = [2, 96], strides = [1, 1]} : vector<2x480xf32> to vector<2x96xf32>
    %185 = vector.extract_strided_slice %121 {offsets = [0, 384], sizes = [2, 96], strides = [1, 1]} : vector<2x480xf32> to vector<2x96xf32>
    %186 = vector.broadcast %7 : vector<1x96xf32> to vector<2x96xf32>
    %187 = arith.addf %185, %186 : vector<2x96xf32>
    %188 = vector.extract_strided_slice %187 {offsets = [0, 0], sizes = [2, 32], strides = [1, 1]} : vector<2x96xf32> to vector<2x32xf32>
    %189 = vector.extract_strided_slice %184 {offsets = [0, 0], sizes = [2, 32], strides = [1, 1]} : vector<2x96xf32> to vector<2x32xf32>
    %190 = arith.addf %188, %189 : vector<2x32xf32>
    %191 = arith.negf %190 : vector<2x32xf32>
    %192 = math.exp %191 : vector<2x32xf32>
    %cst_48 = arith.constant 1.000000e+00 : f32
    %193 = vector.broadcast %cst_48 : f32 to vector<2x32xf32>
    %194 = arith.addf %193, %192 : vector<2x32xf32>
    %195 = arith.divf %193, %194 : vector<2x32xf32>
    %196 = vector.extract_strided_slice %187 {offsets = [0, 32], sizes = [2, 32], strides = [1, 1]} : vector<2x96xf32> to vector<2x32xf32>
    %197 = vector.extract_strided_slice %184 {offsets = [0, 32], sizes = [2, 32], strides = [1, 1]} : vector<2x96xf32> to vector<2x32xf32>
    %198 = arith.addf %196, %197 : vector<2x32xf32>
    %199 = arith.negf %198 : vector<2x32xf32>
    %200 = math.exp %199 : vector<2x32xf32>
    %cst_49 = arith.constant 1.000000e+00 : f32
    %201 = vector.broadcast %cst_49 : f32 to vector<2x32xf32>
    %202 = arith.addf %201, %200 : vector<2x32xf32>
    %203 = arith.divf %201, %202 : vector<2x32xf32>
    %204 = vector.extract_strided_slice %187 {offsets = [0, 64], sizes = [2, 32], strides = [1, 1]} : vector<2x96xf32> to vector<2x32xf32>
    %205 = vector.extract_strided_slice %184 {offsets = [0, 64], sizes = [2, 32], strides = [1, 1]} : vector<2x96xf32> to vector<2x32xf32>
    %206 = vector.broadcast %13 : vector<1x32xf32> to vector<2x32xf32>
    %207 = arith.addf %205, %206 : vector<2x32xf32>
    %208 = arith.mulf %195, %207 : vector<2x32xf32>
    %209 = arith.addf %204, %208 : vector<2x32xf32>
    %210 = math.tanh %209 : vector<2x32xf32>
    %cst_50 = arith.constant 1.000000e+00 : f32
    %211 = vector.broadcast %cst_50 : f32 to vector<2x32xf32>
    %212 = arith.subf %211, %203 : vector<2x32xf32>
    %213 = arith.mulf %212, %210 : vector<2x32xf32>
    %214 = arith.mulf %203, %23 : vector<2x32xf32>
    %215 = arith.addf %213, %214 : vector<2x32xf32>
    %216 = tpu.concatenate %151, %183, %215 in 1 : vector<2x32xf32>, vector<2x32xf32>, vector<2x32xf32> -> vector<2x96xf32>
    %cst_51 = arith.constant dense<0.000000e+00> : vector<2x480xf32>
    %217 = tpu.matmul %216, %1, %cst_51 {dimension_numbers = #tpu.dot_dimension_numbers<[1], [0], [0], [1], [0, 0, 1, 1], [], []>} : vector<2x96xf32>, vector<96x480xf32>, vector<2x480xf32> -> vector<2x480xf32>
    %218 = vector.extract_strided_slice %217 {offsets = [0, 0], sizes = [2, 96], strides = [1, 1]} : vector<2x480xf32> to vector<2x96xf32>
    %219 = vector.extract_strided_slice %17 {offsets = [6, 0], sizes = [2, 96], strides = [1, 1]} : vector<16x96xf32> to vector<2x96xf32>
    %220 = vector.extract_strided_slice %219 {offsets = [0, 0], sizes = [2, 32], strides = [1, 1]} : vector<2x96xf32> to vector<2x32xf32>
    %221 = vector.extract_strided_slice %218 {offsets = [0, 0], sizes = [2, 32], strides = [1, 1]} : vector<2x96xf32> to vector<2x32xf32>
    %222 = arith.addf %220, %221 : vector<2x32xf32>
    %223 = arith.negf %222 : vector<2x32xf32>
    %224 = math.exp %223 : vector<2x32xf32>
    %cst_52 = arith.constant 1.000000e+00 : f32
    %225 = vector.broadcast %cst_52 : f32 to vector<2x32xf32>
    %226 = arith.addf %225, %224 : vector<2x32xf32>
    %227 = arith.divf %225, %226 : vector<2x32xf32>
    %228 = vector.extract_strided_slice %219 {offsets = [0, 32], sizes = [2, 32], strides = [1, 1]} : vector<2x96xf32> to vector<2x32xf32>
    %229 = vector.extract_strided_slice %218 {offsets = [0, 32], sizes = [2, 32], strides = [1, 1]} : vector<2x96xf32> to vector<2x32xf32>
    %230 = arith.addf %228, %229 : vector<2x32xf32>
    %231 = arith.negf %230 : vector<2x32xf32>
    %232 = math.exp %231 : vector<2x32xf32>
    %cst_53 = arith.constant 1.000000e+00 : f32
    %233 = vector.broadcast %cst_53 : f32 to vector<2x32xf32>
    %234 = arith.addf %233, %232 : vector<2x32xf32>
    %235 = arith.divf %233, %234 : vector<2x32xf32>
    %236 = vector.extract_strided_slice %219 {offsets = [0, 64], sizes = [2, 32], strides = [1, 1]} : vector<2x96xf32> to vector<2x32xf32>
    %237 = vector.extract_strided_slice %218 {offsets = [0, 64], sizes = [2, 32], strides = [1, 1]} : vector<2x96xf32> to vector<2x32xf32>
    %238 = vector.broadcast %9 : vector<1x32xf32> to vector<2x32xf32>
    %239 = arith.addf %237, %238 : vector<2x32xf32>
    %240 = arith.mulf %227, %239 : vector<2x32xf32>
    %241 = arith.addf %236, %240 : vector<2x32xf32>
    %242 = math.tanh %241 : vector<2x32xf32>
    %cst_54 = arith.constant 1.000000e+00 : f32
    %243 = vector.broadcast %cst_54 : f32 to vector<2x32xf32>
    %244 = arith.subf %243, %235 : vector<2x32xf32>
    %245 = arith.mulf %244, %242 : vector<2x32xf32>
    %246 = arith.mulf %235, %151 : vector<2x32xf32>
    %247 = arith.addf %245, %246 : vector<2x32xf32>
    %248 = vector.extract_strided_slice %217 {offsets = [0, 96], sizes = [2, 96], strides = [1, 1]} : vector<2x480xf32> to vector<2x96xf32>
    %249 = vector.extract_strided_slice %217 {offsets = [0, 288], sizes = [2, 96], strides = [1, 1]} : vector<2x480xf32> to vector<2x96xf32>
    %250 = vector.broadcast %5 : vector<1x96xf32> to vector<2x96xf32>
    %251 = arith.addf %249, %250 : vector<2x96xf32>
    %252 = vector.extract_strided_slice %251 {offsets = [0, 0], sizes = [2, 32], strides = [1, 1]} : vector<2x96xf32> to vector<2x32xf32>
    %253 = vector.extract_strided_slice %248 {offsets = [0, 0], sizes = [2, 32], strides = [1, 1]} : vector<2x96xf32> to vector<2x32xf32>
    %254 = arith.addf %252, %253 : vector<2x32xf32>
    %255 = arith.negf %254 : vector<2x32xf32>
    %256 = math.exp %255 : vector<2x32xf32>
    %cst_55 = arith.constant 1.000000e+00 : f32
    %257 = vector.broadcast %cst_55 : f32 to vector<2x32xf32>
    %258 = arith.addf %257, %256 : vector<2x32xf32>
    %259 = arith.divf %257, %258 : vector<2x32xf32>
    %260 = vector.extract_strided_slice %251 {offsets = [0, 32], sizes = [2, 32], strides = [1, 1]} : vector<2x96xf32> to vector<2x32xf32>
    %261 = vector.extract_strided_slice %248 {offsets = [0, 32], sizes = [2, 32], strides = [1, 1]} : vector<2x96xf32> to vector<2x32xf32>
    %262 = arith.addf %260, %261 : vector<2x32xf32>
    %263 = arith.negf %262 : vector<2x32xf32>
    %264 = math.exp %263 : vector<2x32xf32>
    %cst_56 = arith.constant 1.000000e+00 : f32
    %265 = vector.broadcast %cst_56 : f32 to vector<2x32xf32>
    %266 = arith.addf %265, %264 : vector<2x32xf32>
    %267 = arith.divf %265, %266 : vector<2x32xf32>
    %268 = vector.extract_strided_slice %251 {offsets = [0, 64], sizes = [2, 32], strides = [1, 1]} : vector<2x96xf32> to vector<2x32xf32>
    %269 = vector.extract_strided_slice %248 {offsets = [0, 64], sizes = [2, 32], strides = [1, 1]} : vector<2x96xf32> to vector<2x32xf32>
    %270 = vector.broadcast %11 : vector<1x32xf32> to vector<2x32xf32>
    %271 = arith.addf %269, %270 : vector<2x32xf32>
    %272 = arith.mulf %259, %271 : vector<2x32xf32>
    %273 = arith.addf %268, %272 : vector<2x32xf32>
    %274 = math.tanh %273 : vector<2x32xf32>
    %cst_57 = arith.constant 1.000000e+00 : f32
    %275 = vector.broadcast %cst_57 : f32 to vector<2x32xf32>
    %276 = arith.subf %275, %267 : vector<2x32xf32>
    %277 = arith.mulf %276, %274 : vector<2x32xf32>
    %278 = arith.mulf %267, %183 : vector<2x32xf32>
    %279 = arith.addf %277, %278 : vector<2x32xf32>
    %280 = vector.extract_strided_slice %217 {offsets = [0, 192], sizes = [2, 96], strides = [1, 1]} : vector<2x480xf32> to vector<2x96xf32>
    %281 = vector.extract_strided_slice %217 {offsets = [0, 384], sizes = [2, 96], strides = [1, 1]} : vector<2x480xf32> to vector<2x96xf32>
    %282 = vector.broadcast %7 : vector<1x96xf32> to vector<2x96xf32>
    %283 = arith.addf %281, %282 : vector<2x96xf32>
    %284 = vector.extract_strided_slice %283 {offsets = [0, 0], sizes = [2, 32], strides = [1, 1]} : vector<2x96xf32> to vector<2x32xf32>
    %285 = vector.extract_strided_slice %280 {offsets = [0, 0], sizes = [2, 32], strides = [1, 1]} : vector<2x96xf32> to vector<2x32xf32>
    %286 = arith.addf %284, %285 : vector<2x32xf32>
    %287 = arith.negf %286 : vector<2x32xf32>
    %288 = math.exp %287 : vector<2x32xf32>
    %cst_58 = arith.constant 1.000000e+00 : f32
    %289 = vector.broadcast %cst_58 : f32 to vector<2x32xf32>
    %290 = arith.addf %289, %288 : vector<2x32xf32>
    %291 = arith.divf %289, %290 : vector<2x32xf32>
    %292 = vector.extract_strided_slice %283 {offsets = [0, 32], sizes = [2, 32], strides = [1, 1]} : vector<2x96xf32> to vector<2x32xf32>
    %293 = vector.extract_strided_slice %280 {offsets = [0, 32], sizes = [2, 32], strides = [1, 1]} : vector<2x96xf32> to vector<2x32xf32>
    %294 = arith.addf %292, %293 : vector<2x32xf32>
    %295 = arith.negf %294 : vector<2x32xf32>
    %296 = math.exp %295 : vector<2x32xf32>
    %cst_59 = arith.constant 1.000000e+00 : f32
    %297 = vector.broadcast %cst_59 : f32 to vector<2x32xf32>
    %298 = arith.addf %297, %296 : vector<2x32xf32>
    %299 = arith.divf %297, %298 : vector<2x32xf32>
    %300 = vector.extract_strided_slice %283 {offsets = [0, 64], sizes = [2, 32], strides = [1, 1]} : vector<2x96xf32> to vector<2x32xf32>
    %301 = vector.extract_strided_slice %280 {offsets = [0, 64], sizes = [2, 32], strides = [1, 1]} : vector<2x96xf32> to vector<2x32xf32>
    %302 = vector.broadcast %13 : vector<1x32xf32> to vector<2x32xf32>
    %303 = arith.addf %301, %302 : vector<2x32xf32>
    %304 = arith.mulf %291, %303 : vector<2x32xf32>
    %305 = arith.addf %300, %304 : vector<2x32xf32>
    %306 = math.tanh %305 : vector<2x32xf32>
    %cst_60 = arith.constant 1.000000e+00 : f32
    %307 = vector.broadcast %cst_60 : f32 to vector<2x32xf32>
    %308 = arith.subf %307, %299 : vector<2x32xf32>
    %309 = arith.mulf %308, %306 : vector<2x32xf32>
    %310 = arith.mulf %299, %215 : vector<2x32xf32>
    %311 = arith.addf %309, %310 : vector<2x32xf32>
    %312 = tpu.concatenate %247, %279, %311 in 1 : vector<2x32xf32>, vector<2x32xf32>, vector<2x32xf32> -> vector<2x96xf32>
    %cst_61 = arith.constant dense<0.000000e+00> : vector<2x480xf32>
    %313 = tpu.matmul %312, %1, %cst_61 {dimension_numbers = #tpu.dot_dimension_numbers<[1], [0], [0], [1], [0, 0, 1, 1], [], []>} : vector<2x96xf32>, vector<96x480xf32>, vector<2x480xf32> -> vector<2x480xf32>
    %314 = vector.extract_strided_slice %313 {offsets = [0, 0], sizes = [2, 96], strides = [1, 1]} : vector<2x480xf32> to vector<2x96xf32>
    %315 = vector.extract_strided_slice %17 {offsets = [8, 0], sizes = [2, 96], strides = [1, 1]} : vector<16x96xf32> to vector<2x96xf32>
    %316 = vector.extract_strided_slice %315 {offsets = [0, 0], sizes = [2, 32], strides = [1, 1]} : vector<2x96xf32> to vector<2x32xf32>
    %317 = vector.extract_strided_slice %314 {offsets = [0, 0], sizes = [2, 32], strides = [1, 1]} : vector<2x96xf32> to vector<2x32xf32>
    %318 = arith.addf %316, %317 : vector<2x32xf32>
    %319 = arith.negf %318 : vector<2x32xf32>
    %320 = math.exp %319 : vector<2x32xf32>
    %cst_62 = arith.constant 1.000000e+00 : f32
    %321 = vector.broadcast %cst_62 : f32 to vector<2x32xf32>
    %322 = arith.addf %321, %320 : vector<2x32xf32>
    %323 = arith.divf %321, %322 : vector<2x32xf32>
    %324 = vector.extract_strided_slice %315 {offsets = [0, 32], sizes = [2, 32], strides = [1, 1]} : vector<2x96xf32> to vector<2x32xf32>
    %325 = vector.extract_strided_slice %314 {offsets = [0, 32], sizes = [2, 32], strides = [1, 1]} : vector<2x96xf32> to vector<2x32xf32>
    %326 = arith.addf %324, %325 : vector<2x32xf32>
    %327 = arith.negf %326 : vector<2x32xf32>
    %328 = math.exp %327 : vector<2x32xf32>
    %cst_63 = arith.constant 1.000000e+00 : f32
    %329 = vector.broadcast %cst_63 : f32 to vector<2x32xf32>
    %330 = arith.addf %329, %328 : vector<2x32xf32>
    %331 = arith.divf %329, %330 : vector<2x32xf32>
    %332 = vector.extract_strided_slice %315 {offsets = [0, 64], sizes = [2, 32], strides = [1, 1]} : vector<2x96xf32> to vector<2x32xf32>
    %333 = vector.extract_strided_slice %314 {offsets = [0, 64], sizes = [2, 32], strides = [1, 1]} : vector<2x96xf32> to vector<2x32xf32>
    %334 = vector.broadcast %9 : vector<1x32xf32> to vector<2x32xf32>
    %335 = arith.addf %333, %334 : vector<2x32xf32>
    %336 = arith.mulf %323, %335 : vector<2x32xf32>
    %337 = arith.addf %332, %336 : vector<2x32xf32>
    %338 = math.tanh %337 : vector<2x32xf32>
    %cst_64 = arith.constant 1.000000e+00 : f32
    %339 = vector.broadcast %cst_64 : f32 to vector<2x32xf32>
    %340 = arith.subf %339, %331 : vector<2x32xf32>
    %341 = arith.mulf %340, %338 : vector<2x32xf32>
    %342 = arith.mulf %331, %247 : vector<2x32xf32>
    %343 = arith.addf %341, %342 : vector<2x32xf32>
    %344 = vector.extract_strided_slice %313 {offsets = [0, 96], sizes = [2, 96], strides = [1, 1]} : vector<2x480xf32> to vector<2x96xf32>
    %345 = vector.extract_strided_slice %313 {offsets = [0, 288], sizes = [2, 96], strides = [1, 1]} : vector<2x480xf32> to vector<2x96xf32>
    %346 = vector.broadcast %5 : vector<1x96xf32> to vector<2x96xf32>
    %347 = arith.addf %345, %346 : vector<2x96xf32>
    %348 = vector.extract_strided_slice %347 {offsets = [0, 0], sizes = [2, 32], strides = [1, 1]} : vector<2x96xf32> to vector<2x32xf32>
    %349 = vector.extract_strided_slice %344 {offsets = [0, 0], sizes = [2, 32], strides = [1, 1]} : vector<2x96xf32> to vector<2x32xf32>
    %350 = arith.addf %348, %349 : vector<2x32xf32>
    %351 = arith.negf %350 : vector<2x32xf32>
    %352 = math.exp %351 : vector<2x32xf32>
    %cst_65 = arith.constant 1.000000e+00 : f32
    %353 = vector.broadcast %cst_65 : f32 to vector<2x32xf32>
    %354 = arith.addf %353, %352 : vector<2x32xf32>
    %355 = arith.divf %353, %354 : vector<2x32xf32>
    %356 = vector.extract_strided_slice %347 {offsets = [0, 32], sizes = [2, 32], strides = [1, 1]} : vector<2x96xf32> to vector<2x32xf32>
    %357 = vector.extract_strided_slice %344 {offsets = [0, 32], sizes = [2, 32], strides = [1, 1]} : vector<2x96xf32> to vector<2x32xf32>
    %358 = arith.addf %356, %357 : vector<2x32xf32>
    %359 = arith.negf %358 : vector<2x32xf32>
    %360 = math.exp %359 : vector<2x32xf32>
    %cst_66 = arith.constant 1.000000e+00 : f32
    %361 = vector.broadcast %cst_66 : f32 to vector<2x32xf32>
    %362 = arith.addf %361, %360 : vector<2x32xf32>
    %363 = arith.divf %361, %362 : vector<2x32xf32>
    %364 = vector.extract_strided_slice %347 {offsets = [0, 64], sizes = [2, 32], strides = [1, 1]} : vector<2x96xf32> to vector<2x32xf32>
    %365 = vector.extract_strided_slice %344 {offsets = [0, 64], sizes = [2, 32], strides = [1, 1]} : vector<2x96xf32> to vector<2x32xf32>
    %366 = vector.broadcast %11 : vector<1x32xf32> to vector<2x32xf32>
    %367 = arith.addf %365, %366 : vector<2x32xf32>
    %368 = arith.mulf %355, %367 : vector<2x32xf32>
    %369 = arith.addf %364, %368 : vector<2x32xf32>
    %370 = math.tanh %369 : vector<2x32xf32>
    %cst_67 = arith.constant 1.000000e+00 : f32
    %371 = vector.broadcast %cst_67 : f32 to vector<2x32xf32>
    %372 = arith.subf %371, %363 : vector<2x32xf32>
    %373 = arith.mulf %372, %370 : vector<2x32xf32>
    %374 = arith.mulf %363, %279 : vector<2x32xf32>
    %375 = arith.addf %373, %374 : vector<2x32xf32>
    %376 = vector.extract_strided_slice %313 {offsets = [0, 192], sizes = [2, 96], strides = [1, 1]} : vector<2x480xf32> to vector<2x96xf32>
    %377 = vector.extract_strided_slice %313 {offsets = [0, 384], sizes = [2, 96], strides = [1, 1]} : vector<2x480xf32> to vector<2x96xf32>
    %378 = vector.broadcast %7 : vector<1x96xf32> to vector<2x96xf32>
    %379 = arith.addf %377, %378 : vector<2x96xf32>
    %380 = vector.extract_strided_slice %379 {offsets = [0, 0], sizes = [2, 32], strides = [1, 1]} : vector<2x96xf32> to vector<2x32xf32>
    %381 = vector.extract_strided_slice %376 {offsets = [0, 0], sizes = [2, 32], strides = [1, 1]} : vector<2x96xf32> to vector<2x32xf32>
    %382 = arith.addf %380, %381 : vector<2x32xf32>
    %383 = arith.negf %382 : vector<2x32xf32>
    %384 = math.exp %383 : vector<2x32xf32>
    %cst_68 = arith.constant 1.000000e+00 : f32
    %385 = vector.broadcast %cst_68 : f32 to vector<2x32xf32>
    %386 = arith.addf %385, %384 : vector<2x32xf32>
    %387 = arith.divf %385, %386 : vector<2x32xf32>
    %388 = vector.extract_strided_slice %379 {offsets = [0, 32], sizes = [2, 32], strides = [1, 1]} : vector<2x96xf32> to vector<2x32xf32>
    %389 = vector.extract_strided_slice %376 {offsets = [0, 32], sizes = [2, 32], strides = [1, 1]} : vector<2x96xf32> to vector<2x32xf32>
    %390 = arith.addf %388, %389 : vector<2x32xf32>
    %391 = arith.negf %390 : vector<2x32xf32>
    %392 = math.exp %391 : vector<2x32xf32>
    %cst_69 = arith.constant 1.000000e+00 : f32
    %393 = vector.broadcast %cst_69 : f32 to vector<2x32xf32>
    %394 = arith.addf %393, %392 : vector<2x32xf32>
    %395 = arith.divf %393, %394 : vector<2x32xf32>
    %396 = vector.extract_strided_slice %379 {offsets = [0, 64], sizes = [2, 32], strides = [1, 1]} : vector<2x96xf32> to vector<2x32xf32>
    %397 = vector.extract_strided_slice %376 {offsets = [0, 64], sizes = [2, 32], strides = [1, 1]} : vector<2x96xf32> to vector<2x32xf32>
    %398 = vector.broadcast %13 : vector<1x32xf32> to vector<2x32xf32>
    %399 = arith.addf %397, %398 : vector<2x32xf32>
    %400 = arith.mulf %387, %399 : vector<2x32xf32>
    %401 = arith.addf %396, %400 : vector<2x32xf32>
    %402 = math.tanh %401 : vector<2x32xf32>
    %cst_70 = arith.constant 1.000000e+00 : f32
    %403 = vector.broadcast %cst_70 : f32 to vector<2x32xf32>
    %404 = arith.subf %403, %395 : vector<2x32xf32>
    %405 = arith.mulf %404, %402 : vector<2x32xf32>
    %406 = arith.mulf %395, %311 : vector<2x32xf32>
    %407 = arith.addf %405, %406 : vector<2x32xf32>
    %408 = tpu.concatenate %343, %375, %407 in 1 : vector<2x32xf32>, vector<2x32xf32>, vector<2x32xf32> -> vector<2x96xf32>
    %cst_71 = arith.constant dense<0.000000e+00> : vector<2x480xf32>
    %409 = tpu.matmul %408, %1, %cst_71 {dimension_numbers = #tpu.dot_dimension_numbers<[1], [0], [0], [1], [0, 0, 1, 1], [], []>} : vector<2x96xf32>, vector<96x480xf32>, vector<2x480xf32> -> vector<2x480xf32>
    %410 = vector.extract_strided_slice %409 {offsets = [0, 0], sizes = [2, 96], strides = [1, 1]} : vector<2x480xf32> to vector<2x96xf32>
    %411 = vector.extract_strided_slice %17 {offsets = [10, 0], sizes = [2, 96], strides = [1, 1]} : vector<16x96xf32> to vector<2x96xf32>
    %412 = vector.extract_strided_slice %411 {offsets = [0, 0], sizes = [2, 32], strides = [1, 1]} : vector<2x96xf32> to vector<2x32xf32>
    %413 = vector.extract_strided_slice %410 {offsets = [0, 0], sizes = [2, 32], strides = [1, 1]} : vector<2x96xf32> to vector<2x32xf32>
    %414 = arith.addf %412, %413 : vector<2x32xf32>
    %415 = arith.negf %414 : vector<2x32xf32>
    %416 = math.exp %415 : vector<2x32xf32>
    %cst_72 = arith.constant 1.000000e+00 : f32
    %417 = vector.broadcast %cst_72 : f32 to vector<2x32xf32>
    %418 = arith.addf %417, %416 : vector<2x32xf32>
    %419 = arith.divf %417, %418 : vector<2x32xf32>
    %420 = vector.extract_strided_slice %411 {offsets = [0, 32], sizes = [2, 32], strides = [1, 1]} : vector<2x96xf32> to vector<2x32xf32>
    %421 = vector.extract_strided_slice %410 {offsets = [0, 32], sizes = [2, 32], strides = [1, 1]} : vector<2x96xf32> to vector<2x32xf32>
    %422 = arith.addf %420, %421 : vector<2x32xf32>
    %423 = arith.negf %422 : vector<2x32xf32>
    %424 = math.exp %423 : vector<2x32xf32>
    %cst_73 = arith.constant 1.000000e+00 : f32
    %425 = vector.broadcast %cst_73 : f32 to vector<2x32xf32>
    %426 = arith.addf %425, %424 : vector<2x32xf32>
    %427 = arith.divf %425, %426 : vector<2x32xf32>
    %428 = vector.extract_strided_slice %411 {offsets = [0, 64], sizes = [2, 32], strides = [1, 1]} : vector<2x96xf32> to vector<2x32xf32>
    %429 = vector.extract_strided_slice %410 {offsets = [0, 64], sizes = [2, 32], strides = [1, 1]} : vector<2x96xf32> to vector<2x32xf32>
    %430 = vector.broadcast %9 : vector<1x32xf32> to vector<2x32xf32>
    %431 = arith.addf %429, %430 : vector<2x32xf32>
    %432 = arith.mulf %419, %431 : vector<2x32xf32>
    %433 = arith.addf %428, %432 : vector<2x32xf32>
    %434 = math.tanh %433 : vector<2x32xf32>
    %cst_74 = arith.constant 1.000000e+00 : f32
    %435 = vector.broadcast %cst_74 : f32 to vector<2x32xf32>
    %436 = arith.subf %435, %427 : vector<2x32xf32>
    %437 = arith.mulf %436, %434 : vector<2x32xf32>
    %438 = arith.mulf %427, %343 : vector<2x32xf32>
    %439 = arith.addf %437, %438 : vector<2x32xf32>
    %440 = vector.extract_strided_slice %409 {offsets = [0, 96], sizes = [2, 96], strides = [1, 1]} : vector<2x480xf32> to vector<2x96xf32>
    %441 = vector.extract_strided_slice %409 {offsets = [0, 288], sizes = [2, 96], strides = [1, 1]} : vector<2x480xf32> to vector<2x96xf32>
    %442 = vector.broadcast %5 : vector<1x96xf32> to vector<2x96xf32>
    %443 = arith.addf %441, %442 : vector<2x96xf32>
    %444 = vector.extract_strided_slice %443 {offsets = [0, 0], sizes = [2, 32], strides = [1, 1]} : vector<2x96xf32> to vector<2x32xf32>
    %445 = vector.extract_strided_slice %440 {offsets = [0, 0], sizes = [2, 32], strides = [1, 1]} : vector<2x96xf32> to vector<2x32xf32>
    %446 = arith.addf %444, %445 : vector<2x32xf32>
    %447 = arith.negf %446 : vector<2x32xf32>
    %448 = math.exp %447 : vector<2x32xf32>
    %cst_75 = arith.constant 1.000000e+00 : f32
    %449 = vector.broadcast %cst_75 : f32 to vector<2x32xf32>
    %450 = arith.addf %449, %448 : vector<2x32xf32>
    %451 = arith.divf %449, %450 : vector<2x32xf32>
    %452 = vector.extract_strided_slice %443 {offsets = [0, 32], sizes = [2, 32], strides = [1, 1]} : vector<2x96xf32> to vector<2x32xf32>
    %453 = vector.extract_strided_slice %440 {offsets = [0, 32], sizes = [2, 32], strides = [1, 1]} : vector<2x96xf32> to vector<2x32xf32>
    %454 = arith.addf %452, %453 : vector<2x32xf32>
    %455 = arith.negf %454 : vector<2x32xf32>
    %456 = math.exp %455 : vector<2x32xf32>
    %cst_76 = arith.constant 1.000000e+00 : f32
    %457 = vector.broadcast %cst_76 : f32 to vector<2x32xf32>
    %458 = arith.addf %457, %456 : vector<2x32xf32>
    %459 = arith.divf %457, %458 : vector<2x32xf32>
    %460 = vector.extract_strided_slice %443 {offsets = [0, 64], sizes = [2, 32], strides = [1, 1]} : vector<2x96xf32> to vector<2x32xf32>
    %461 = vector.extract_strided_slice %440 {offsets = [0, 64], sizes = [2, 32], strides = [1, 1]} : vector<2x96xf32> to vector<2x32xf32>
    %462 = vector.broadcast %11 : vector<1x32xf32> to vector<2x32xf32>
    %463 = arith.addf %461, %462 : vector<2x32xf32>
    %464 = arith.mulf %451, %463 : vector<2x32xf32>
    %465 = arith.addf %460, %464 : vector<2x32xf32>
    %466 = math.tanh %465 : vector<2x32xf32>
    %cst_77 = arith.constant 1.000000e+00 : f32
    %467 = vector.broadcast %cst_77 : f32 to vector<2x32xf32>
    %468 = arith.subf %467, %459 : vector<2x32xf32>
    %469 = arith.mulf %468, %466 : vector<2x32xf32>
    %470 = arith.mulf %459, %375 : vector<2x32xf32>
    %471 = arith.addf %469, %470 : vector<2x32xf32>
    %472 = vector.extract_strided_slice %409 {offsets = [0, 192], sizes = [2, 96], strides = [1, 1]} : vector<2x480xf32> to vector<2x96xf32>
    %473 = vector.extract_strided_slice %409 {offsets = [0, 384], sizes = [2, 96], strides = [1, 1]} : vector<2x480xf32> to vector<2x96xf32>
    %474 = vector.broadcast %7 : vector<1x96xf32> to vector<2x96xf32>
    %475 = arith.addf %473, %474 : vector<2x96xf32>
    %476 = vector.extract_strided_slice %475 {offsets = [0, 0], sizes = [2, 32], strides = [1, 1]} : vector<2x96xf32> to vector<2x32xf32>
    %477 = vector.extract_strided_slice %472 {offsets = [0, 0], sizes = [2, 32], strides = [1, 1]} : vector<2x96xf32> to vector<2x32xf32>
    %478 = arith.addf %476, %477 : vector<2x32xf32>
    %479 = arith.negf %478 : vector<2x32xf32>
    %480 = math.exp %479 : vector<2x32xf32>
    %cst_78 = arith.constant 1.000000e+00 : f32
    %481 = vector.broadcast %cst_78 : f32 to vector<2x32xf32>
    %482 = arith.addf %481, %480 : vector<2x32xf32>
    %483 = arith.divf %481, %482 : vector<2x32xf32>
    %484 = vector.extract_strided_slice %475 {offsets = [0, 32], sizes = [2, 32], strides = [1, 1]} : vector<2x96xf32> to vector<2x32xf32>
    %485 = vector.extract_strided_slice %472 {offsets = [0, 32], sizes = [2, 32], strides = [1, 1]} : vector<2x96xf32> to vector<2x32xf32>
    %486 = arith.addf %484, %485 : vector<2x32xf32>
    %487 = arith.negf %486 : vector<2x32xf32>
    %488 = math.exp %487 : vector<2x32xf32>
    %cst_79 = arith.constant 1.000000e+00 : f32
    %489 = vector.broadcast %cst_79 : f32 to vector<2x32xf32>
    %490 = arith.addf %489, %488 : vector<2x32xf32>
    %491 = arith.divf %489, %490 : vector<2x32xf32>
    %492 = vector.extract_strided_slice %475 {offsets = [0, 64], sizes = [2, 32], strides = [1, 1]} : vector<2x96xf32> to vector<2x32xf32>
    %493 = vector.extract_strided_slice %472 {offsets = [0, 64], sizes = [2, 32], strides = [1, 1]} : vector<2x96xf32> to vector<2x32xf32>
    %494 = vector.broadcast %13 : vector<1x32xf32> to vector<2x32xf32>
    %495 = arith.addf %493, %494 : vector<2x32xf32>
    %496 = arith.mulf %483, %495 : vector<2x32xf32>
    %497 = arith.addf %492, %496 : vector<2x32xf32>
    %498 = math.tanh %497 : vector<2x32xf32>
    %cst_80 = arith.constant 1.000000e+00 : f32
    %499 = vector.broadcast %cst_80 : f32 to vector<2x32xf32>
    %500 = arith.subf %499, %491 : vector<2x32xf32>
    %501 = arith.mulf %500, %498 : vector<2x32xf32>
    %502 = arith.mulf %491, %407 : vector<2x32xf32>
    %503 = arith.addf %501, %502 : vector<2x32xf32>
    %504 = tpu.concatenate %439, %471, %503 in 1 : vector<2x32xf32>, vector<2x32xf32>, vector<2x32xf32> -> vector<2x96xf32>
    %cst_81 = arith.constant dense<0.000000e+00> : vector<2x480xf32>
    %505 = tpu.matmul %504, %1, %cst_81 {dimension_numbers = #tpu.dot_dimension_numbers<[1], [0], [0], [1], [0, 0, 1, 1], [], []>} : vector<2x96xf32>, vector<96x480xf32>, vector<2x480xf32> -> vector<2x480xf32>
    %506 = vector.extract_strided_slice %505 {offsets = [0, 0], sizes = [2, 96], strides = [1, 1]} : vector<2x480xf32> to vector<2x96xf32>
    %507 = vector.extract_strided_slice %17 {offsets = [12, 0], sizes = [2, 96], strides = [1, 1]} : vector<16x96xf32> to vector<2x96xf32>
    %508 = vector.extract_strided_slice %507 {offsets = [0, 0], sizes = [2, 32], strides = [1, 1]} : vector<2x96xf32> to vector<2x32xf32>
    %509 = vector.extract_strided_slice %506 {offsets = [0, 0], sizes = [2, 32], strides = [1, 1]} : vector<2x96xf32> to vector<2x32xf32>
    %510 = arith.addf %508, %509 : vector<2x32xf32>
    %511 = arith.negf %510 : vector<2x32xf32>
    %512 = math.exp %511 : vector<2x32xf32>
    %cst_82 = arith.constant 1.000000e+00 : f32
    %513 = vector.broadcast %cst_82 : f32 to vector<2x32xf32>
    %514 = arith.addf %513, %512 : vector<2x32xf32>
    %515 = arith.divf %513, %514 : vector<2x32xf32>
    %516 = vector.extract_strided_slice %507 {offsets = [0, 32], sizes = [2, 32], strides = [1, 1]} : vector<2x96xf32> to vector<2x32xf32>
    %517 = vector.extract_strided_slice %506 {offsets = [0, 32], sizes = [2, 32], strides = [1, 1]} : vector<2x96xf32> to vector<2x32xf32>
    %518 = arith.addf %516, %517 : vector<2x32xf32>
    %519 = arith.negf %518 : vector<2x32xf32>
    %520 = math.exp %519 : vector<2x32xf32>
    %cst_83 = arith.constant 1.000000e+00 : f32
    %521 = vector.broadcast %cst_83 : f32 to vector<2x32xf32>
    %522 = arith.addf %521, %520 : vector<2x32xf32>
    %523 = arith.divf %521, %522 : vector<2x32xf32>
    %524 = vector.extract_strided_slice %507 {offsets = [0, 64], sizes = [2, 32], strides = [1, 1]} : vector<2x96xf32> to vector<2x32xf32>
    %525 = vector.extract_strided_slice %506 {offsets = [0, 64], sizes = [2, 32], strides = [1, 1]} : vector<2x96xf32> to vector<2x32xf32>
    %526 = vector.broadcast %9 : vector<1x32xf32> to vector<2x32xf32>
    %527 = arith.addf %525, %526 : vector<2x32xf32>
    %528 = arith.mulf %515, %527 : vector<2x32xf32>
    %529 = arith.addf %524, %528 : vector<2x32xf32>
    %530 = math.tanh %529 : vector<2x32xf32>
    %cst_84 = arith.constant 1.000000e+00 : f32
    %531 = vector.broadcast %cst_84 : f32 to vector<2x32xf32>
    %532 = arith.subf %531, %523 : vector<2x32xf32>
    %533 = arith.mulf %532, %530 : vector<2x32xf32>
    %534 = arith.mulf %523, %439 : vector<2x32xf32>
    %535 = arith.addf %533, %534 : vector<2x32xf32>
    %536 = vector.extract_strided_slice %505 {offsets = [0, 96], sizes = [2, 96], strides = [1, 1]} : vector<2x480xf32> to vector<2x96xf32>
    %537 = vector.extract_strided_slice %505 {offsets = [0, 288], sizes = [2, 96], strides = [1, 1]} : vector<2x480xf32> to vector<2x96xf32>
    %538 = vector.broadcast %5 : vector<1x96xf32> to vector<2x96xf32>
    %539 = arith.addf %537, %538 : vector<2x96xf32>
    %540 = vector.extract_strided_slice %539 {offsets = [0, 0], sizes = [2, 32], strides = [1, 1]} : vector<2x96xf32> to vector<2x32xf32>
    %541 = vector.extract_strided_slice %536 {offsets = [0, 0], sizes = [2, 32], strides = [1, 1]} : vector<2x96xf32> to vector<2x32xf32>
    %542 = arith.addf %540, %541 : vector<2x32xf32>
    %543 = arith.negf %542 : vector<2x32xf32>
    %544 = math.exp %543 : vector<2x32xf32>
    %cst_85 = arith.constant 1.000000e+00 : f32
    %545 = vector.broadcast %cst_85 : f32 to vector<2x32xf32>
    %546 = arith.addf %545, %544 : vector<2x32xf32>
    %547 = arith.divf %545, %546 : vector<2x32xf32>
    %548 = vector.extract_strided_slice %539 {offsets = [0, 32], sizes = [2, 32], strides = [1, 1]} : vector<2x96xf32> to vector<2x32xf32>
    %549 = vector.extract_strided_slice %536 {offsets = [0, 32], sizes = [2, 32], strides = [1, 1]} : vector<2x96xf32> to vector<2x32xf32>
    %550 = arith.addf %548, %549 : vector<2x32xf32>
    %551 = arith.negf %550 : vector<2x32xf32>
    %552 = math.exp %551 : vector<2x32xf32>
    %cst_86 = arith.constant 1.000000e+00 : f32
    %553 = vector.broadcast %cst_86 : f32 to vector<2x32xf32>
    %554 = arith.addf %553, %552 : vector<2x32xf32>
    %555 = arith.divf %553, %554 : vector<2x32xf32>
    %556 = vector.extract_strided_slice %539 {offsets = [0, 64], sizes = [2, 32], strides = [1, 1]} : vector<2x96xf32> to vector<2x32xf32>
    %557 = vector.extract_strided_slice %536 {offsets = [0, 64], sizes = [2, 32], strides = [1, 1]} : vector<2x96xf32> to vector<2x32xf32>
    %558 = vector.broadcast %11 : vector<1x32xf32> to vector<2x32xf32>
    %559 = arith.addf %557, %558 : vector<2x32xf32>
    %560 = arith.mulf %547, %559 : vector<2x32xf32>
    %561 = arith.addf %556, %560 : vector<2x32xf32>
    %562 = math.tanh %561 : vector<2x32xf32>
    %cst_87 = arith.constant 1.000000e+00 : f32
    %563 = vector.broadcast %cst_87 : f32 to vector<2x32xf32>
    %564 = arith.subf %563, %555 : vector<2x32xf32>
    %565 = arith.mulf %564, %562 : vector<2x32xf32>
    %566 = arith.mulf %555, %471 : vector<2x32xf32>
    %567 = arith.addf %565, %566 : vector<2x32xf32>
    %568 = vector.extract_strided_slice %505 {offsets = [0, 192], sizes = [2, 96], strides = [1, 1]} : vector<2x480xf32> to vector<2x96xf32>
    %569 = vector.extract_strided_slice %505 {offsets = [0, 384], sizes = [2, 96], strides = [1, 1]} : vector<2x480xf32> to vector<2x96xf32>
    %570 = vector.broadcast %7 : vector<1x96xf32> to vector<2x96xf32>
    %571 = arith.addf %569, %570 : vector<2x96xf32>
    %572 = vector.extract_strided_slice %571 {offsets = [0, 0], sizes = [2, 32], strides = [1, 1]} : vector<2x96xf32> to vector<2x32xf32>
    %573 = vector.extract_strided_slice %568 {offsets = [0, 0], sizes = [2, 32], strides = [1, 1]} : vector<2x96xf32> to vector<2x32xf32>
    %574 = arith.addf %572, %573 : vector<2x32xf32>
    %575 = arith.negf %574 : vector<2x32xf32>
    %576 = math.exp %575 : vector<2x32xf32>
    %cst_88 = arith.constant 1.000000e+00 : f32
    %577 = vector.broadcast %cst_88 : f32 to vector<2x32xf32>
    %578 = arith.addf %577, %576 : vector<2x32xf32>
    %579 = arith.divf %577, %578 : vector<2x32xf32>
    %580 = vector.extract_strided_slice %571 {offsets = [0, 32], sizes = [2, 32], strides = [1, 1]} : vector<2x96xf32> to vector<2x32xf32>
    %581 = vector.extract_strided_slice %568 {offsets = [0, 32], sizes = [2, 32], strides = [1, 1]} : vector<2x96xf32> to vector<2x32xf32>
    %582 = arith.addf %580, %581 : vector<2x32xf32>
    %583 = arith.negf %582 : vector<2x32xf32>
    %584 = math.exp %583 : vector<2x32xf32>
    %cst_89 = arith.constant 1.000000e+00 : f32
    %585 = vector.broadcast %cst_89 : f32 to vector<2x32xf32>
    %586 = arith.addf %585, %584 : vector<2x32xf32>
    %587 = arith.divf %585, %586 : vector<2x32xf32>
    %588 = vector.extract_strided_slice %571 {offsets = [0, 64], sizes = [2, 32], strides = [1, 1]} : vector<2x96xf32> to vector<2x32xf32>
    %589 = vector.extract_strided_slice %568 {offsets = [0, 64], sizes = [2, 32], strides = [1, 1]} : vector<2x96xf32> to vector<2x32xf32>
    %590 = vector.broadcast %13 : vector<1x32xf32> to vector<2x32xf32>
    %591 = arith.addf %589, %590 : vector<2x32xf32>
    %592 = arith.mulf %579, %591 : vector<2x32xf32>
    %593 = arith.addf %588, %592 : vector<2x32xf32>
    %594 = math.tanh %593 : vector<2x32xf32>
    %cst_90 = arith.constant 1.000000e+00 : f32
    %595 = vector.broadcast %cst_90 : f32 to vector<2x32xf32>
    %596 = arith.subf %595, %587 : vector<2x32xf32>
    %597 = arith.mulf %596, %594 : vector<2x32xf32>
    %598 = arith.mulf %587, %503 : vector<2x32xf32>
    %599 = arith.addf %597, %598 : vector<2x32xf32>
    %600 = tpu.concatenate %535, %567, %599 in 1 : vector<2x32xf32>, vector<2x32xf32>, vector<2x32xf32> -> vector<2x96xf32>
    %cst_91 = arith.constant dense<0.000000e+00> : vector<2x480xf32>
    %601 = tpu.matmul %600, %1, %cst_91 {dimension_numbers = #tpu.dot_dimension_numbers<[1], [0], [0], [1], [0, 0, 1, 1], [], []>} : vector<2x96xf32>, vector<96x480xf32>, vector<2x480xf32> -> vector<2x480xf32>
    %602 = vector.extract_strided_slice %601 {offsets = [0, 0], sizes = [2, 96], strides = [1, 1]} : vector<2x480xf32> to vector<2x96xf32>
    %603 = vector.extract_strided_slice %17 {offsets = [14, 0], sizes = [2, 96], strides = [1, 1]} : vector<16x96xf32> to vector<2x96xf32>
    %604 = vector.extract_strided_slice %603 {offsets = [0, 0], sizes = [2, 32], strides = [1, 1]} : vector<2x96xf32> to vector<2x32xf32>
    %605 = vector.extract_strided_slice %602 {offsets = [0, 0], sizes = [2, 32], strides = [1, 1]} : vector<2x96xf32> to vector<2x32xf32>
    %606 = arith.addf %604, %605 : vector<2x32xf32>
    %607 = arith.negf %606 : vector<2x32xf32>
    %608 = math.exp %607 : vector<2x32xf32>
    %cst_92 = arith.constant 1.000000e+00 : f32
    %609 = vector.broadcast %cst_92 : f32 to vector<2x32xf32>
    %610 = arith.addf %609, %608 : vector<2x32xf32>
    %611 = arith.divf %609, %610 : vector<2x32xf32>
    %612 = vector.extract_strided_slice %603 {offsets = [0, 32], sizes = [2, 32], strides = [1, 1]} : vector<2x96xf32> to vector<2x32xf32>
    %613 = vector.extract_strided_slice %602 {offsets = [0, 32], sizes = [2, 32], strides = [1, 1]} : vector<2x96xf32> to vector<2x32xf32>
    %614 = arith.addf %612, %613 : vector<2x32xf32>
    %615 = arith.negf %614 : vector<2x32xf32>
    %616 = math.exp %615 : vector<2x32xf32>
    %cst_93 = arith.constant 1.000000e+00 : f32
    %617 = vector.broadcast %cst_93 : f32 to vector<2x32xf32>
    %618 = arith.addf %617, %616 : vector<2x32xf32>
    %619 = arith.divf %617, %618 : vector<2x32xf32>
    %620 = vector.extract_strided_slice %603 {offsets = [0, 64], sizes = [2, 32], strides = [1, 1]} : vector<2x96xf32> to vector<2x32xf32>
    %621 = vector.extract_strided_slice %602 {offsets = [0, 64], sizes = [2, 32], strides = [1, 1]} : vector<2x96xf32> to vector<2x32xf32>
    %622 = vector.broadcast %9 : vector<1x32xf32> to vector<2x32xf32>
    %623 = arith.addf %621, %622 : vector<2x32xf32>
    %624 = arith.mulf %611, %623 : vector<2x32xf32>
    %625 = arith.addf %620, %624 : vector<2x32xf32>
    %626 = math.tanh %625 : vector<2x32xf32>
    %cst_94 = arith.constant 1.000000e+00 : f32
    %627 = vector.broadcast %cst_94 : f32 to vector<2x32xf32>
    %628 = arith.subf %627, %619 : vector<2x32xf32>
    %629 = arith.mulf %628, %626 : vector<2x32xf32>
    %630 = arith.mulf %619, %535 : vector<2x32xf32>
    %631 = arith.addf %629, %630 : vector<2x32xf32>
    %632 = vector.extract_strided_slice %601 {offsets = [0, 96], sizes = [2, 96], strides = [1, 1]} : vector<2x480xf32> to vector<2x96xf32>
    %633 = vector.extract_strided_slice %601 {offsets = [0, 288], sizes = [2, 96], strides = [1, 1]} : vector<2x480xf32> to vector<2x96xf32>
    %634 = vector.broadcast %5 : vector<1x96xf32> to vector<2x96xf32>
    %635 = arith.addf %633, %634 : vector<2x96xf32>
    %636 = vector.extract_strided_slice %635 {offsets = [0, 0], sizes = [2, 32], strides = [1, 1]} : vector<2x96xf32> to vector<2x32xf32>
    %637 = vector.extract_strided_slice %632 {offsets = [0, 0], sizes = [2, 32], strides = [1, 1]} : vector<2x96xf32> to vector<2x32xf32>
    %638 = arith.addf %636, %637 : vector<2x32xf32>
    %639 = arith.negf %638 : vector<2x32xf32>
    %640 = math.exp %639 : vector<2x32xf32>
    %cst_95 = arith.constant 1.000000e+00 : f32
    %641 = vector.broadcast %cst_95 : f32 to vector<2x32xf32>
    %642 = arith.addf %641, %640 : vector<2x32xf32>
    %643 = arith.divf %641, %642 : vector<2x32xf32>
    %644 = vector.extract_strided_slice %635 {offsets = [0, 32], sizes = [2, 32], strides = [1, 1]} : vector<2x96xf32> to vector<2x32xf32>
    %645 = vector.extract_strided_slice %632 {offsets = [0, 32], sizes = [2, 32], strides = [1, 1]} : vector<2x96xf32> to vector<2x32xf32>
    %646 = arith.addf %644, %645 : vector<2x32xf32>
    %647 = arith.negf %646 : vector<2x32xf32>
    %648 = math.exp %647 : vector<2x32xf32>
    %cst_96 = arith.constant 1.000000e+00 : f32
    %649 = vector.broadcast %cst_96 : f32 to vector<2x32xf32>
    %650 = arith.addf %649, %648 : vector<2x32xf32>
    %651 = arith.divf %649, %650 : vector<2x32xf32>
    %652 = vector.extract_strided_slice %635 {offsets = [0, 64], sizes = [2, 32], strides = [1, 1]} : vector<2x96xf32> to vector<2x32xf32>
    %653 = vector.extract_strided_slice %632 {offsets = [0, 64], sizes = [2, 32], strides = [1, 1]} : vector<2x96xf32> to vector<2x32xf32>
    %654 = vector.broadcast %11 : vector<1x32xf32> to vector<2x32xf32>
    %655 = arith.addf %653, %654 : vector<2x32xf32>
    %656 = arith.mulf %643, %655 : vector<2x32xf32>
    %657 = arith.addf %652, %656 : vector<2x32xf32>
    %658 = math.tanh %657 : vector<2x32xf32>
    %cst_97 = arith.constant 1.000000e+00 : f32
    %659 = vector.broadcast %cst_97 : f32 to vector<2x32xf32>
    %660 = arith.subf %659, %651 : vector<2x32xf32>
    %661 = arith.mulf %660, %658 : vector<2x32xf32>
    %662 = arith.mulf %651, %567 : vector<2x32xf32>
    %663 = arith.addf %661, %662 : vector<2x32xf32>
    %664 = vector.extract_strided_slice %601 {offsets = [0, 192], sizes = [2, 96], strides = [1, 1]} : vector<2x480xf32> to vector<2x96xf32>
    %665 = vector.extract_strided_slice %601 {offsets = [0, 384], sizes = [2, 96], strides = [1, 1]} : vector<2x480xf32> to vector<2x96xf32>
    %666 = vector.broadcast %7 : vector<1x96xf32> to vector<2x96xf32>
    %667 = arith.addf %665, %666 : vector<2x96xf32>
    %668 = vector.extract_strided_slice %667 {offsets = [0, 0], sizes = [2, 32], strides = [1, 1]} : vector<2x96xf32> to vector<2x32xf32>
    %669 = vector.extract_strided_slice %664 {offsets = [0, 0], sizes = [2, 32], strides = [1, 1]} : vector<2x96xf32> to vector<2x32xf32>
    %670 = arith.addf %668, %669 : vector<2x32xf32>
    %671 = arith.negf %670 : vector<2x32xf32>
    %672 = math.exp %671 : vector<2x32xf32>
    %cst_98 = arith.constant 1.000000e+00 : f32
    %673 = vector.broadcast %cst_98 : f32 to vector<2x32xf32>
    %674 = arith.addf %673, %672 : vector<2x32xf32>
    %675 = arith.divf %673, %674 : vector<2x32xf32>
    %676 = vector.extract_strided_slice %667 {offsets = [0, 32], sizes = [2, 32], strides = [1, 1]} : vector<2x96xf32> to vector<2x32xf32>
    %677 = vector.extract_strided_slice %664 {offsets = [0, 32], sizes = [2, 32], strides = [1, 1]} : vector<2x96xf32> to vector<2x32xf32>
    %678 = arith.addf %676, %677 : vector<2x32xf32>
    %679 = arith.negf %678 : vector<2x32xf32>
    %680 = math.exp %679 : vector<2x32xf32>
    %cst_99 = arith.constant 1.000000e+00 : f32
    %681 = vector.broadcast %cst_99 : f32 to vector<2x32xf32>
    %682 = arith.addf %681, %680 : vector<2x32xf32>
    %683 = arith.divf %681, %682 : vector<2x32xf32>
    %684 = vector.extract_strided_slice %667 {offsets = [0, 64], sizes = [2, 32], strides = [1, 1]} : vector<2x96xf32> to vector<2x32xf32>
    %685 = vector.extract_strided_slice %664 {offsets = [0, 64], sizes = [2, 32], strides = [1, 1]} : vector<2x96xf32> to vector<2x32xf32>
    %686 = vector.broadcast %13 : vector<1x32xf32> to vector<2x32xf32>
    %687 = arith.addf %685, %686 : vector<2x32xf32>
    %688 = arith.mulf %675, %687 : vector<2x32xf32>
    %689 = arith.addf %684, %688 : vector<2x32xf32>
    %690 = math.tanh %689 : vector<2x32xf32>
    %cst_100 = arith.constant 1.000000e+00 : f32
    %691 = vector.broadcast %cst_100 : f32 to vector<2x32xf32>
    %692 = arith.subf %691, %683 : vector<2x32xf32>
    %693 = arith.mulf %692, %690 : vector<2x32xf32>
    %694 = arith.mulf %683, %599 : vector<2x32xf32>
    %695 = arith.addf %693, %694 : vector<2x32xf32>
    %696 = tpu.concatenate %631, %663, %695 in 1 : vector<2x32xf32>, vector<2x32xf32>, vector<2x32xf32> -> vector<2x96xf32>
    %cst_101 = arith.constant dense<0.000000e+00> : vector<2x480xf32>
    %697 = tpu.matmul %696, %1, %cst_101 {dimension_numbers = #tpu.dot_dimension_numbers<[1], [0], [0], [1], [0, 0, 1, 1], [], []>} : vector<2x96xf32>, vector<96x480xf32>, vector<2x480xf32> -> vector<2x480xf32>
    %698 = vector.extract_strided_slice %697 {offsets = [0, 96], sizes = [2, 96], strides = [1, 1]} : vector<2x480xf32> to vector<2x96xf32>
    %699 = vector.extract_strided_slice %697 {offsets = [0, 288], sizes = [2, 96], strides = [1, 1]} : vector<2x480xf32> to vector<2x96xf32>
    %700 = vector.broadcast %5 : vector<1x96xf32> to vector<2x96xf32>
    %701 = arith.addf %699, %700 : vector<2x96xf32>
    %702 = vector.extract_strided_slice %701 {offsets = [0, 0], sizes = [2, 32], strides = [1, 1]} : vector<2x96xf32> to vector<2x32xf32>
    %703 = vector.extract_strided_slice %698 {offsets = [0, 0], sizes = [2, 32], strides = [1, 1]} : vector<2x96xf32> to vector<2x32xf32>
    %704 = arith.addf %702, %703 : vector<2x32xf32>
    %705 = arith.negf %704 : vector<2x32xf32>
    %706 = math.exp %705 : vector<2x32xf32>
    %cst_102 = arith.constant 1.000000e+00 : f32
    %707 = vector.broadcast %cst_102 : f32 to vector<2x32xf32>
    %708 = arith.addf %707, %706 : vector<2x32xf32>
    %709 = arith.divf %707, %708 : vector<2x32xf32>
    %710 = vector.extract_strided_slice %701 {offsets = [0, 32], sizes = [2, 32], strides = [1, 1]} : vector<2x96xf32> to vector<2x32xf32>
    %711 = vector.extract_strided_slice %698 {offsets = [0, 32], sizes = [2, 32], strides = [1, 1]} : vector<2x96xf32> to vector<2x32xf32>
    %712 = arith.addf %710, %711 : vector<2x32xf32>
    %713 = arith.negf %712 : vector<2x32xf32>
    %714 = math.exp %713 : vector<2x32xf32>
    %cst_103 = arith.constant 1.000000e+00 : f32
    %715 = vector.broadcast %cst_103 : f32 to vector<2x32xf32>
    %716 = arith.addf %715, %714 : vector<2x32xf32>
    %717 = arith.divf %715, %716 : vector<2x32xf32>
    %718 = vector.extract_strided_slice %701 {offsets = [0, 64], sizes = [2, 32], strides = [1, 1]} : vector<2x96xf32> to vector<2x32xf32>
    %719 = vector.extract_strided_slice %698 {offsets = [0, 64], sizes = [2, 32], strides = [1, 1]} : vector<2x96xf32> to vector<2x32xf32>
    %720 = vector.broadcast %11 : vector<1x32xf32> to vector<2x32xf32>
    %721 = arith.addf %719, %720 : vector<2x32xf32>
    %722 = arith.mulf %709, %721 : vector<2x32xf32>
    %723 = arith.addf %718, %722 : vector<2x32xf32>
    %724 = math.tanh %723 : vector<2x32xf32>
    %cst_104 = arith.constant 1.000000e+00 : f32
    %725 = vector.broadcast %cst_104 : f32 to vector<2x32xf32>
    %726 = arith.subf %725, %717 : vector<2x32xf32>
    %727 = arith.mulf %726, %724 : vector<2x32xf32>
    %728 = arith.mulf %717, %663 : vector<2x32xf32>
    %729 = arith.addf %727, %728 : vector<2x32xf32>
    %730 = vector.extract_strided_slice %697 {offsets = [0, 192], sizes = [2, 96], strides = [1, 1]} : vector<2x480xf32> to vector<2x96xf32>
    %731 = vector.extract_strided_slice %697 {offsets = [0, 384], sizes = [2, 96], strides = [1, 1]} : vector<2x480xf32> to vector<2x96xf32>
    %732 = vector.broadcast %7 : vector<1x96xf32> to vector<2x96xf32>
    %733 = arith.addf %731, %732 : vector<2x96xf32>
    %734 = vector.extract_strided_slice %733 {offsets = [0, 0], sizes = [2, 32], strides = [1, 1]} : vector<2x96xf32> to vector<2x32xf32>
    %735 = vector.extract_strided_slice %730 {offsets = [0, 0], sizes = [2, 32], strides = [1, 1]} : vector<2x96xf32> to vector<2x32xf32>
    %736 = arith.addf %734, %735 : vector<2x32xf32>
    %737 = arith.negf %736 : vector<2x32xf32>
    %738 = math.exp %737 : vector<2x32xf32>
    %cst_105 = arith.constant 1.000000e+00 : f32
    %739 = vector.broadcast %cst_105 : f32 to vector<2x32xf32>
    %740 = arith.addf %739, %738 : vector<2x32xf32>
    %741 = arith.divf %739, %740 : vector<2x32xf32>
    %742 = vector.extract_strided_slice %733 {offsets = [0, 32], sizes = [2, 32], strides = [1, 1]} : vector<2x96xf32> to vector<2x32xf32>
    %743 = vector.extract_strided_slice %730 {offsets = [0, 32], sizes = [2, 32], strides = [1, 1]} : vector<2x96xf32> to vector<2x32xf32>
    %744 = arith.addf %742, %743 : vector<2x32xf32>
    %745 = arith.negf %744 : vector<2x32xf32>
    %746 = math.exp %745 : vector<2x32xf32>
    %cst_106 = arith.constant 1.000000e+00 : f32
    %747 = vector.broadcast %cst_106 : f32 to vector<2x32xf32>
    %748 = arith.addf %747, %746 : vector<2x32xf32>
    %749 = arith.divf %747, %748 : vector<2x32xf32>
    %750 = vector.extract_strided_slice %733 {offsets = [0, 64], sizes = [2, 32], strides = [1, 1]} : vector<2x96xf32> to vector<2x32xf32>
    %751 = vector.extract_strided_slice %730 {offsets = [0, 64], sizes = [2, 32], strides = [1, 1]} : vector<2x96xf32> to vector<2x32xf32>
    %752 = vector.broadcast %13 : vector<1x32xf32> to vector<2x32xf32>
    %753 = arith.addf %751, %752 : vector<2x32xf32>
    %754 = arith.mulf %741, %753 : vector<2x32xf32>
    %755 = arith.addf %750, %754 : vector<2x32xf32>
    %756 = math.tanh %755 : vector<2x32xf32>
    %cst_107 = arith.constant 1.000000e+00 : f32
    %757 = vector.broadcast %cst_107 : f32 to vector<2x32xf32>
    %758 = arith.subf %757, %749 : vector<2x32xf32>
    %759 = arith.mulf %758, %756 : vector<2x32xf32>
    %760 = arith.mulf %749, %695 : vector<2x32xf32>
    %761 = arith.addf %759, %760 : vector<2x32xf32>
    %762 = tpu.concatenate %631, %729, %761 in 1 : vector<2x32xf32>, vector<2x32xf32>, vector<2x32xf32> -> vector<2x96xf32>
    %cst_108 = arith.constant dense<0.000000e+00> : vector<2x480xf32>
    %763 = tpu.matmul %762, %1, %cst_108 {dimension_numbers = #tpu.dot_dimension_numbers<[1], [0], [0], [1], [0, 0, 1, 1], [], []>} : vector<2x96xf32>, vector<96x480xf32>, vector<2x480xf32> -> vector<2x480xf32>
    %764 = vector.extract_strided_slice %763 {offsets = [0, 192], sizes = [2, 96], strides = [1, 1]} : vector<2x480xf32> to vector<2x96xf32>
    %765 = vector.extract_strided_slice %763 {offsets = [0, 384], sizes = [2, 96], strides = [1, 1]} : vector<2x480xf32> to vector<2x96xf32>
    %766 = vector.broadcast %7 : vector<1x96xf32> to vector<2x96xf32>
    %767 = arith.addf %765, %766 : vector<2x96xf32>
    %768 = vector.extract_strided_slice %767 {offsets = [0, 0], sizes = [2, 32], strides = [1, 1]} : vector<2x96xf32> to vector<2x32xf32>
    %769 = vector.extract_strided_slice %764 {offsets = [0, 0], sizes = [2, 32], strides = [1, 1]} : vector<2x96xf32> to vector<2x32xf32>
    %770 = arith.addf %768, %769 : vector<2x32xf32>
    %771 = arith.negf %770 : vector<2x32xf32>
    %772 = math.exp %771 : vector<2x32xf32>
    %cst_109 = arith.constant 1.000000e+00 : f32
    %773 = vector.broadcast %cst_109 : f32 to vector<2x32xf32>
    %774 = arith.addf %773, %772 : vector<2x32xf32>
    %775 = arith.divf %773, %774 : vector<2x32xf32>
    %776 = vector.extract_strided_slice %767 {offsets = [0, 32], sizes = [2, 32], strides = [1, 1]} : vector<2x96xf32> to vector<2x32xf32>
    %777 = vector.extract_strided_slice %764 {offsets = [0, 32], sizes = [2, 32], strides = [1, 1]} : vector<2x96xf32> to vector<2x32xf32>
    %778 = arith.addf %776, %777 : vector<2x32xf32>
    %779 = arith.negf %778 : vector<2x32xf32>
    %780 = math.exp %779 : vector<2x32xf32>
    %cst_110 = arith.constant 1.000000e+00 : f32
    %781 = vector.broadcast %cst_110 : f32 to vector<2x32xf32>
    %782 = arith.addf %781, %780 : vector<2x32xf32>
    %783 = arith.divf %781, %782 : vector<2x32xf32>
    %784 = vector.extract_strided_slice %767 {offsets = [0, 64], sizes = [2, 32], strides = [1, 1]} : vector<2x96xf32> to vector<2x32xf32>
    %785 = vector.extract_strided_slice %764 {offsets = [0, 64], sizes = [2, 32], strides = [1, 1]} : vector<2x96xf32> to vector<2x32xf32>
    %786 = vector.broadcast %13 : vector<1x32xf32> to vector<2x32xf32>
    %787 = arith.addf %785, %786 : vector<2x32xf32>
    %788 = arith.mulf %775, %787 : vector<2x32xf32>
    %789 = arith.addf %784, %788 : vector<2x32xf32>
    %790 = math.tanh %789 : vector<2x32xf32>
    %cst_111 = arith.constant 1.000000e+00 : f32
    %791 = vector.broadcast %cst_111 : f32 to vector<2x32xf32>
    %792 = arith.subf %791, %783 : vector<2x32xf32>
    %793 = arith.mulf %792, %790 : vector<2x32xf32>
    %794 = arith.mulf %783, %761 : vector<2x32xf32>
    %795 = arith.addf %793, %794 : vector<2x32xf32>
    %796 = tpu.concatenate %215, %311, %407, %503, %599, %695, %761, %795 in 1 : vector<2x32xf32>, vector<2x32xf32>, vector<2x32xf32>, vector<2x32xf32>, vector<2x32xf32>, vector<2x32xf32>, vector<2x32xf32>, vector<2x32xf32> -> vector<2x256xf32>
    %c0_112 = arith.constant 0 : index
    %c0_113 = arith.constant 0 : index
    %797 = vector.load %arg6[%c0_112, %c0_113] : memref<2x256xf32, #tpu.memory_space<vmem>>, vector<2x256xf32>
    tpu.vector_store %arg6[%c0_112, %c0_113], %796 {strides = array<i32>} : memref<2x256xf32, #tpu.memory_space<vmem>>, vector<2x256xf32>,
    return
  }
}

</mosaic_0001>

<llo_original>
// kernel: tpu_custom_call.1
$region0: #{tpu_custom_call.1}
  #allocation0 [shape = 'u32[]', space=smem, size = 0x4, offset = 0x4, fixed_abs, tag = 'smem constant byte address 0x4 - core index']
  #allocation1 [shape = 'u32[144,128]{1,0:T(1,128)}', space=vmem, size = 0x12000, scoped, tag = 'internal scratch']
  %s0 = inlined_call_operand.hbm [shape: f32[16,32], index: 0, kind: input, shape index: {}]
  %s1 = inlined_call_operand.hbm [shape: f32[3,2,32], index: 1, kind: input, shape index: {}]
  %s2 = inlined_call_operand.hbm [shape: f32[32,96], index: 2, kind: input, shape index: {}]
  %s3 = inlined_call_operand.hbm [shape: f32[96,480], index: 3, kind: input, shape index: {}]
  %s4 = inlined_call_operand.vmem [shape: f32[3,1,96], index: 4, kind: input, shape index: {}]
  %s5 = inlined_call_operand.vmem [shape: f32[3,1,32], index: 5, kind: input, shape index: {}]
  %s6 = inlined_call_operand.hbm [shape: f32[2,256], index: 6, kind: output, shape index: {}]
  %s7 = sld [smem:[#allocation0]]
  $region50: #{tpu_custom_call.1} parent=0
    _
  %s9 = ssub.s32 1, %s7
  %s10 = scalar_select 0, %s9, %s7
  $region1: #{tpu_custom_call.1} parent=0
    #allocation2 [shape = 'u8[8192]{0}', space=vmem, size = 0x2000, scoped, tag = 'input window, operand 0, single buffered']
    #allocation3 [shape = 's32[1]{0}', space=sflag, size = 0x4, scoped, tag = 'scoped memory for tpu_custom_call.1']
    #allocation4 [shape = 's32[1]{0}', space=sflag, size = 0x4, scoped, tag = 'scoped memory for tpu_custom_call.1']
    #allocation5 [shape = 'u8[3072]{0}', space=vmem, size = 0xc00, scoped, tag = 'input window, operand 1, single buffered']
    #allocation6 [shape = 's32[1]{0}', space=sflag, size = 0x4, scoped, tag = 'scoped memory for tpu_custom_call.1']
    #allocation7 [shape = 'u8[16384]{0}', space=vmem, size = 0x4000, scoped, tag = 'input window, operand 2, single buffered']
    #allocation8 [shape = 'u8[196608]{0}', space=vmem, size = 0x30000, scoped, tag = 'input window, operand 3, single buffered']
    #allocation9 [shape = 's32[1]{0}', space=sflag, size = 0x4, scoped, tag = 'scoped memory for tpu_custom_call.1']
    #allocation10 [shape = 'u8[2048]{0}', space=vmem, size = 0x800, scoped, tag = 'output window, operand 0, single buffered']
    %11 = vsyncpa [#allocation3], 0
    %12 = vsyncpa [#allocation6], 0
    %13 = vsyncpa [#allocation9], 0
    %14 = vsyncpa [#allocation4], 0
    // Predicated region
    $region2: #{tpu_custom_call.1} parent=1 // pred_check
      _
    $region3: #{tpu_custom_call.1} parent=1 // pred_check_branch
      %16 = sbr.rel (0) target = $region5
    $region4: #{tpu_custom_call.1} parent=1 // pred_region
      %s18 = ssub.s32 256, 256
      %19 = vsyncadd [#allocation3], %s18
      %s20 = sshll.u32 [#allocation2], 4
      %s21 = int_to_ptr.vmem [resolvable:$true] %s20
      %26 = dma.hbm_to_vmem [thread:$0]  %s0, 256, %s21, [#allocation3], 128, 128, 8
    $region5: #{tpu_custom_call.1} parent=1 // pred_fallthru
      _
    // Predicated region
    $region6: #{tpu_custom_call.1} parent=1 // pred_check
      _
    $region7: #{tpu_custom_call.1} parent=1 // pred_check_branch
      %28 = sbr.rel (0) target = $region9
    $region8: #{tpu_custom_call.1} parent=1 // pred_region
      %s30 = ssub.s32 96, 96
      %31 = vsyncadd [#allocation6], %s30
      %s32 = sshll.u32 [#allocation5], 4
      %s33 = int_to_ptr.vmem [resolvable:$true] %s32
      %38 = dma.hbm_to_vmem [thread:$0]  %s1, 96, %s33, [#allocation6], 32, 32, 2
    $region9: #{tpu_custom_call.1} parent=1 // pred_fallthru
      _
    // Predicated region
    $region10: #{tpu_custom_call.1} parent=1 // pred_check
      _
    $region11: #{tpu_custom_call.1} parent=1 // pred_check_branch
      %40 = sbr.rel (0) target = $region13
    $region12: #{tpu_custom_call.1} parent=1 // pred_region
      %s42 = ssub.s32 512, 512
      %43 = vsyncadd [#allocation6], %s42
      %s44 = sshll.u32 [#allocation7], 4
      %s45 = int_to_ptr.vmem [resolvable:$true] %s44
      %50 = dma.hbm_to_vmem [thread:$0]  %s2, 512, %s45, [#allocation6], 128, 128, 8
    $region13: #{tpu_custom_call.1} parent=1 // pred_fallthru
      _
    // Predicated region
    $region14: #{tpu_custom_call.1} parent=1 // pred_check
      _
    $region15: #{tpu_custom_call.1} parent=1 // pred_check_branch
      %52 = sbr.rel (0) target = $region17
    $region16: #{tpu_custom_call.1} parent=1 // pred_region
      %s54 = ssub.s32 6144, 6144
      %55 = vsyncadd [#allocation9], %s54
      %s56 = sshll.u32 [#allocation8], 4
      %s57 = int_to_ptr.vmem [resolvable:$true] %s56
      %62 = dma.hbm_to_vmem [thread:$0]  %s3, 6144, %s57, [#allocation9], 512, 512, 32
    $region17: #{tpu_custom_call.1} parent=1 // pred_fallthru
      _
    // Predicated region
    $region18: #{tpu_custom_call.1} parent=1 // pred_check
      _
    $region19: #{tpu_custom_call.1} parent=1 // pred_check_branch
      %64 = sbr.rel (0) target = $region21
    $region20: #{tpu_custom_call.1} parent=1 // pred_region
      _
    $region21: #{tpu_custom_call.1} parent=1 // pred_fallthru
      _
    // Predicated region
    $region22: #{tpu_custom_call.1} parent=1 // pred_check
      _
    $region23: #{tpu_custom_call.1} parent=1 // pred_check_branch
      %66 = sbr.rel (0) target = $region25
    $region24: #{tpu_custom_call.1} parent=1 // pred_region
      _
    $region25: #{tpu_custom_call.1} parent=1 // pred_fallthru
      _
    // Predicated region
    $region26: #{tpu_custom_call.1} parent=1 // pred_check
      _
    $region27: #{tpu_custom_call.1} parent=1 // pred_check_branch
      %68 = sbr.rel (0) target = $region29
    $region28: #{tpu_custom_call.1} parent=1 // pred_region
      %69 = dma.done [#allocation3], 256
    $region29: #{tpu_custom_call.1} parent=1 // pred_fallthru
      _
    // Predicated region
    $region30: #{tpu_custom_call.1} parent=1 // pred_check
      _
    $region31: #{tpu_custom_call.1} parent=1 // pred_check_branch
      %71 = sbr.rel (0) target = $region33
    $region32: #{tpu_custom_call.1} parent=1 // pred_region
      %72 = dma.done [#allocation6], 96
    $region33: #{tpu_custom_call.1} parent=1 // pred_fallthru
      _
    // Predicated region
    $region34: #{tpu_custom_call.1} parent=1 // pred_check
      _
    $region35: #{tpu_custom_call.1} parent=1 // pred_check_branch
      %74 = sbr.rel (0) target = $region37
    $region36: #{tpu_custom_call.1} parent=1 // pred_region
      %75 = dma.done [#allocation6], 512
    $region37: #{tpu_custom_call.1} parent=1 // pred_fallthru
      _
    // Predicated region
    $region38: #{tpu_custom_call.1} parent=1 // pred_check
      _
    $region39: #{tpu_custom_call.1} parent=1 // pred_check_branch
      %77 = sbr.rel (0) target = $region41
    $region40: #{tpu_custom_call.1} parent=1 // pred_region
      %78 = dma.done [#allocation9], 6144
    $region41: #{tpu_custom_call.1} parent=1 // pred_fallthru
      _
    %v79 = vld [vmem:[#allocation7] sm:$0xff]
    %v80 = vld [vmem:[#allocation7 + $0x8] sm:$0xff]
    %v81 = vld [vmem:[#allocation7 + $0x10] sm:$0xff]
    %v82 = vld [vmem:[#allocation7 + $0x18] sm:$0xff]
    %v83 = vld [vmem:[#allocation8] sm:$0xff]
    %v84 = vld [vmem:[#allocation8 + $0x8] sm:$0xff]
    %v85 = vld [vmem:[#allocation8 + $0x10] sm:$0xff]
    %v86 = vld [vmem:[#allocation8 + $0x18] sm:$0xff]
    %v87 = vld [vmem:[#allocation8 + $0x20] sm:$0xff]
    %v88 = vld [vmem:[#allocation8 + $0x28] sm:$0xff]
    %v89 = vld [vmem:[#allocation8 + $0x30] sm:$0xff]
    %v90 = vld [vmem:[#allocation8 + $0x38] sm:$0xff]
    %v91 = vld [vmem:[#allocation8 + $0x40] sm:$0xff]
    %v92 = vld [vmem:[#allocation8 + $0x48] sm:$0xff]
    %v93 = vld [vmem:[#allocation8 + $0x50] sm:$0xff]
    %v94 = vld [vmem:[#allocation8 + $0x58] sm:$0xff]
    %v95 = vld [vmem:[#allocation8 + $0x60] sm:$0xff]
    %v96 = vld [vmem:[#allocation8 + $0x68] sm:$0xff]
    %v97 = vld [vmem:[#allocation8 + $0x70] sm:$0xff]
    %v98 = vld [vmem:[#allocation8 + $0x78] sm:$0xff]
    %v99 = vld [vmem:[#allocation8 + $0x80] sm:$0xff]
    %v100 = vld [vmem:[#allocation8 + $0x88] sm:$0xff]
    %v101 = vld [vmem:[#allocation8 + $0x90] sm:$0xff]
    %v102 = vld [vmem:[#allocation8 + $0x98] sm:$0xff]
    %v103 = vld [vmem:[#allocation8 + $0xa0] sm:$0xff]
    %v104 = vld [vmem:[#allocation8 + $0xa8] sm:$0xff]
    %v105 = vld [vmem:[#allocation8 + $0xb0] sm:$0xff]
    %v106 = vld [vmem:[#allocation8 + $0xb8] sm:$0xff]
    %v107 = vld [vmem:[#allocation8 + $0xc0] sm:$0xff]
    %v108 = vld [vmem:[#allocation8 + $0xc8] sm:$0xff]
    %v109 = vld [vmem:[#allocation8 + $0xd0] sm:$0xff]
    %v110 = vld [vmem:[#allocation8 + $0xd8] sm:$0xff]
    %v111 = vld [vmem:[#allocation8 + $0xe0] sm:$0xff]
    %v112 = vld [vmem:[#allocation8 + $0xe8] sm:$0xff]
    %v113 = vld [vmem:[#allocation8 + $0xf0] sm:$0xff]
    %v114 = vld [vmem:[#allocation8 + $0xf8] sm:$0xff]
    %v115 = vld [vmem:[#allocation8 + $0x100] sm:$0xff]
    %v116 = vld [vmem:[#allocation8 + $0x108] sm:$0xff]
    %v117 = vld [vmem:[#allocation8 + $0x110] sm:$0xff]
    %v118 = vld [vmem:[#allocation8 + $0x118] sm:$0xff]
    %v119 = vld [vmem:[#allocation8 + $0x120] sm:$0xff]
    %v120 = vld [vmem:[#allocation8 + $0x128] sm:$0xff]
    %v121 = vld [vmem:[#allocation8 + $0x130] sm:$0xff]
    %v122 = vld [vmem:[#allocation8 + $0x138] sm:$0xff]
    %v123 = vld [vmem:[#allocation8 + $0x140] sm:$0xff]
    %v124 = vld [vmem:[#allocation8 + $0x148] sm:$0xff]
    %v125 = vld [vmem:[#allocation8 + $0x150] sm:$0xff]
    %v126 = vld [vmem:[#allocation8 + $0x158] sm:$0xff]
    %v127 = vld [vmem:[#allocation8 + $0x160] sm:$0xff]
    %v128 = vld [vmem:[#allocation8 + $0x168] sm:$0xff]
    %v129 = vld [vmem:[#allocation8 + $0x170] sm:$0xff]
    %v130 = vld [vmem:[#allocation8 + $0x178] sm:$0xff]
    %v131 = vld [vmem:[%s4] sm:$0x1]
    %s132 = scalar_lea.vmem %s4, 1
    %v133 = vld [vmem:[%s132] sm:$0x1]
    %s134 = scalar_lea.vmem %s4, 2
    %v135 = vld [vmem:[%s134] sm:$0x1]
    %v136 = vld [vmem:[%s5] sm:$0x1]
    %s137 = scalar_lea.vmem %s5, 1
    %v138 = vld [vmem:[%s137] sm:$0x1]
    %s139 = scalar_lea.vmem %s5, 2
    %v140 = vld [vmem:[%s139] sm:$0x1]
    %v141 = vld [vmem:[#allocation2] sm:$0xff]
    %v142 = vld [vmem:[#allocation2 + $0x8] sm:$0xff]
    %v144 = vlaneseq
    %v145 = vshrl.u32 %v144, 7
    %v146 = vsub.s32 0, %v145
    %v147 = vrot.slane %v131, %v146
    %vm149 = vcmask 261120
    %v151 = vsel %vm149, %v141, 0
    %v154 = vsel %vm149, %v142, 0
    %156 = vmatprep.subr.mxu0 0.0
    %157 = vmatpush1.msra.mxu0 %v79
    %158 = vmatprep.subr.mxu0 0.0
    %159 = vmatpush1.msra.mxu0 %v80
    %160 = vmatprep.subr.mxu0 0.0
    %161 = vmatpush1.msra.mxu0 %v81
    %162 = vmatprep.subr.mxu0 0.0
    %163 = vmatpush1.msra.mxu0 %v82
    %164 = vmatprep.subr.mxu0 0.0
    %165 = vmatpush1.msra.mxu0 0.0
    %166 = vmatprep.subr.mxu0 0.0
    %167 = vmatpush1.msra.mxu0 0.0
    %168 = vmatprep.subr.mxu0 0.0
    %169 = vmatpush1.msra.mxu0 0.0
    %170 = vmatprep.subr.mxu0 0.0
    %171 = vmatpush1.msra.mxu0 0.0
    %172 = vmatprep.subr.mxu0 0.0
    %173 = vmatpush1.msra.mxu0 0.0
    %174 = vmatprep.subr.mxu0 0.0
    %175 = vmatpush1.msra.mxu0 0.0
    %176 = vmatprep.subr.mxu0 0.0
    %177 = vmatpush1.msra.mxu0 0.0
    %178 = vmatprep.subr.mxu0 0.0
    %179 = vmatpush1.msra.mxu0 0.0
    %180 = vmatprep.subr.mxu0 0.0
    %181 = vmatpush1.msra.mxu0 0.0
    %182 = vmatprep.subr.mxu0 0.0
    %183 = vmatpush1.msra.mxu0 0.0
    %184 = vmatprep.subr.mxu0 0.0
    %185 = vmatpush1.msra.mxu0 0.0
    %186 = vmatprep.subr.mxu0 0.0
    %187 = vmatpush1.msra.mxu0 0.0
    %188 = vmatprep.subr.mxu0 0.0
    %189 = vmatpush1.msra.mxu0 0.0
    %190 = vmatprep.subr.mxu0 0.0
    %191 = vmatpush1.msra.mxu0 0.0
    %192 = vmatprep.subr.mxu0 0.0
    %193 = vmatpush1.msra.mxu0 0.0
    %194 = vmatprep.subr.mxu0 0.0
    %195 = vmatpush1.msra.mxu0 0.0
    %196 = vmatprep.subr.mxu0 0.0
    %197 = vmatpush1.msra.mxu0 0.0
    %198 = vmatprep.subr.mxu0 0.0
    %199 = vmatpush1.msra.mxu0 0.0
    %200 = vmatprep.subr.mxu0 0.0
    %201 = vmatpush1.msra.mxu0 0.0
    %202 = vmatprep.subr.mxu0 0.0
    %203 = vmatpush1.msra.mxu0 0.0
    %204 = vmatprep.subr.mxu0 0.0
    %205 = vmatpush1.msra.mxu0 0.0
    %206 = vmatprep.subr.mxu0 0.0
    %207 = vmatpush1.msra.mxu0 0.0
    %208 = vmatprep.subr.mxu0 0.0
    %209 = vmatpush1.msra.mxu0 0.0
    %210 = vmatprep.subr.mxu0 0.0
    %211 = vmatpush1.msra.mxu0 0.0
    %212 = vmatprep.subr.mxu0 0.0
    %213 = vmatpush1.msra.mxu0 0.0
    %214 = vmatprep.subr.mxu0 0.0
    %215 = vmatpush1.msra.mxu0 0.0
    %216 = vmatprep.subr.mxu0 0.0
    %217 = vmatpush1.msra.mxu0 0.0
    %218 = vmatprep.subr.mxu0 0.0
    %219 = vmatpush1.msra.mxu0 0.0
    %220 = vmatprep.mubr.f32.mxu0 0.0
    %221 = vmatmul.mubr.f32.gmra.mrb[0].mxu0 %v151
    %v222 = vpop.f32.mrb[0].mxu0
    %v223 = vadd.f32 %v147, %v222
    %v224 = vpop.f32.mrb[0].mxu0
    %225 = vmatprep.mubr.f32.mxu0 0.0
    %226 = vmatmul.mubr.f32.gmra.mrb[0].mxu0 %v154
    %v227 = vpop.f32.mrb[0].mxu0
    %v228 = vadd.f32 %v147, %v227
    %v229 = vpop.f32.mrb[0].mxu0
    %230 = vdwg.mxu0
    %v231 = vld [vmem:[#allocation5] sm:$0x3]
    %s232 = scalar_lea.vmem [#allocation5], 2
    %v233 = vld [vmem:[%s232] sm:$0x3]
    %s234 = scalar_lea.vmem [#allocation5], 4
    %v235 = vld [vmem:[%s234] sm:$0x3]
    %237 = vrot.lane.b32.xlu0 %v233, 32
    %v238 = vpop.permute.xlu0 %237
    %241 = vrot.lane.b32.xlu0 %v235, 64
    %v242 = vpop.permute.xlu0 %241
    %v244 = vsel %vm149, %v231, %v238
    %vm245 = vcmask 523264
    %v246 = vsel %vm245, %v244, %v242
    %vm247 = vcmask 785408
    %v249 = vsel %vm247, %v246, 0
    %251 = vmatprep.subr.mxu0 %v84
    %252 = vmatpush1.msra.mxu0 %v83
    %253 = vmatprep.subr.mxu0 %v88
    %254 = vmatpush1.msra.mxu0 %v87
    %255 = vmatprep.subr.mxu0 %v92
    %256 = vmatpush1.msra.mxu0 %v91
    %257 = vmatprep.subr.mxu0 %v96
    %258 = vmatpush1.msra.mxu0 %v95
    %259 = vmatprep.subr.mxu0 %v100
    %260 = vmatpush1.msra.mxu0 %v99
    %261 = vmatprep.subr.mxu0 %v104
    %262 = vmatpush1.msra.mxu0 %v103
    %263 = vmatprep.subr.mxu0 %v108
    %264 = vmatpush1.msra.mxu0 %v107
    %265 = vmatprep.subr.mxu0 %v112
    %266 = vmatpush1.msra.mxu0 %v111
    %267 = vmatprep.subr.mxu0 %v116
    %268 = vmatpush1.msra.mxu0 %v115
    %269 = vmatprep.subr.mxu0 %v120
    %270 = vmatpush1.msra.mxu0 %v119
    %271 = vmatprep.subr.mxu0 %v124
    %272 = vmatpush1.msra.mxu0 %v123
    %273 = vmatprep.subr.mxu0 %v128
    %274 = vmatpush1.msra.mxu0 %v127
    %275 = vmatprep.subr.mxu0 0.0
    %276 = vmatpush1.msra.mxu0 0.0
    %277 = vmatprep.subr.mxu0 0.0
    %278 = vmatpush1.msra.mxu0 0.0
    %279 = vmatprep.subr.mxu0 0.0
    %280 = vmatpush1.msra.mxu0 0.0
    %281 = vmatprep.subr.mxu0 0.0
    %282 = vmatpush1.msra.mxu0 0.0
    %283 = vmatprep.subr.mxu0 0.0
    %284 = vmatpush1.msra.mxu0 0.0
    %285 = vmatprep.subr.mxu0 0.0
    %286 = vmatpush1.msra.mxu0 0.0
    %287 = vmatprep.subr.mxu0 0.0
    %288 = vmatpush1.msra.mxu0 0.0
    %289 = vmatprep.subr.mxu0 0.0
    %290 = vmatpush1.msra.mxu0 0.0
    %291 = vmatprep.subr.mxu0 0.0
    %292 = vmatpush1.msra.mxu0 0.0
    %293 = vmatprep.subr.mxu0 0.0
    %294 = vmatpush1.msra.mxu0 0.0
    %295 = vmatprep.subr.mxu0 0.0
    %296 = vmatpush1.msra.mxu0 0.0
    %297 = vmatprep.subr.mxu0 0.0
    %298 = vmatpush1.msra.mxu0 0.0
    %299 = vmatprep.subr.mxu0 0.0
    %300 = vmatpush1.msra.mxu0 0.0
    %301 = vmatprep.subr.mxu0 0.0
    %302 = vmatpush1.msra.mxu0 0.0
    %303 = vmatprep.subr.mxu0 0.0
    %304 = vmatpush1.msra.mxu0 0.0
    %305 = vmatprep.subr.mxu0 0.0
    %306 = vmatpush1.msra.mxu0 0.0
    %307 = vmatprep.subr.mxu0 0.0
    %308 = vmatpush1.msra.mxu0 0.0
    %309 = vmatprep.subr.mxu0 0.0
    %310 = vmatpush1.msra.mxu0 0.0
    %311 = vmatprep.subr.mxu0 0.0
    %312 = vmatpush1.msra.mxu0 0.0
    %313 = vmatprep.subr.mxu0 0.0
    %314 = vmatpush1.msra.mxu0 0.0
    %315 = vmatprep.mubr.f32.mxu0 0.0
    %316 = vmatmul.mubr.f32.gmra.mrb[0].mxu0 %v249
    %v317 = vpop.f32.mrb[0].mxu0
    %v318 = vadd.f32 0.0, %v317
    %v319 = vpop.f32.mrb[0].mxu0
    %320 = vdwg.mxu0
    %v321 = vadd.f32 %v223, %v318
    %v322 = vxor.u32 %v321, 2147483648
    %v323 = vmul.f32 %v322, 1.442695
    %v324 = vpow.pop %v323
    %v325 = vadd.f32 %v324, 1.0
    %v326 = vrcp.pop %v325
    %v327 = vmul.f32 1.0, %v326
    %v329 = vlaneseq
    %v330 = vshrl.u32 %v329, 7
    %v331 = vsub.s32 0, %v330
    %v332 = vrot.slane %v136, %v331
    %333 = vrot.lane.b32.xlu0 %v332, 64
    %v334 = vpop.permute.xlu0 %333
    %v336 = vadd.f32 %v318, %v334
    %338 = vrot.lane.b32.xlu0 %v336, 64
    %v339 = vpop.permute.xlu0 %338
    %v341 = vmul.f32 %v327, %v339
    %343 = vrot.lane.b32.xlu0 %v341, 64
    %v344 = vpop.permute.xlu0 %343
    %v346 = vadd.f32 %v223, %v344
    %v347 = vtanh.pop %v346
    %v348 = vsub.f32 1.0, %v327
    %350 = vrot.lane.b32.xlu0 %v347, 96
    %v351 = vpop.permute.xlu0 %350
    %v353 = vmul.f32 %v348, %v351
    %355 = vrot.lane.b32.xlu0 %v231, 32
    %v356 = vpop.permute.xlu0 %355
    %v358 = vmul.f32 %v327, %v356
    %v359 = vadd.f32 %v353, %v358
    %361 = vrot.lane.b32.xlu0 %v359, 96
    %v362 = vpop.permute.xlu0 %361
    %v364 = vsel %vm149, %v362, %v238
    %v365 = vsel %vm245, %v364, %v242
    %v367 = vsel %vm247, %v365, 0
    %369 = vmatprep.subr.mxu0 %v84
    %370 = vmatpush1.msra.mxu0 %v83
    %371 = vmatprep.subr.mxu0 %v88
    %372 = vmatpush1.msra.mxu0 %v87
    %373 = vmatprep.subr.mxu0 %v92
    %374 = vmatpush1.msra.mxu0 %v91
    %375 = vmatprep.subr.mxu0 %v96
    %376 = vmatpush1.msra.mxu0 %v95
    %377 = vmatprep.subr.mxu0 %v100
    %378 = vmatpush1.msra.mxu0 %v99
    %379 = vmatprep.subr.mxu0 %v104
    %380 = vmatpush1.msra.mxu0 %v103
    %381 = vmatprep.subr.mxu0 %v108
    %382 = vmatpush1.msra.mxu0 %v107
    %383 = vmatprep.subr.mxu0 %v112
    %384 = vmatpush1.msra.mxu0 %v111
    %385 = vmatprep.subr.mxu0 %v116
    %386 = vmatpush1.msra.mxu0 %v115
    %387 = vmatprep.subr.mxu0 %v120
    %388 = vmatpush1.msra.mxu0 %v119
    %389 = vmatprep.subr.mxu0 %v124
    %390 = vmatpush1.msra.mxu0 %v123
    %391 = vmatprep.subr.mxu0 %v128
    %392 = vmatpush1.msra.mxu0 %v127
    %393 = vmatprep.subr.mxu0 0.0
    %394 = vmatpush1.msra.mxu0 0.0
    %395 = vmatprep.subr.mxu0 0.0
    %396 = vmatpush1.msra.mxu0 0.0
    %397 = vmatprep.subr.mxu0 0.0
    %398 = vmatpush1.msra.mxu0 0.0
    %399 = vmatprep.subr.mxu0 0.0
    %400 = vmatpush1.msra.mxu0 0.0
    %401 = vmatprep.subr.mxu0 0.0
    %402 = vmatpush1.msra.mxu0 0.0
    %403 = vmatprep.subr.mxu0 0.0
    %404 = vmatpush1.msra.mxu0 0.0
    %405 = vmatprep.subr.mxu0 0.0
    %406 = vmatpush1.msra.mxu0 0.0
    %407 = vmatprep.subr.mxu0 0.0
    %408 = vmatpush1.msra.mxu0 0.0
    %409 = vmatprep.subr.mxu0 0.0
    %410 = vmatpush1.msra.mxu0 0.0
    %411 = vmatprep.subr.mxu0 0.0
    %412 = vmatpush1.msra.mxu0 0.0
    %413 = vmatprep.subr.mxu0 0.0
    %414 = vmatpush1.msra.mxu0 0.0
    %415 = vmatprep.subr.mxu0 0.0
    %416 = vmatpush1.msra.mxu0 0.0
    %417 = vmatprep.subr.mxu0 0.0
    %418 = vmatpush1.msra.mxu0 0.0
    %419 = vmatprep.subr.mxu0 0.0
    %420 = vmatpush1.msra.mxu0 0.0
    %421 = vmatprep.subr.mxu0 0.0
    %422 = vmatpush1.msra.mxu0 0.0
    %423 = vmatprep.subr.mxu0 0.0
    %424 = vmatpush1.msra.mxu0 0.0
    %425 = vmatprep.subr.mxu0 0.0
    %426 = vmatpush1.msra.mxu0 0.0
    %427 = vmatprep.subr.mxu0 0.0
    %428 = vmatpush1.msra.mxu0 0.0
    %429 = vmatprep.subr.mxu0 0.0
    %430 = vmatpush1.msra.mxu0 0.0
    %431 = vmatprep.subr.mxu0 0.0
    %432 = vmatpush1.msra.mxu0 0.0
    %433 = vmatprep.mubr.f32.mxu0 0.0
    %434 = vmatmul.mubr.f32.gmra.mrb[0].mxu0 %v367
    %v435 = vpop.f32.mrb[0].mxu0
    %v436 = vadd.f32 0.0, %v435
    %v437 = vpop.f32.mrb[0].mxu0
    %v438 = vadd.f32 0.0, %v437
    %439 = vdwg.mxu0
    %440 = vmatprep.subr.mxu0 %v86
    %441 = vmatpush1.msra.mxu0 %v85
    %442 = vmatprep.subr.mxu0 %v90
    %443 = vmatpush1.msra.mxu0 %v89
    %444 = vmatprep.subr.mxu0 %v94
    %445 = vmatpush1.msra.mxu0 %v93
    %446 = vmatprep.subr.mxu0 %v98
    %447 = vmatpush1.msra.mxu0 %v97
    %448 = vmatprep.subr.mxu0 %v102
    %449 = vmatpush1.msra.mxu0 %v101
    %450 = vmatprep.subr.mxu0 %v106
    %451 = vmatpush1.msra.mxu0 %v105
    %452 = vmatprep.subr.mxu0 %v110
    %453 = vmatpush1.msra.mxu0 %v109
    %454 = vmatprep.subr.mxu0 %v114
    %455 = vmatpush1.msra.mxu0 %v113
    %456 = vmatprep.subr.mxu0 %v118
    %457 = vmatpush1.msra.mxu0 %v117
    %458 = vmatprep.subr.mxu0 %v122
    %459 = vmatpush1.msra.mxu0 %v121
    %460 = vmatprep.subr.mxu0 %v126
    %461 = vmatpush1.msra.mxu0 %v125
    %462 = vmatprep.subr.mxu0 %v130
    %463 = vmatpush1.msra.mxu0 %v129
    %464 = vmatprep.subr.mxu0 0.0
    %465 = vmatpush1.msra.mxu0 0.0
    %466 = vmatprep.subr.mxu0 0.0
    %467 = vmatpush1.msra.mxu0 0.0
    %468 = vmatprep.subr.mxu0 0.0
    %469 = vmatpush1.msra.mxu0 0.0
    %470 = vmatprep.subr.mxu0 0.0
    %471 = vmatpush1.msra.mxu0 0.0
    %472 = vmatprep.subr.mxu0 0.0
    %473 = vmatpush1.msra.mxu0 0.0
    %474 = vmatprep.subr.mxu0 0.0
    %475 = vmatpush1.msra.mxu0 0.0
    %476 = vmatprep.subr.mxu0 0.0
    %477 = vmatpush1.msra.mxu0 0.0
    %478 = vmatprep.subr.mxu0 0.0
    %479 = vmatpush1.msra.mxu0 0.0
    %480 = vmatprep.subr.mxu0 0.0
    %481 = vmatpush1.msra.mxu0 0.0
    %482 = vmatprep.subr.mxu0 0.0
    %483 = vmatpush1.msra.mxu0 0.0
    %484 = vmatprep.subr.mxu0 0.0
    %485 = vmatpush1.msra.mxu0 0.0
    %486 = vmatprep.subr.mxu0 0.0
    %487 = vmatpush1.msra.mxu0 0.0
    %488 = vmatprep.subr.mxu0 0.0
    %489 = vmatpush1.msra.mxu0 0.0
    %490 = vmatprep.subr.mxu0 0.0
    %491 = vmatpush1.msra.mxu0 0.0
    %492 = vmatprep.subr.mxu0 0.0
    %493 = vmatpush1.msra.mxu0 0.0
    %494 = vmatprep.subr.mxu0 0.0
    %495 = vmatpush1.msra.mxu0 0.0
    %496 = vmatprep.subr.mxu0 0.0
    %497 = vmatpush1.msra.mxu0 0.0
    %498 = vmatprep.subr.mxu0 0.0
    %499 = vmatpush1.msra.mxu0 0.0
    %500 = vmatprep.subr.mxu0 0.0
    %501 = vmatpush1.msra.mxu0 0.0
    %502 = vmatprep.subr.mxu0 0.0
    %503 = vmatpush1.msra.mxu0 0.0
    %504 = vmatprep.mubr.f32.mxu0 0.0
    %505 = vmatmul.mubr.f32.gmra.mrb[0].mxu0 %v367
    %v506 = vpop.f32.mrb[0].mxu0
    %v507 = vadd.f32 0.0, %v506
    %v508 = vpop.f32.mrb[0].mxu0
    %509 = vdwg.mxu0
    %v511 = vrot.slane %v436, 6
    %v513 = vadd.f32 %v223, %v511
    %v514 = vxor.u32 %v513, 2147483648
    %v515 = vmul.f32 %v514, 1.442695
    %v516 = vpow.pop %v515
    %v517 = vadd.f32 %v516, 1.0
    %v518 = vrcp.pop %v517
    %v519 = vmul.f32 1.0, %v518
    %v520 = vadd.f32 %v436, %v334
    %v522 = vrot.slane %v520, 6
    %523 = vrot.lane.b32.xlu0 %v522, 64
    %v524 = vpop.permute.xlu0 %523
    %v526 = vmul.f32 %v519, %v524
    %528 = vrot.lane.b32.xlu0 %v526, 64
    %v529 = vpop.permute.xlu0 %528
    %v531 = vadd.f32 %v223, %v529
    %v532 = vtanh.pop %v531
    %v533 = vsub.f32 1.0, %v519
    %535 = vrot.lane.b32.xlu0 %v532, 96
    %v536 = vpop.permute.xlu0 %535
    %v538 = vmul.f32 %v533, %v536
    %v539 = vrot.slane %v359, 6
    %v541 = vmul.f32 %v519, %v539
    %v542 = vadd.f32 %v538, %v541
    %v544 = vlaneseq
    %v545 = vshrl.u32 %v544, 7
    %v546 = vsub.s32 0, %v545
    %v547 = vrot.slane %v133, %v546
    %548 = vrot.lane.b32.xlu0 %v547, 32
    %v549 = vpop.permute.xlu0 %548
    %v551 = vadd.f32 %v507, %v549
    %552 = vrot.lane.b32.xlu0 %v436, 64
    %v553 = vpop.permute.xlu0 %552
    %v555 = vadd.f32 %v551, %v553
    %v556 = vxor.u32 %v555, 2147483648
    %v557 = vmul.f32 %v556, 1.442695
    %v558 = vpow.pop %v557
    %v559 = vadd.f32 %v558, 1.0
    %v560 = vrcp.pop %v559
    %v561 = vmul.f32 1.0, %v560
    %563 = vrot.lane.b32.xlu0 %v438, 64
    %v564 = vpop.permute.xlu0 %563
    %v566 = vadd.f32 %v551, %v564
    %v567 = vxor.u32 %v566, 2147483648
    %v568 = vmul.f32 %v567, 1.442695
    %v569 = vpow.pop %v568
    %v570 = vadd.f32 %v569, 1.0
    %v571 = vrcp.pop %v570
    %v572 = vmul.f32 1.0, %v571
    %v574 = vlaneseq
    %v575 = vshrl.u32 %v574, 7
    %v576 = vsub.s32 0, %v575
    %v577 = vrot.slane %v138, %v576
    %578 = vrot.lane.b32.xlu0 %v577, 32
    %v579 = vpop.permute.xlu0 %578
    %v581 = vadd.f32 %v438, %v579
    %v582 = vmul.f32 %v561, %v581
    %584 = vrot.lane.b32.xlu0 %v582, 64
    %v585 = vpop.permute.xlu0 %584
    %v587 = vadd.f32 %v551, %v585
    %v588 = vtanh.pop %v587
    %v589 = vsub.f32 1.0, %v572
    %591 = vrot.lane.b32.xlu0 %v588, 96
    %v592 = vpop.permute.xlu0 %591
    %v594 = vmul.f32 %v589, %v592
    %595 = vrot.lane.b32.xlu0 %v233, 64
    %v596 = vpop.permute.xlu0 %595
    %v598 = vmul.f32 %v572, %v596
    %v599 = vadd.f32 %v594, %v598
    %601 = vrot.lane.b32.xlu0 %v542, 96
    %v602 = vpop.permute.xlu0 %601
    %v605 = vrot.slane %v599, 6
    %606 = vrot.lane.b32.xlu0 %v605, 96
    %v607 = vpop.permute.xlu0 %606
    %v609 = vrot.slane %v235, 6
    %610 = vrot.lane.b32.xlu0 %v609, 64
    %v611 = vpop.permute.xlu0 %610
    %v613 = vsel %vm149, %v602, %v607
    %v614 = vsel %vm245, %v613, %v611
    %v616 = vrot.slane %v614, 2
    %v617 = vsel %vm247, %v616, 0
    %619 = vmatprep.subr.mxu0 %v84
    %620 = vmatpush1.msra.mxu0 %v83
    %621 = vmatprep.subr.mxu0 %v88
    %622 = vmatpush1.msra.mxu0 %v87
    %623 = vmatprep.subr.mxu0 %v92
    %624 = vmatpush1.msra.mxu0 %v91
    %625 = vmatprep.subr.mxu0 %v96
    %626 = vmatpush1.msra.mxu0 %v95
    %627 = vmatprep.subr.mxu0 %v100
    %628 = vmatpush1.msra.mxu0 %v99
    %629 = vmatprep.subr.mxu0 %v104
    %630 = vmatpush1.msra.mxu0 %v103
    %631 = vmatprep.subr.mxu0 %v108
    %632 = vmatpush1.msra.mxu0 %v107
    %633 = vmatprep.subr.mxu0 %v112
    %634 = vmatpush1.msra.mxu0 %v111
    %635 = vmatprep.subr.mxu0 %v116
    %636 = vmatpush1.msra.mxu0 %v115
    %637 = vmatprep.subr.mxu0 %v120
    %638 = vmatpush1.msra.mxu0 %v119
    %639 = vmatprep.subr.mxu0 %v124
    %640 = vmatpush1.msra.mxu0 %v123
    %641 = vmatprep.subr.mxu0 %v128
    %642 = vmatpush1.msra.mxu0 %v127
    %643 = vmatprep.subr.mxu0 0.0
    %644 = vmatpush1.msra.mxu0 0.0
    %645 = vmatprep.subr.mxu0 0.0
    %646 = vmatpush1.msra.mxu0 0.0
    %647 = vmatprep.subr.mxu0 0.0
    %648 = vmatpush1.msra.mxu0 0.0
    %649 = vmatprep.subr.mxu0 0.0
    %650 = vmatpush1.msra.mxu0 0.0
    %651 = vmatprep.subr.mxu0 0.0
    %652 = vmatpush1.msra.mxu0 0.0
    %653 = vmatprep.subr.mxu0 0.0
    %654 = vmatpush1.msra.mxu0 0.0
    %655 = vmatprep.subr.mxu0 0.0
    %656 = vmatpush1.msra.mxu0 0.0
    %657 = vmatprep.subr.mxu0 0.0
    %658 = vmatpush1.msra.mxu0 0.0
    %659 = vmatprep.subr.mxu0 0.0
    %660 = vmatpush1.msra.mxu0 0.0
    %661 = vmatprep.subr.mxu0 0.0
    %662 = vmatpush1.msra.mxu0 0.0
    %663 = vmatprep.subr.mxu0 0.0
    %664 = vmatpush1.msra.mxu0 0.0
    %665 = vmatprep.subr.mxu0 0.0
    %666 = vmatpush1.msra.mxu0 0.0
    %667 = vmatprep.subr.mxu0 0.0
    %668 = vmatpush1.msra.mxu0 0.0
    %669 = vmatprep.subr.mxu0 0.0
    %670 = vmatpush1.msra.mxu0 0.0
    %671 = vmatprep.subr.mxu0 0.0
    %672 = vmatpush1.msra.mxu0 0.0
    %673 = vmatprep.subr.mxu0 0.0
    %674 = vmatpush1.msra.mxu0 0.0
    %675 = vmatprep.subr.mxu0 0.0
    %676 = vmatpush1.msra.mxu0 0.0
    %677 = vmatprep.subr.mxu0 0.0
    %678 = vmatpush1.msra.mxu0 0.0
    %679 = vmatprep.subr.mxu0 0.0
    %680 = vmatpush1.msra.mxu0 0.0
    %681 = vmatprep.subr.mxu0 0.0
    %682 = vmatpush1.msra.mxu0 0.0
    %683 = vmatprep.mubr.f32.mxu0 0.0
    %684 = vmatmul.mubr.f32.gmra.mrb[0].mxu0 %v617
    %v685 = vpop.f32.mrb[0].mxu0
    %v686 = vadd.f32 0.0, %v685
    %v687 = vpop.f32.mrb[0].mxu0
    %v688 = vadd.f32 0.0, %v687
    %689 = vdwg.mxu0
    %690 = vmatprep.subr.mxu0 %v86
    %691 = vmatpush1.msra.mxu0 %v85
    %692 = vmatprep.subr.mxu0 %v90
    %693 = vmatpush1.msra.mxu0 %v89
    %694 = vmatprep.subr.mxu0 %v94
    %695 = vmatpush1.msra.mxu0 %v93
    %696 = vmatprep.subr.mxu0 %v98
    %697 = vmatpush1.msra.mxu0 %v97
    %698 = vmatprep.subr.mxu0 %v102
    %699 = vmatpush1.msra.mxu0 %v101
    %700 = vmatprep.subr.mxu0 %v106
    %701 = vmatpush1.msra.mxu0 %v105
    %702 = vmatprep.subr.mxu0 %v110
    %703 = vmatpush1.msra.mxu0 %v109
    %704 = vmatprep.subr.mxu0 %v114
    %705 = vmatpush1.msra.mxu0 %v113
    %706 = vmatprep.subr.mxu0 %v118
    %707 = vmatpush1.msra.mxu0 %v117
    %708 = vmatprep.subr.mxu0 %v122
    %709 = vmatpush1.msra.mxu0 %v121
    %710 = vmatprep.subr.mxu0 %v126
    %711 = vmatpush1.msra.mxu0 %v125
    %712 = vmatprep.subr.mxu0 %v130
    %713 = vmatpush1.msra.mxu0 %v129
    %714 = vmatprep.subr.mxu0 0.0
    %715 = vmatpush1.msra.mxu0 0.0
    %716 = vmatprep.subr.mxu0 0.0
    %717 = vmatpush1.msra.mxu0 0.0
    %718 = vmatprep.subr.mxu0 0.0
    %719 = vmatpush1.msra.mxu0 0.0
    %720 = vmatprep.subr.mxu0 0.0
    %721 = vmatpush1.msra.mxu0 0.0
    %722 = vmatprep.subr.mxu0 0.0
    %723 = vmatpush1.msra.mxu0 0.0
    %724 = vmatprep.subr.mxu0 0.0
    %725 = vmatpush1.msra.mxu0 0.0
    %726 = vmatprep.subr.mxu0 0.0
    %727 = vmatpush1.msra.mxu0 0.0
    %728 = vmatprep.subr.mxu0 0.0
    %729 = vmatpush1.msra.mxu0 0.0
    %730 = vmatprep.subr.mxu0 0.0
    %731 = vmatpush1.msra.mxu0 0.0
    %732 = vmatprep.subr.mxu0 0.0
    %733 = vmatpush1.msra.mxu0 0.0
    %734 = vmatprep.subr.mxu0 0.0
    %735 = vmatpush1.msra.mxu0 0.0
    %736 = vmatprep.subr.mxu0 0.0
    %737 = vmatpush1.msra.mxu0 0.0
    %738 = vmatprep.subr.mxu0 0.0
    %739 = vmatpush1.msra.mxu0 0.0
    %740 = vmatprep.subr.mxu0 0.0
    %741 = vmatpush1.msra.mxu0 0.0
    %742 = vmatprep.subr.mxu0 0.0
    %743 = vmatpush1.msra.mxu0 0.0
    %744 = vmatprep.subr.mxu0 0.0
    %745 = vmatpush1.msra.mxu0 0.0
    %746 = vmatprep.subr.mxu0 0.0
    %747 = vmatpush1.msra.mxu0 0.0
    %748 = vmatprep.subr.mxu0 0.0
    %749 = vmatpush1.msra.mxu0 0.0
    %750 = vmatprep.subr.mxu0 0.0
    %751 = vmatpush1.msra.mxu0 0.0
    %752 = vmatprep.subr.mxu0 0.0
    %753 = vmatpush1.msra.mxu0 0.0
    %754 = vmatprep.mubr.f32.mxu0 0.0
    %755 = vmatmul.mubr.f32.gmra.mrb[0].mxu0 %v617
    %v756 = vpop.f32.mrb[0].mxu0
    %v757 = vadd.f32 0.0, %v756
    %v758 = vpop.f32.mrb[0].mxu0
    %v759 = vadd.f32 0.0, %v758
    %760 = vdwg.mxu0
    %v762 = vrot.slane %v686, 4
    %v764 = vadd.f32 %v223, %v762
    %v765 = vxor.u32 %v764, 2147483648
    %v766 = vmul.f32 %v765, 1.442695
    %v767 = vpow.pop %v766
    %v768 = vadd.f32 %v767, 1.0
    %v769 = vrcp.pop %v768
    %v770 = vmul.f32 1.0, %v769
    %v771 = vadd.f32 %v686, %v334
    %v773 = vrot.slane %v771, 4
    %774 = vrot.lane.b32.xlu0 %v773, 64
    %v775 = vpop.permute.xlu0 %774
    %v777 = vmul.f32 %v770, %v775
    %779 = vrot.lane.b32.xlu0 %v777, 64
    %v780 = vpop.permute.xlu0 %779
    %v782 = vadd.f32 %v223, %v780
    %v783 = vtanh.pop %v782
    %v784 = vsub.f32 1.0, %v770
    %786 = vrot.lane.b32.xlu0 %v783, 96
    %v787 = vpop.permute.xlu0 %786
    %v789 = vmul.f32 %v784, %v787
    %v790 = vrot.slane %v542, 6
    %v792 = vmul.f32 %v770, %v790
    %v793 = vadd.f32 %v789, %v792
    %v794 = vadd.f32 %v757, %v549
    %795 = vrot.lane.b32.xlu0 %v686, 64
    %v796 = vpop.permute.xlu0 %795
    %v798 = vadd.f32 %v794, %v796
    %v799 = vxor.u32 %v798, 2147483648
    %v800 = vmul.f32 %v799, 1.442695
    %v801 = vpow.pop %v800
    %v802 = vadd.f32 %v801, 1.0
    %v803 = vrcp.pop %v802
    %v804 = vmul.f32 1.0, %v803
    %806 = vrot.lane.b32.xlu0 %v688, 64
    %v807 = vpop.permute.xlu0 %806
    %v809 = vadd.f32 %v794, %v807
    %v810 = vxor.u32 %v809, 2147483648
    %v811 = vmul.f32 %v810, 1.442695
    %v812 = vpow.pop %v811
    %v813 = vadd.f32 %v812, 1.0
    %v814 = vrcp.pop %v813
    %v815 = vmul.f32 1.0, %v814
    %v816 = vadd.f32 %v688, %v579
    %v817 = vmul.f32 %v804, %v816
    %819 = vrot.lane.b32.xlu0 %v817, 64
    %v820 = vpop.permute.xlu0 %819
    %v822 = vadd.f32 %v794, %v820
    %v823 = vtanh.pop %v822
    %v824 = vsub.f32 1.0, %v815
    %826 = vrot.lane.b32.xlu0 %v823, 96
    %v827 = vpop.permute.xlu0 %826
    %v829 = vmul.f32 %v824, %v827
    %v830 = vmul.f32 %v815, %v599
    %v831 = vadd.f32 %v829, %v830
    %v833 = vlaneseq
    %v834 = vshrl.u32 %v833, 7
    %v835 = vsub.s32 0, %v834
    %v836 = vrot.slane %v135, %v835
    %v838 = vadd.f32 %v759, %v836
    %v839 = vadd.f32 %v838, %v807
    %v840 = vxor.u32 %v839, 2147483648
    %v841 = vmul.f32 %v840, 1.442695
    %v842 = vpow.pop %v841
    %v843 = vadd.f32 %v842, 1.0
    %v844 = vrcp.pop %v843
    %v845 = vmul.f32 1.0, %v844
    %v847 = vlaneseq
    %v848 = vshrl.u32 %v847, 7
    %v849 = vsub.s32 0, %v848
    %v850 = vrot.slane %v140, %v849
    %v852 = vadd.f32 %v757, %v850
    %v853 = vmul.f32 %v845, %v852
    %855 = vrot.lane.b32.xlu0 %v853, 64
    %v856 = vpop.permute.xlu0 %855
    %v858 = vadd.f32 %v838, %v856
    %v859 = vtanh.pop %v858
    %v860 = vsub.f32 1.0, %v845
    %862 = vrot.lane.b32.xlu0 %v859, 96
    %v863 = vpop.permute.xlu0 %862
    %v865 = vmul.f32 %v860, %v863
    %866 = vrot.lane.b32.xlu0 %v235, 32
    %v867 = vpop.permute.xlu0 %866
    %v869 = vmul.f32 %v845, %v867
    %v870 = vadd.f32 %v865, %v869
    %872 = vrot.lane.b32.xlu0 %v793, 96
    %v873 = vpop.permute.xlu0 %872
    %v876 = vrot.slane %v831, 4
    %877 = vrot.lane.b32.xlu0 %v876, 96
    %v878 = vpop.permute.xlu0 %877
    %v881 = vrot.slane %v870, 4
    %882 = vrot.lane.b32.xlu0 %v881, 32
    %v883 = vpop.permute.xlu0 %882
    %v885 = vsel %vm149, %v873, %v878
    %v886 = vsel %vm245, %v885, %v883
    %v888 = vrot.slane %v886, 4
    %v889 = vsel %vm247, %v888, 0
    %891 = vmatprep.subr.mxu0 %v84
    %892 = vmatpush1.msra.mxu0 %v83
    %893 = vmatprep.subr.mxu0 %v88
    %894 = vmatpush1.msra.mxu0 %v87
    %895 = vmatprep.subr.mxu0 %v92
    %896 = vmatpush1.msra.mxu0 %v91
    %897 = vmatprep.subr.mxu0 %v96
    %898 = vmatpush1.msra.mxu0 %v95
    %899 = vmatprep.subr.mxu0 %v100
    %900 = vmatpush1.msra.mxu0 %v99
    %901 = vmatprep.subr.mxu0 %v104
    %902 = vmatpush1.msra.mxu0 %v103
    %903 = vmatprep.subr.mxu0 %v108
    %904 = vmatpush1.msra.mxu0 %v107
    %905 = vmatprep.subr.mxu0 %v112
    %906 = vmatpush1.msra.mxu0 %v111
    %907 = vmatprep.subr.mxu0 %v116
    %908 = vmatpush1.msra.mxu0 %v115
    %909 = vmatprep.subr.mxu0 %v120
    %910 = vmatpush1.msra.mxu0 %v119
    %911 = vmatprep.subr.mxu0 %v124
    %912 = vmatpush1.msra.mxu0 %v123
    %913 = vmatprep.subr.mxu0 %v128
    %914 = vmatpush1.msra.mxu0 %v127
    %915 = vmatprep.subr.mxu0 0.0
    %916 = vmatpush1.msra.mxu0 0.0
    %917 = vmatprep.subr.mxu0 0.0
    %918 = vmatpush1.msra.mxu0 0.0
    %919 = vmatprep.subr.mxu0 0.0
    %920 = vmatpush1.msra.mxu0 0.0
    %921 = vmatprep.subr.mxu0 0.0
    %922 = vmatpush1.msra.mxu0 0.0
    %923 = vmatprep.subr.mxu0 0.0
    %924 = vmatpush1.msra.mxu0 0.0
    %925 = vmatprep.subr.mxu0 0.0
    %926 = vmatpush1.msra.mxu0 0.0
    %927 = vmatprep.subr.mxu0 0.0
    %928 = vmatpush1.msra.mxu0 0.0
    %929 = vmatprep.subr.mxu0 0.0
    %930 = vmatpush1.msra.mxu0 0.0
    %931 = vmatprep.subr.mxu0 0.0
    %932 = vmatpush1.msra.mxu0 0.0
    %933 = vmatprep.subr.mxu0 0.0
    %934 = vmatpush1.msra.mxu0 0.0
    %935 = vmatprep.subr.mxu0 0.0
    %936 = vmatpush1.msra.mxu0 0.0
    %937 = vmatprep.subr.mxu0 0.0
    %938 = vmatpush1.msra.mxu0 0.0
    %939 = vmatprep.subr.mxu0 0.0
    %940 = vmatpush1.msra.mxu0 0.0
    %941 = vmatprep.subr.mxu0 0.0
    %942 = vmatpush1.msra.mxu0 0.0
    %943 = vmatprep.subr.mxu0 0.0
    %944 = vmatpush1.msra.mxu0 0.0
    %945 = vmatprep.subr.mxu0 0.0
    %946 = vmatpush1.msra.mxu0 0.0
    %947 = vmatprep.subr.mxu0 0.0
    %948 = vmatpush1.msra.mxu0 0.0
    %949 = vmatprep.subr.mxu0 0.0
    %950 = vmatpush1.msra.mxu0 0.0
    %951 = vmatprep.subr.mxu0 0.0
    %952 = vmatpush1.msra.mxu0 0.0
    %953 = vmatprep.subr.mxu0 0.0
    %954 = vmatpush1.msra.mxu0 0.0
    %955 = vmatprep.mubr.f32.mxu0 0.0
    %956 = vmatmul.mubr.f32.gmra.mrb[0].mxu0 %v889
    %v957 = vpop.f32.mrb[0].mxu0
    %v958 = vadd.f32 0.0, %v957
    %v959 = vpop.f32.mrb[0].mxu0
    %v960 = vadd.f32 0.0, %v959
    %961 = vdwg.mxu0
    %962 = vmatprep.subr.mxu0 %v86
    %963 = vmatpush1.msra.mxu0 %v85
    %964 = vmatprep.subr.mxu0 %v90
    %965 = vmatpush1.msra.mxu0 %v89
    %966 = vmatprep.subr.mxu0 %v94
    %967 = vmatpush1.msra.mxu0 %v93
    %968 = vmatprep.subr.mxu0 %v98
    %969 = vmatpush1.msra.mxu0 %v97
    %970 = vmatprep.subr.mxu0 %v102
    %971 = vmatpush1.msra.mxu0 %v101
    %972 = vmatprep.subr.mxu0 %v106
    %973 = vmatpush1.msra.mxu0 %v105
    %974 = vmatprep.subr.mxu0 %v110
    %975 = vmatpush1.msra.mxu0 %v109
    %976 = vmatprep.subr.mxu0 %v114
    %977 = vmatpush1.msra.mxu0 %v113
    %978 = vmatprep.subr.mxu0 %v118
    %979 = vmatpush1.msra.mxu0 %v117
    %980 = vmatprep.subr.mxu0 %v122
    %981 = vmatpush1.msra.mxu0 %v121
    %982 = vmatprep.subr.mxu0 %v126
    %983 = vmatpush1.msra.mxu0 %v125
    %984 = vmatprep.subr.mxu0 %v130
    %985 = vmatpush1.msra.mxu0 %v129
    %986 = vmatprep.subr.mxu0 0.0
    %987 = vmatpush1.msra.mxu0 0.0
    %988 = vmatprep.subr.mxu0 0.0
    %989 = vmatpush1.msra.mxu0 0.0
    %990 = vmatprep.subr.mxu0 0.0
    %991 = vmatpush1.msra.mxu0 0.0
    %992 = vmatprep.subr.mxu0 0.0
    %993 = vmatpush1.msra.mxu0 0.0
    %994 = vmatprep.subr.mxu0 0.0
    %995 = vmatpush1.msra.mxu0 0.0
    %996 = vmatprep.subr.mxu0 0.0
    %997 = vmatpush1.msra.mxu0 0.0
    %998 = vmatprep.subr.mxu0 0.0
    %999 = vmatpush1.msra.mxu0 0.0
    %1000 = vmatprep.subr.mxu0 0.0
    %1001 = vmatpush1.msra.mxu0 0.0
    %1002 = vmatprep.subr.mxu0 0.0
    %1003 = vmatpush1.msra.mxu0 0.0
    %1004 = vmatprep.subr.mxu0 0.0
    %1005 = vmatpush1.msra.mxu0 0.0
    %1006 = vmatprep.subr.mxu0 0.0
    %1007 = vmatpush1.msra.mxu0 0.0
    %1008 = vmatprep.subr.mxu0 0.0
    %1009 = vmatpush1.msra.mxu0 0.0
    %1010 = vmatprep.subr.mxu0 0.0
    %1011 = vmatpush1.msra.mxu0 0.0
    %1012 = vmatprep.subr.mxu0 0.0
    %1013 = vmatpush1.msra.mxu0 0.0
    %1014 = vmatprep.subr.mxu0 0.0
    %1015 = vmatpush1.msra.mxu0 0.0
    %1016 = vmatprep.subr.mxu0 0.0
    %1017 = vmatpush1.msra.mxu0 0.0
    %1018 = vmatprep.subr.mxu0 0.0
    %1019 = vmatpush1.msra.mxu0 0.0
    %1020 = vmatprep.subr.mxu0 0.0
    %1021 = vmatpush1.msra.mxu0 0.0
    %1022 = vmatprep.subr.mxu0 0.0
    %1023 = vmatpush1.msra.mxu0 0.0
    %1024 = vmatprep.subr.mxu0 0.0
    %1025 = vmatpush1.msra.mxu0 0.0
    %1026 = vmatprep.mubr.f32.mxu0 0.0
    %1027 = vmatmul.mubr.f32.gmra.mrb[0].mxu0 %v889
    %v1028 = vpop.f32.mrb[0].mxu0
    %v1029 = vadd.f32 0.0, %v1028
    %v1030 = vpop.f32.mrb[0].mxu0
    %v1031 = vadd.f32 0.0, %v1030
    %1032 = vdwg.mxu0
    %v1034 = vrot.slane %v958, 2
    %v1036 = vadd.f32 %v223, %v1034
    %v1037 = vxor.u32 %v1036, 2147483648
    %v1038 = vmul.f32 %v1037, 1.442695
    %v1039 = vpow.pop %v1038
    %v1040 = vadd.f32 %v1039, 1.0
    %v1041 = vrcp.pop %v1040
    %v1042 = vmul.f32 1.0, %v1041
    %v1043 = vadd.f32 %v958, %v334
    %v1045 = vrot.slane %v1043, 2
    %1046 = vrot.lane.b32.xlu0 %v1045, 64
    %v1047 = vpop.permute.xlu0 %1046
    %v1049 = vmul.f32 %v1042, %v1047
    %1051 = vrot.lane.b32.xlu0 %v1049, 64
    %v1052 = vpop.permute.xlu0 %1051
    %v1054 = vadd.f32 %v223, %v1052
    %v1055 = vtanh.pop %v1054
    %v1056 = vsub.f32 1.0, %v1042
    %1058 = vrot.lane.b32.xlu0 %v1055, 96
    %v1059 = vpop.permute.xlu0 %1058
    %v1061 = vmul.f32 %v1056, %v1059
    %v1062 = vrot.slane %v793, 6
    %v1064 = vmul.f32 %v1042, %v1062
    %v1065 = vadd.f32 %v1061, %v1064
    %v1066 = vadd.f32 %v1029, %v549
    %1067 = vrot.lane.b32.xlu0 %v958, 64
    %v1068 = vpop.permute.xlu0 %1067
    %v1070 = vadd.f32 %v1066, %v1068
    %v1071 = vxor.u32 %v1070, 2147483648
    %v1072 = vmul.f32 %v1071, 1.442695
    %v1073 = vpow.pop %v1072
    %v1074 = vadd.f32 %v1073, 1.0
    %v1075 = vrcp.pop %v1074
    %v1076 = vmul.f32 1.0, %v1075
    %1078 = vrot.lane.b32.xlu0 %v960, 64
    %v1079 = vpop.permute.xlu0 %1078
    %v1081 = vadd.f32 %v1066, %v1079
    %v1082 = vxor.u32 %v1081, 2147483648
    %v1083 = vmul.f32 %v1082, 1.442695
    %v1084 = vpow.pop %v1083
    %v1085 = vadd.f32 %v1084, 1.0
    %v1086 = vrcp.pop %v1085
    %v1087 = vmul.f32 1.0, %v1086
    %v1088 = vadd.f32 %v960, %v579
    %v1089 = vmul.f32 %v1076, %v1088
    %1091 = vrot.lane.b32.xlu0 %v1089, 64
    %v1092 = vpop.permute.xlu0 %1091
    %v1094 = vadd.f32 %v1066, %v1092
    %v1095 = vtanh.pop %v1094
    %v1096 = vsub.f32 1.0, %v1087
    %1098 = vrot.lane.b32.xlu0 %v1095, 96
    %v1099 = vpop.permute.xlu0 %1098
    %v1101 = vmul.f32 %v1096, %v1099
    %v1102 = vmul.f32 %v1087, %v831
    %v1103 = vadd.f32 %v1101, %v1102
    %v1104 = vadd.f32 %v1031, %v836
    %v1105 = vadd.f32 %v1104, %v1079
    %v1106 = vxor.u32 %v1105, 2147483648
    %v1107 = vmul.f32 %v1106, 1.442695
    %v1108 = vpow.pop %v1107
    %v1109 = vadd.f32 %v1108, 1.0
    %v1110 = vrcp.pop %v1109
    %v1111 = vmul.f32 1.0, %v1110
    %v1112 = vadd.f32 %v1029, %v850
    %v1113 = vmul.f32 %v1111, %v1112
    %1115 = vrot.lane.b32.xlu0 %v1113, 64
    %v1116 = vpop.permute.xlu0 %1115
    %v1118 = vadd.f32 %v1104, %v1116
    %v1119 = vtanh.pop %v1118
    %v1120 = vsub.f32 1.0, %v1111
    %1122 = vrot.lane.b32.xlu0 %v1119, 96
    %v1123 = vpop.permute.xlu0 %1122
    %v1125 = vmul.f32 %v1120, %v1123
    %v1126 = vmul.f32 %v1111, %v870
    %v1127 = vadd.f32 %v1125, %v1126
    %1129 = vrot.lane.b32.xlu0 %v1065, 96
    %v1130 = vpop.permute.xlu0 %1129
    %v1133 = vrot.slane %v1103, 2
    %1134 = vrot.lane.b32.xlu0 %v1133, 96
    %v1135 = vpop.permute.xlu0 %1134
    %v1138 = vrot.slane %v1127, 2
    %1139 = vrot.lane.b32.xlu0 %v1138, 32
    %v1140 = vpop.permute.xlu0 %1139
    %v1142 = vsel %vm149, %v1130, %v1135
    %v1143 = vsel %vm245, %v1142, %v1140
    %v1145 = vrot.slane %v1143, 6
    %v1146 = vsel %vm247, %v1145, 0
    %1148 = vmatprep.subr.mxu0 %v84
    %1149 = vmatpush1.msra.mxu0 %v83
    %1150 = vmatprep.subr.mxu0 %v88
    %1151 = vmatpush1.msra.mxu0 %v87
    %1152 = vmatprep.subr.mxu0 %v92
    %1153 = vmatpush1.msra.mxu0 %v91
    %1154 = vmatprep.subr.mxu0 %v96
    %1155 = vmatpush1.msra.mxu0 %v95
    %1156 = vmatprep.subr.mxu0 %v100
    %1157 = vmatpush1.msra.mxu0 %v99
    %1158 = vmatprep.subr.mxu0 %v104
    %1159 = vmatpush1.msra.mxu0 %v103
    %1160 = vmatprep.subr.mxu0 %v108
    %1161 = vmatpush1.msra.mxu0 %v107
    %1162 = vmatprep.subr.mxu0 %v112
    %1163 = vmatpush1.msra.mxu0 %v111
    %1164 = vmatprep.subr.mxu0 %v116
    %1165 = vmatpush1.msra.mxu0 %v115
    %1166 = vmatprep.subr.mxu0 %v120
    %1167 = vmatpush1.msra.mxu0 %v119
    %1168 = vmatprep.subr.mxu0 %v124
    %1169 = vmatpush1.msra.mxu0 %v123
    %1170 = vmatprep.subr.mxu0 %v128
    %1171 = vmatpush1.msra.mxu0 %v127
    %1172 = vmatprep.subr.mxu0 0.0
    %1173 = vmatpush1.msra.mxu0 0.0
    %1174 = vmatprep.subr.mxu0 0.0
    %1175 = vmatpush1.msra.mxu0 0.0
    %1176 = vmatprep.subr.mxu0 0.0
    %1177 = vmatpush1.msra.mxu0 0.0
    %1178 = vmatprep.subr.mxu0 0.0
    %1179 = vmatpush1.msra.mxu0 0.0
    %1180 = vmatprep.subr.mxu0 0.0
    %1181 = vmatpush1.msra.mxu0 0.0
    %1182 = vmatprep.subr.mxu0 0.0
    %1183 = vmatpush1.msra.mxu0 0.0
    %1184 = vmatprep.subr.mxu0 0.0
    %1185 = vmatpush1.msra.mxu0 0.0
    %1186 = vmatprep.subr.mxu0 0.0
    %1187 = vmatpush1.msra.mxu0 0.0
    %1188 = vmatprep.subr.mxu0 0.0
    %1189 = vmatpush1.msra.mxu0 0.0
    %1190 = vmatprep.subr.mxu0 0.0
    %1191 = vmatpush1.msra.mxu0 0.0
    %1192 = vmatprep.subr.mxu0 0.0
    %1193 = vmatpush1.msra.mxu0 0.0
    %1194 = vmatprep.subr.mxu0 0.0
    %1195 = vmatpush1.msra.mxu0 0.0
    %1196 = vmatprep.subr.mxu0 0.0
    %1197 = vmatpush1.msra.mxu0 0.0
    %1198 = vmatprep.subr.mxu0 0.0
    %1199 = vmatpush1.msra.mxu0 0.0
    %1200 = vmatprep.subr.mxu0 0.0
    %1201 = vmatpush1.msra.mxu0 0.0
    %1202 = vmatprep.subr.mxu0 0.0
    %1203 = vmatpush1.msra.mxu0 0.0
    %1204 = vmatprep.subr.mxu0 0.0
    %1205 = vmatpush1.msra.mxu0 0.0
    %1206 = vmatprep.subr.mxu0 0.0
    %1207 = vmatpush1.msra.mxu0 0.0
    %1208 = vmatprep.subr.mxu0 0.0
    %1209 = vmatpush1.msra.mxu0 0.0
    %1210 = vmatprep.subr.mxu0 0.0
    %1211 = vmatpush1.msra.mxu0 0.0
    %1212 = vmatprep.mubr.f32.mxu0 0.0
    %1213 = vmatmul.mubr.f32.gmra.mrb[0].mxu0 %v1146
    %v1214 = vpop.f32.mrb[0].mxu0
    %v1215 = vadd.f32 0.0, %v1214
    %v1216 = vpop.f32.mrb[0].mxu0
    %v1217 = vadd.f32 0.0, %v1216
    %1218 = vdwg.mxu0
    %1219 = vmatprep.subr.mxu0 %v86
    %1220 = vmatpush1.msra.mxu0 %v85
    %1221 = vmatprep.subr.mxu0 %v90
    %1222 = vmatpush1.msra.mxu0 %v89
    %1223 = vmatprep.subr.mxu0 %v94
    %1224 = vmatpush1.msra.mxu0 %v93
    %1225 = vmatprep.subr.mxu0 %v98
    %1226 = vmatpush1.msra.mxu0 %v97
    %1227 = vmatprep.subr.mxu0 %v102
    %1228 = vmatpush1.msra.mxu0 %v101
    %1229 = vmatprep.subr.mxu0 %v106
    %1230 = vmatpush1.msra.mxu0 %v105
    %1231 = vmatprep.subr.mxu0 %v110
    %1232 = vmatpush1.msra.mxu0 %v109
    %1233 = vmatprep.subr.mxu0 %v114
    %1234 = vmatpush1.msra.mxu0 %v113
    %1235 = vmatprep.subr.mxu0 %v118
    %1236 = vmatpush1.msra.mxu0 %v117
    %1237 = vmatprep.subr.mxu0 %v122
    %1238 = vmatpush1.msra.mxu0 %v121
    %1239 = vmatprep.subr.mxu0 %v126
    %1240 = vmatpush1.msra.mxu0 %v125
    %1241 = vmatprep.subr.mxu0 %v130
    %1242 = vmatpush1.msra.mxu0 %v129
    %1243 = vmatprep.subr.mxu0 0.0
    %1244 = vmatpush1.msra.mxu0 0.0
    %1245 = vmatprep.subr.mxu0 0.0
    %1246 = vmatpush1.msra.mxu0 0.0
    %1247 = vmatprep.subr.mxu0 0.0
    %1248 = vmatpush1.msra.mxu0 0.0
    %1249 = vmatprep.subr.mxu0 0.0
    %1250 = vmatpush1.msra.mxu0 0.0
    %1251 = vmatprep.subr.mxu0 0.0
    %1252 = vmatpush1.msra.mxu0 0.0
    %1253 = vmatprep.subr.mxu0 0.0
    %1254 = vmatpush1.msra.mxu0 0.0
    %1255 = vmatprep.subr.mxu0 0.0
    %1256 = vmatpush1.msra.mxu0 0.0
    %1257 = vmatprep.subr.mxu0 0.0
    %1258 = vmatpush1.msra.mxu0 0.0
    %1259 = vmatprep.subr.mxu0 0.0
    %1260 = vmatpush1.msra.mxu0 0.0
    %1261 = vmatprep.subr.mxu0 0.0
    %1262 = vmatpush1.msra.mxu0 0.0
    %1263 = vmatprep.subr.mxu0 0.0
    %1264 = vmatpush1.msra.mxu0 0.0
    %1265 = vmatprep.subr.mxu0 0.0
    %1266 = vmatpush1.msra.mxu0 0.0
    %1267 = vmatprep.subr.mxu0 0.0
    %1268 = vmatpush1.msra.mxu0 0.0
    %1269 = vmatprep.subr.mxu0 0.0
    %1270 = vmatpush1.msra.mxu0 0.0
    %1271 = vmatprep.subr.mxu0 0.0
    %1272 = vmatpush1.msra.mxu0 0.0
    %1273 = vmatprep.subr.mxu0 0.0
    %1274 = vmatpush1.msra.mxu0 0.0
    %1275 = vmatprep.subr.mxu0 0.0
    %1276 = vmatpush1.msra.mxu0 0.0
    %1277 = vmatprep.subr.mxu0 0.0
    %1278 = vmatpush1.msra.mxu0 0.0
    %1279 = vmatprep.subr.mxu0 0.0
    %1280 = vmatpush1.msra.mxu0 0.0
    %1281 = vmatprep.subr.mxu0 0.0
    %1282 = vmatpush1.msra.mxu0 0.0
    %1283 = vmatprep.mubr.f32.mxu0 0.0
    %1284 = vmatmul.mubr.f32.gmra.mrb[0].mxu0 %v1146
    %v1285 = vpop.f32.mrb[0].mxu0
    %v1286 = vadd.f32 0.0, %v1285
    %v1287 = vpop.f32.mrb[0].mxu0
    %v1288 = vadd.f32 0.0, %v1287
    %1289 = vdwg.mxu0
    %v1290 = vadd.f32 %v228, %v1215
    %v1291 = vxor.u32 %v1290, 2147483648
    %v1292 = vmul.f32 %v1291, 1.442695
    %v1293 = vpow.pop %v1292
    %v1294 = vadd.f32 %v1293, 1.0
    %v1295 = vrcp.pop %v1294
    %v1296 = vmul.f32 1.0, %v1295
    %v1297 = vadd.f32 %v1215, %v334
    %1299 = vrot.lane.b32.xlu0 %v1297, 64
    %v1300 = vpop.permute.xlu0 %1299
    %v1302 = vmul.f32 %v1296, %v1300
    %1304 = vrot.lane.b32.xlu0 %v1302, 64
    %v1305 = vpop.permute.xlu0 %1304
    %v1307 = vadd.f32 %v228, %v1305
    %v1308 = vtanh.pop %v1307
    %v1309 = vsub.f32 1.0, %v1296
    %1311 = vrot.lane.b32.xlu0 %v1308, 96
    %v1312 = vpop.permute.xlu0 %1311
    %v1314 = vmul.f32 %v1309, %v1312
    %v1315 = vrot.slane %v1065, 6
    %v1317 = vmul.f32 %v1296, %v1315
    %v1318 = vadd.f32 %v1314, %v1317
    %v1319 = vadd.f32 %v1286, %v549
    %1321 = vrot.lane.b32.xlu0 %v1215, 64
    %v1322 = vpop.permute.xlu0 %1321
    %v1324 = vadd.f32 %v1319, %v1322
    %v1325 = vxor.u32 %v1324, 2147483648
    %v1326 = vmul.f32 %v1325, 1.442695
    %v1327 = vpow.pop %v1326
    %v1328 = vadd.f32 %v1327, 1.0
    %v1329 = vrcp.pop %v1328
    %v1330 = vmul.f32 1.0, %v1329
    %1332 = vrot.lane.b32.xlu0 %v1217, 64
    %v1333 = vpop.permute.xlu0 %1332
    %v1335 = vadd.f32 %v1319, %v1333
    %v1336 = vxor.u32 %v1335, 2147483648
    %v1337 = vmul.f32 %v1336, 1.442695
    %v1338 = vpow.pop %v1337
    %v1339 = vadd.f32 %v1338, 1.0
    %v1340 = vrcp.pop %v1339
    %v1341 = vmul.f32 1.0, %v1340
    %v1342 = vadd.f32 %v1217, %v579
    %v1343 = vmul.f32 %v1330, %v1342
    %1345 = vrot.lane.b32.xlu0 %v1343, 64
    %v1346 = vpop.permute.xlu0 %1345
    %v1348 = vadd.f32 %v1319, %v1346
    %v1349 = vtanh.pop %v1348
    %v1350 = vsub.f32 1.0, %v1341
    %1352 = vrot.lane.b32.xlu0 %v1349, 96
    %v1353 = vpop.permute.xlu0 %1352
    %v1355 = vmul.f32 %v1350, %v1353
    %v1356 = vmul.f32 %v1341, %v1103
    %v1357 = vadd.f32 %v1355, %v1356
    %v1358 = vadd.f32 %v1288, %v836
    %v1359 = vadd.f32 %v1358, %v1333
    %v1360 = vxor.u32 %v1359, 2147483648
    %v1361 = vmul.f32 %v1360, 1.442695
    %v1362 = vpow.pop %v1361
    %v1363 = vadd.f32 %v1362, 1.0
    %v1364 = vrcp.pop %v1363
    %v1365 = vmul.f32 1.0, %v1364
    %v1366 = vadd.f32 %v1286, %v850
    %v1367 = vmul.f32 %v1365, %v1366
    %1369 = vrot.lane.b32.xlu0 %v1367, 64
    %v1370 = vpop.permute.xlu0 %1369
    %v1372 = vadd.f32 %v1358, %v1370
    %v1373 = vtanh.pop %v1372
    %v1374 = vsub.f32 1.0, %v1365
    %1376 = vrot.lane.b32.xlu0 %v1373, 96
    %v1377 = vpop.permute.xlu0 %1376
    %v1379 = vmul.f32 %v1374, %v1377
    %v1380 = vmul.f32 %v1365, %v1127
    %v1381 = vadd.f32 %v1379, %v1380
    %1383 = vrot.lane.b32.xlu0 %v1318, 96
    %v1384 = vpop.permute.xlu0 %1383
    %1387 = vrot.lane.b32.xlu0 %v1357, 96
    %v1388 = vpop.permute.xlu0 %1387
    %1391 = vrot.lane.b32.xlu0 %v1381, 32
    %v1392 = vpop.permute.xlu0 %1391
    %v1394 = vsel %vm149, %v1384, %v1388
    %v1395 = vsel %vm245, %v1394, %v1392
    %v1397 = vsel %vm247, %v1395, 0
    %1399 = vmatprep.subr.mxu0 %v84
    %1400 = vmatpush1.msra.mxu0 %v83
    %1401 = vmatprep.subr.mxu0 %v88
    %1402 = vmatpush1.msra.mxu0 %v87
    %1403 = vmatprep.subr.mxu0 %v92
    %1404 = vmatpush1.msra.mxu0 %v91
    %1405 = vmatprep.subr.mxu0 %v96
    %1406 = vmatpush1.msra.mxu0 %v95
    %1407 = vmatprep.subr.mxu0 %v100
    %1408 = vmatpush1.msra.mxu0 %v99
    %1409 = vmatprep.subr.mxu0 %v104
    %1410 = vmatpush1.msra.mxu0 %v103
    %1411 = vmatprep.subr.mxu0 %v108
    %1412 = vmatpush1.msra.mxu0 %v107
    %1413 = vmatprep.subr.mxu0 %v112
    %1414 = vmatpush1.msra.mxu0 %v111
    %1415 = vmatprep.subr.mxu0 %v116
    %1416 = vmatpush1.msra.mxu0 %v115
    %1417 = vmatprep.subr.mxu0 %v120
    %1418 = vmatpush1.msra.mxu0 %v119
    %1419 = vmatprep.subr.mxu0 %v124
    %1420 = vmatpush1.msra.mxu0 %v123
    %1421 = vmatprep.subr.mxu0 %v128
    %1422 = vmatpush1.msra.mxu0 %v127
    %1423 = vmatprep.subr.mxu0 0.0
    %1424 = vmatpush1.msra.mxu0 0.0
    %1425 = vmatprep.subr.mxu0 0.0
    %1426 = vmatpush1.msra.mxu0 0.0
    %1427 = vmatprep.subr.mxu0 0.0
    %1428 = vmatpush1.msra.mxu0 0.0
    %1429 = vmatprep.subr.mxu0 0.0
    %1430 = vmatpush1.msra.mxu0 0.0
    %1431 = vmatprep.subr.mxu0 0.0
    %1432 = vmatpush1.msra.mxu0 0.0
    %1433 = vmatprep.subr.mxu0 0.0
    %1434 = vmatpush1.msra.mxu0 0.0
    %1435 = vmatprep.subr.mxu0 0.0
    %1436 = vmatpush1.msra.mxu0 0.0
    %1437 = vmatprep.subr.mxu0 0.0
    %1438 = vmatpush1.msra.mxu0 0.0
    %1439 = vmatprep.subr.mxu0 0.0
    %1440 = vmatpush1.msra.mxu0 0.0
    %1441 = vmatprep.subr.mxu0 0.0
    %1442 = vmatpush1.msra.mxu0 0.0
    %1443 = vmatprep.subr.mxu0 0.0
    %1444 = vmatpush1.msra.mxu0 0.0
    %1445 = vmatprep.subr.mxu0 0.0
    %1446 = vmatpush1.msra.mxu0 0.0
    %1447 = vmatprep.subr.mxu0 0.0
    %1448 = vmatpush1.msra.mxu0 0.0
    %1449 = vmatprep.subr.mxu0 0.0
    %1450 = vmatpush1.msra.mxu0 0.0
    %1451 = vmatprep.subr.mxu0 0.0
    %1452 = vmatpush1.msra.mxu0 0.0
    %1453 = vmatprep.subr.mxu0 0.0
    %1454 = vmatpush1.msra.mxu0 0.0
    %1455 = vmatprep.subr.mxu0 0.0
    %1456 = vmatpush1.msra.mxu0 0.0
    %1457 = vmatprep.subr.mxu0 0.0
    %1458 = vmatpush1.msra.mxu0 0.0
    %1459 = vmatprep.subr.mxu0 0.0
    %1460 = vmatpush1.msra.mxu0 0.0
    %1461 = vmatprep.subr.mxu0 0.0
    %1462 = vmatpush1.msra.mxu0 0.0
    %1463 = vmatprep.mubr.f32.mxu0 0.0
    %1464 = vmatmul.mubr.f32.gmra.mrb[0].mxu0 %v1397
    %v1465 = vpop.f32.mrb[0].mxu0
    %v1466 = vadd.f32 0.0, %v1465
    %v1467 = vpop.f32.mrb[0].mxu0
    %v1468 = vadd.f32 0.0, %v1467
    %1469 = vdwg.mxu0
    %1470 = vmatprep.subr.mxu0 %v86
    %1471 = vmatpush1.msra.mxu0 %v85
    %1472 = vmatprep.subr.mxu0 %v90
    %1473 = vmatpush1.msra.mxu0 %v89
    %1474 = vmatprep.subr.mxu0 %v94
    %1475 = vmatpush1.msra.mxu0 %v93
    %1476 = vmatprep.subr.mxu0 %v98
    %1477 = vmatpush1.msra.mxu0 %v97
    %1478 = vmatprep.subr.mxu0 %v102
    %1479 = vmatpush1.msra.mxu0 %v101
    %1480 = vmatprep.subr.mxu0 %v106
    %1481 = vmatpush1.msra.mxu0 %v105
    %1482 = vmatprep.subr.mxu0 %v110
    %1483 = vmatpush1.msra.mxu0 %v109
    %1484 = vmatprep.subr.mxu0 %v114
    %1485 = vmatpush1.msra.mxu0 %v113
    %1486 = vmatprep.subr.mxu0 %v118
    %1487 = vmatpush1.msra.mxu0 %v117
    %1488 = vmatprep.subr.mxu0 %v122
    %1489 = vmatpush1.msra.mxu0 %v121
    %1490 = vmatprep.subr.mxu0 %v126
    %1491 = vmatpush1.msra.mxu0 %v125
    %1492 = vmatprep.subr.mxu0 %v130
    %1493 = vmatpush1.msra.mxu0 %v129
    %1494 = vmatprep.subr.mxu0 0.0
    %1495 = vmatpush1.msra.mxu0 0.0
    %1496 = vmatprep.subr.mxu0 0.0
    %1497 = vmatpush1.msra.mxu0 0.0
    %1498 = vmatprep.subr.mxu0 0.0
    %1499 = vmatpush1.msra.mxu0 0.0
    %1500 = vmatprep.subr.mxu0 0.0
    %1501 = vmatpush1.msra.mxu0 0.0
    %1502 = vmatprep.subr.mxu0 0.0
    %1503 = vmatpush1.msra.mxu0 0.0
    %1504 = vmatprep.subr.mxu0 0.0
    %1505 = vmatpush1.msra.mxu0 0.0
    %1506 = vmatprep.subr.mxu0 0.0
    %1507 = vmatpush1.msra.mxu0 0.0
    %1508 = vmatprep.subr.mxu0 0.0
    %1509 = vmatpush1.msra.mxu0 0.0
    %1510 = vmatprep.subr.mxu0 0.0
    %1511 = vmatpush1.msra.mxu0 0.0
    %1512 = vmatprep.subr.mxu0 0.0
    %1513 = vmatpush1.msra.mxu0 0.0
    %1514 = vmatprep.subr.mxu0 0.0
    %1515 = vmatpush1.msra.mxu0 0.0
    %1516 = vmatprep.subr.mxu0 0.0
    %1517 = vmatpush1.msra.mxu0 0.0
    %1518 = vmatprep.subr.mxu0 0.0
    %1519 = vmatpush1.msra.mxu0 0.0
    %1520 = vmatprep.subr.mxu0 0.0
    %1521 = vmatpush1.msra.mxu0 0.0
    %1522 = vmatprep.subr.mxu0 0.0
    %1523 = vmatpush1.msra.mxu0 0.0
    %1524 = vmatprep.subr.mxu0 0.0
    %1525 = vmatpush1.msra.mxu0 0.0
    %1526 = vmatprep.subr.mxu0 0.0
    %1527 = vmatpush1.msra.mxu0 0.0
    %1528 = vmatprep.subr.mxu0 0.0
    %1529 = vmatpush1.msra.mxu0 0.0
    %1530 = vmatprep.subr.mxu0 0.0
    %1531 = vmatpush1.msra.mxu0 0.0
    %1532 = vmatprep.subr.mxu0 0.0
    %1533 = vmatpush1.msra.mxu0 0.0
    %1534 = vmatprep.mubr.f32.mxu0 0.0
    %1535 = vmatmul.mubr.f32.gmra.mrb[0].mxu0 %v1397
    %v1536 = vpop.f32.mrb[0].mxu0
    %v1537 = vadd.f32 0.0, %v1536
    %v1538 = vpop.f32.mrb[0].mxu0
    %v1539 = vadd.f32 0.0, %v1538
    %1540 = vdwg.mxu0
    %v1542 = vrot.slane %v1466, 6
    %v1544 = vadd.f32 %v228, %v1542
    %v1545 = vxor.u32 %v1544, 2147483648
    %v1546 = vmul.f32 %v1545, 1.442695
    %v1547 = vpow.pop %v1546
    %v1548 = vadd.f32 %v1547, 1.0
    %v1549 = vrcp.pop %v1548
    %v1550 = vmul.f32 1.0, %v1549
    %v1551 = vadd.f32 %v1466, %v334
    %v1553 = vrot.slane %v1551, 6
    %1554 = vrot.lane.b32.xlu0 %v1553, 64
    %v1555 = vpop.permute.xlu0 %1554
    %v1557 = vmul.f32 %v1550, %v1555
    %1559 = vrot.lane.b32.xlu0 %v1557, 64
    %v1560 = vpop.permute.xlu0 %1559
    %v1562 = vadd.f32 %v228, %v1560
    %v1563 = vtanh.pop %v1562
    %v1564 = vsub.f32 1.0, %v1550
    %1566 = vrot.lane.b32.xlu0 %v1563, 96
    %v1567 = vpop.permute.xlu0 %1566
    %v1569 = vmul.f32 %v1564, %v1567
    %v1570 = vrot.slane %v1318, 6
    %v1572 = vmul.f32 %v1550, %v1570
    %v1573 = vadd.f32 %v1569, %v1572
    %v1574 = vadd.f32 %v1537, %v549
    %1575 = vrot.lane.b32.xlu0 %v1466, 64
    %v1576 = vpop.permute.xlu0 %1575
    %v1578 = vadd.f32 %v1574, %v1576
    %v1579 = vxor.u32 %v1578, 2147483648
    %v1580 = vmul.f32 %v1579, 1.442695
    %v1581 = vpow.pop %v1580
    %v1582 = vadd.f32 %v1581, 1.0
    %v1583 = vrcp.pop %v1582
    %v1584 = vmul.f32 1.0, %v1583
    %1586 = vrot.lane.b32.xlu0 %v1468, 64
    %v1587 = vpop.permute.xlu0 %1586
    %v1589 = vadd.f32 %v1574, %v1587
    %v1590 = vxor.u32 %v1589, 2147483648
    %v1591 = vmul.f32 %v1590, 1.442695
    %v1592 = vpow.pop %v1591
    %v1593 = vadd.f32 %v1592, 1.0
    %v1594 = vrcp.pop %v1593
    %v1595 = vmul.f32 1.0, %v1594
    %v1596 = vadd.f32 %v1468, %v579
    %v1597 = vmul.f32 %v1584, %v1596
    %1599 = vrot.lane.b32.xlu0 %v1597, 64
    %v1600 = vpop.permute.xlu0 %1599
    %v1602 = vadd.f32 %v1574, %v1600
    %v1603 = vtanh.pop %v1602
    %v1604 = vsub.f32 1.0, %v1595
    %1606 = vrot.lane.b32.xlu0 %v1603, 96
    %v1607 = vpop.permute.xlu0 %1606
    %v1609 = vmul.f32 %v1604, %v1607
    %v1610 = vmul.f32 %v1595, %v1357
    %v1611 = vadd.f32 %v1609, %v1610
    %v1612 = vadd.f32 %v1539, %v836
    %v1613 = vadd.f32 %v1612, %v1587
    %v1614 = vxor.u32 %v1613, 2147483648
    %v1615 = vmul.f32 %v1614, 1.442695
    %v1616 = vpow.pop %v1615
    %v1617 = vadd.f32 %v1616, 1.0
    %v1618 = vrcp.pop %v1617
    %v1619 = vmul.f32 1.0, %v1618
    %v1620 = vadd.f32 %v1537, %v850
    %v1621 = vmul.f32 %v1619, %v1620
    %1623 = vrot.lane.b32.xlu0 %v1621, 64
    %v1624 = vpop.permute.xlu0 %1623
    %v1626 = vadd.f32 %v1612, %v1624
    %v1627 = vtanh.pop %v1626
    %v1628 = vsub.f32 1.0, %v1619
    %1630 = vrot.lane.b32.xlu0 %v1627, 96
    %v1631 = vpop.permute.xlu0 %1630
    %v1633 = vmul.f32 %v1628, %v1631
    %v1634 = vmul.f32 %v1619, %v1381
    %v1635 = vadd.f32 %v1633, %v1634
    %1637 = vrot.lane.b32.xlu0 %v1573, 96
    %v1638 = vpop.permute.xlu0 %1637
    %v1641 = vrot.slane %v1611, 6
    %1642 = vrot.lane.b32.xlu0 %v1641, 96
    %v1643 = vpop.permute.xlu0 %1642
    %v1646 = vrot.slane %v1635, 6
    %1647 = vrot.lane.b32.xlu0 %v1646, 32
    %v1648 = vpop.permute.xlu0 %1647
    %v1650 = vsel %vm149, %v1638, %v1643
    %v1651 = vsel %vm245, %v1650, %v1648
    %v1653 = vrot.slane %v1651, 2
    %v1654 = vsel %vm247, %v1653, 0
    %1656 = vmatprep.subr.mxu0 %v84
    %1657 = vmatpush1.msra.mxu0 %v83
    %1658 = vmatprep.subr.mxu0 %v88
    %1659 = vmatpush1.msra.mxu0 %v87
    %1660 = vmatprep.subr.mxu0 %v92
    %1661 = vmatpush1.msra.mxu0 %v91
    %1662 = vmatprep.subr.mxu0 %v96
    %1663 = vmatpush1.msra.mxu0 %v95
    %1664 = vmatprep.subr.mxu0 %v100
    %1665 = vmatpush1.msra.mxu0 %v99
    %1666 = vmatprep.subr.mxu0 %v104
    %1667 = vmatpush1.msra.mxu0 %v103
    %1668 = vmatprep.subr.mxu0 %v108
    %1669 = vmatpush1.msra.mxu0 %v107
    %1670 = vmatprep.subr.mxu0 %v112
    %1671 = vmatpush1.msra.mxu0 %v111
    %1672 = vmatprep.subr.mxu0 %v116
    %1673 = vmatpush1.msra.mxu0 %v115
    %1674 = vmatprep.subr.mxu0 %v120
    %1675 = vmatpush1.msra.mxu0 %v119
    %1676 = vmatprep.subr.mxu0 %v124
    %1677 = vmatpush1.msra.mxu0 %v123
    %1678 = vmatprep.subr.mxu0 %v128
    %1679 = vmatpush1.msra.mxu0 %v127
    %1680 = vmatprep.subr.mxu0 0.0
    %1681 = vmatpush1.msra.mxu0 0.0
    %1682 = vmatprep.subr.mxu0 0.0
    %1683 = vmatpush1.msra.mxu0 0.0
    %1684 = vmatprep.subr.mxu0 0.0
    %1685 = vmatpush1.msra.mxu0 0.0
    %1686 = vmatprep.subr.mxu0 0.0
    %1687 = vmatpush1.msra.mxu0 0.0
    %1688 = vmatprep.subr.mxu0 0.0
    %1689 = vmatpush1.msra.mxu0 0.0
    %1690 = vmatprep.subr.mxu0 0.0
    %1691 = vmatpush1.msra.mxu0 0.0
    %1692 = vmatprep.subr.mxu0 0.0
    %1693 = vmatpush1.msra.mxu0 0.0
    %1694 = vmatprep.subr.mxu0 0.0
    %1695 = vmatpush1.msra.mxu0 0.0
    %1696 = vmatprep.subr.mxu0 0.0
    %1697 = vmatpush1.msra.mxu0 0.0
    %1698 = vmatprep.subr.mxu0 0.0
    %1699 = vmatpush1.msra.mxu0 0.0
    %1700 = vmatprep.subr.mxu0 0.0
    %1701 = vmatpush1.msra.mxu0 0.0
    %1702 = vmatprep.subr.mxu0 0.0
    %1703 = vmatpush1.msra.mxu0 0.0
    %1704 = vmatprep.subr.mxu0 0.0
    %1705 = vmatpush1.msra.mxu0 0.0
    %1706 = vmatprep.subr.mxu0 0.0
    %1707 = vmatpush1.msra.mxu0 0.0
    %1708 = vmatprep.subr.mxu0 0.0
    %1709 = vmatpush1.msra.mxu0 0.0
    %1710 = vmatprep.subr.mxu0 0.0
    %1711 = vmatpush1.msra.mxu0 0.0
    %1712 = vmatprep.subr.mxu0 0.0
    %1713 = vmatpush1.msra.mxu0 0.0
    %1714 = vmatprep.subr.mxu0 0.0
    %1715 = vmatpush1.msra.mxu0 0.0
    %1716 = vmatprep.subr.mxu0 0.0
    %1717 = vmatpush1.msra.mxu0 0.0
    %1718 = vmatprep.subr.mxu0 0.0
    %1719 = vmatpush1.msra.mxu0 0.0
    %1720 = vmatprep.mubr.f32.mxu0 0.0
    %1721 = vmatmul.mubr.f32.gmra.mrb[0].mxu0 %v1654
    %v1722 = vpop.f32.mrb[0].mxu0
    %v1723 = vadd.f32 0.0, %v1722
    %v1724 = vpop.f32.mrb[0].mxu0
    %v1725 = vadd.f32 0.0, %v1724
    %1726 = vdwg.mxu0
    %1727 = vmatprep.subr.mxu0 %v86
    %1728 = vmatpush1.msra.mxu0 %v85
    %1729 = vmatprep.subr.mxu0 %v90
    %1730 = vmatpush1.msra.mxu0 %v89
    %1731 = vmatprep.subr.mxu0 %v94
    %1732 = vmatpush1.msra.mxu0 %v93
    %1733 = vmatprep.subr.mxu0 %v98
    %1734 = vmatpush1.msra.mxu0 %v97
    %1735 = vmatprep.subr.mxu0 %v102
    %1736 = vmatpush1.msra.mxu0 %v101
    %1737 = vmatprep.subr.mxu0 %v106
    %1738 = vmatpush1.msra.mxu0 %v105
    %1739 = vmatprep.subr.mxu0 %v110
    %1740 = vmatpush1.msra.mxu0 %v109
    %1741 = vmatprep.subr.mxu0 %v114
    %1742 = vmatpush1.msra.mxu0 %v113
    %1743 = vmatprep.subr.mxu0 %v118
    %1744 = vmatpush1.msra.mxu0 %v117
    %1745 = vmatprep.subr.mxu0 %v122
    %1746 = vmatpush1.msra.mxu0 %v121
    %1747 = vmatprep.subr.mxu0 %v126
    %1748 = vmatpush1.msra.mxu0 %v125
    %1749 = vmatprep.subr.mxu0 %v130
    %1750 = vmatpush1.msra.mxu0 %v129
    %1751 = vmatprep.subr.mxu0 0.0
    %1752 = vmatpush1.msra.mxu0 0.0
    %1753 = vmatprep.subr.mxu0 0.0
    %1754 = vmatpush1.msra.mxu0 0.0
    %1755 = vmatprep.subr.mxu0 0.0
    %1756 = vmatpush1.msra.mxu0 0.0
    %1757 = vmatprep.subr.mxu0 0.0
    %1758 = vmatpush1.msra.mxu0 0.0
    %1759 = vmatprep.subr.mxu0 0.0
    %1760 = vmatpush1.msra.mxu0 0.0
    %1761 = vmatprep.subr.mxu0 0.0
    %1762 = vmatpush1.msra.mxu0 0.0
    %1763 = vmatprep.subr.mxu0 0.0
    %1764 = vmatpush1.msra.mxu0 0.0
    %1765 = vmatprep.subr.mxu0 0.0
    %1766 = vmatpush1.msra.mxu0 0.0
    %1767 = vmatprep.subr.mxu0 0.0
    %1768 = vmatpush1.msra.mxu0 0.0
    %1769 = vmatprep.subr.mxu0 0.0
    %1770 = vmatpush1.msra.mxu0 0.0
    %1771 = vmatprep.subr.mxu0 0.0
    %1772 = vmatpush1.msra.mxu0 0.0
    %1773 = vmatprep.subr.mxu0 0.0
    %1774 = vmatpush1.msra.mxu0 0.0
    %1775 = vmatprep.subr.mxu0 0.0
    %1776 = vmatpush1.msra.mxu0 0.0
    %1777 = vmatprep.subr.mxu0 0.0
    %1778 = vmatpush1.msra.mxu0 0.0
    %1779 = vmatprep.subr.mxu0 0.0
    %1780 = vmatpush1.msra.mxu0 0.0
    %1781 = vmatprep.subr.mxu0 0.0
    %1782 = vmatpush1.msra.mxu0 0.0
    %1783 = vmatprep.subr.mxu0 0.0
    %1784 = vmatpush1.msra.mxu0 0.0
    %1785 = vmatprep.subr.mxu0 0.0
    %1786 = vmatpush1.msra.mxu0 0.0
    %1787 = vmatprep.subr.mxu0 0.0
    %1788 = vmatpush1.msra.mxu0 0.0
    %1789 = vmatprep.subr.mxu0 0.0
    %1790 = vmatpush1.msra.mxu0 0.0
    %1791 = vmatprep.mubr.f32.mxu0 0.0
    %1792 = vmatmul.mubr.f32.gmra.mrb[0].mxu0 %v1654
    %v1793 = vpop.f32.mrb[0].mxu0
    %v1794 = vadd.f32 0.0, %v1793
    %v1795 = vpop.f32.mrb[0].mxu0
    %v1796 = vadd.f32 0.0, %v1795
    %1797 = vdwg.mxu0
    %v1799 = vrot.slane %v1723, 4
    %v1801 = vadd.f32 %v228, %v1799
    %v1802 = vxor.u32 %v1801, 2147483648
    %v1803 = vmul.f32 %v1802, 1.442695
    %v1804 = vpow.pop %v1803
    %v1805 = vadd.f32 %v1804, 1.0
    %v1806 = vrcp.pop %v1805
    %v1807 = vmul.f32 1.0, %v1806
    %v1808 = vadd.f32 %v1723, %v334
    %v1810 = vrot.slane %v1808, 4
    %1811 = vrot.lane.b32.xlu0 %v1810, 64
    %v1812 = vpop.permute.xlu0 %1811
    %v1814 = vmul.f32 %v1807, %v1812
    %1816 = vrot.lane.b32.xlu0 %v1814, 64
    %v1817 = vpop.permute.xlu0 %1816
    %v1819 = vadd.f32 %v228, %v1817
    %v1820 = vtanh.pop %v1819
    %v1821 = vsub.f32 1.0, %v1807
    %1823 = vrot.lane.b32.xlu0 %v1820, 96
    %v1824 = vpop.permute.xlu0 %1823
    %v1826 = vmul.f32 %v1821, %v1824
    %v1827 = vrot.slane %v1573, 6
    %v1829 = vmul.f32 %v1807, %v1827
    %v1830 = vadd.f32 %v1826, %v1829
    %v1831 = vadd.f32 %v1794, %v549
    %1832 = vrot.lane.b32.xlu0 %v1723, 64
    %v1833 = vpop.permute.xlu0 %1832
    %v1835 = vadd.f32 %v1831, %v1833
    %v1836 = vxor.u32 %v1835, 2147483648
    %v1837 = vmul.f32 %v1836, 1.442695
    %v1838 = vpow.pop %v1837
    %v1839 = vadd.f32 %v1838, 1.0
    %v1840 = vrcp.pop %v1839
    %v1841 = vmul.f32 1.0, %v1840
    %1843 = vrot.lane.b32.xlu0 %v1725, 64
    %v1844 = vpop.permute.xlu0 %1843
    %v1846 = vadd.f32 %v1831, %v1844
    %v1847 = vxor.u32 %v1846, 2147483648
    %v1848 = vmul.f32 %v1847, 1.442695
    %v1849 = vpow.pop %v1848
    %v1850 = vadd.f32 %v1849, 1.0
    %v1851 = vrcp.pop %v1850
    %v1852 = vmul.f32 1.0, %v1851
    %v1853 = vadd.f32 %v1725, %v579
    %v1854 = vmul.f32 %v1841, %v1853
    %1856 = vrot.lane.b32.xlu0 %v1854, 64
    %v1857 = vpop.permute.xlu0 %1856
    %v1859 = vadd.f32 %v1831, %v1857
    %v1860 = vtanh.pop %v1859
    %v1861 = vsub.f32 1.0, %v1852
    %1863 = vrot.lane.b32.xlu0 %v1860, 96
    %v1864 = vpop.permute.xlu0 %1863
    %v1866 = vmul.f32 %v1861, %v1864
    %v1867 = vmul.f32 %v1852, %v1611
    %v1868 = vadd.f32 %v1866, %v1867
    %v1869 = vadd.f32 %v1796, %v836
    %v1870 = vadd.f32 %v1869, %v1844
    %v1871 = vxor.u32 %v1870, 2147483648
    %v1872 = vmul.f32 %v1871, 1.442695
    %v1873 = vpow.pop %v1872
    %v1874 = vadd.f32 %v1873, 1.0
    %v1875 = vrcp.pop %v1874
    %v1876 = vmul.f32 1.0, %v1875
    %v1877 = vadd.f32 %v1794, %v850
    %v1878 = vmul.f32 %v1876, %v1877
    %1880 = vrot.lane.b32.xlu0 %v1878, 64
    %v1881 = vpop.permute.xlu0 %1880
    %v1883 = vadd.f32 %v1869, %v1881
    %v1884 = vtanh.pop %v1883
    %v1885 = vsub.f32 1.0, %v1876
    %1887 = vrot.lane.b32.xlu0 %v1884, 96
    %v1888 = vpop.permute.xlu0 %1887
    %v1890 = vmul.f32 %v1885, %v1888
    %v1891 = vmul.f32 %v1876, %v1635
    %v1892 = vadd.f32 %v1890, %v1891
    %1894 = vrot.lane.b32.xlu0 %v1830, 96
    %v1895 = vpop.permute.xlu0 %1894
    %v1898 = vrot.slane %v1868, 4
    %1899 = vrot.lane.b32.xlu0 %v1898, 96
    %v1900 = vpop.permute.xlu0 %1899
    %v1903 = vrot.slane %v1892, 4
    %1904 = vrot.lane.b32.xlu0 %v1903, 32
    %v1905 = vpop.permute.xlu0 %1904
    %v1907 = vsel %vm149, %v1895, %v1900
    %v1908 = vsel %vm245, %v1907, %v1905
    %v1910 = vrot.slane %v1908, 4
    %v1911 = vsel %vm247, %v1910, 0
    %1913 = vmatprep.subr.mxu0 %v84
    %1914 = vmatpush1.msra.mxu0 %v83
    %1915 = vmatprep.subr.mxu0 %v88
    %1916 = vmatpush1.msra.mxu0 %v87
    %1917 = vmatprep.subr.mxu0 %v92
    %1918 = vmatpush1.msra.mxu0 %v91
    %1919 = vmatprep.subr.mxu0 %v96
    %1920 = vmatpush1.msra.mxu0 %v95
    %1921 = vmatprep.subr.mxu0 %v100
    %1922 = vmatpush1.msra.mxu0 %v99
    %1923 = vmatprep.subr.mxu0 %v104
    %1924 = vmatpush1.msra.mxu0 %v103
    %1925 = vmatprep.subr.mxu0 %v108
    %1926 = vmatpush1.msra.mxu0 %v107
    %1927 = vmatprep.subr.mxu0 %v112
    %1928 = vmatpush1.msra.mxu0 %v111
    %1929 = vmatprep.subr.mxu0 %v116
    %1930 = vmatpush1.msra.mxu0 %v115
    %1931 = vmatprep.subr.mxu0 %v120
    %1932 = vmatpush1.msra.mxu0 %v119
    %1933 = vmatprep.subr.mxu0 %v124
    %1934 = vmatpush1.msra.mxu0 %v123
    %1935 = vmatprep.subr.mxu0 %v128
    %1936 = vmatpush1.msra.mxu0 %v127
    %1937 = vmatprep.subr.mxu0 0.0
    %1938 = vmatpush1.msra.mxu0 0.0
    %1939 = vmatprep.subr.mxu0 0.0
    %1940 = vmatpush1.msra.mxu0 0.0
    %1941 = vmatprep.subr.mxu0 0.0
    %1942 = vmatpush1.msra.mxu0 0.0
    %1943 = vmatprep.subr.mxu0 0.0
    %1944 = vmatpush1.msra.mxu0 0.0
    %1945 = vmatprep.subr.mxu0 0.0
    %1946 = vmatpush1.msra.mxu0 0.0
    %1947 = vmatprep.subr.mxu0 0.0
    %1948 = vmatpush1.msra.mxu0 0.0
    %1949 = vmatprep.subr.mxu0 0.0
    %1950 = vmatpush1.msra.mxu0 0.0
    %1951 = vmatprep.subr.mxu0 0.0
    %1952 = vmatpush1.msra.mxu0 0.0
    %1953 = vmatprep.subr.mxu0 0.0
    %1954 = vmatpush1.msra.mxu0 0.0
    %1955 = vmatprep.subr.mxu0 0.0
    %1956 = vmatpush1.msra.mxu0 0.0
    %1957 = vmatprep.subr.mxu0 0.0
    %1958 = vmatpush1.msra.mxu0 0.0
    %1959 = vmatprep.subr.mxu0 0.0
    %1960 = vmatpush1.msra.mxu0 0.0
    %1961 = vmatprep.subr.mxu0 0.0
    %1962 = vmatpush1.msra.mxu0 0.0
    %1963 = vmatprep.subr.mxu0 0.0
    %1964 = vmatpush1.msra.mxu0 0.0
    %1965 = vmatprep.subr.mxu0 0.0
    %1966 = vmatpush1.msra.mxu0 0.0
    %1967 = vmatprep.subr.mxu0 0.0
    %1968 = vmatpush1.msra.mxu0 0.0
    %1969 = vmatprep.subr.mxu0 0.0
    %1970 = vmatpush1.msra.mxu0 0.0
    %1971 = vmatprep.subr.mxu0 0.0
    %1972 = vmatpush1.msra.mxu0 0.0
    %1973 = vmatprep.subr.mxu0 0.0
    %1974 = vmatpush1.msra.mxu0 0.0
    %1975 = vmatprep.subr.mxu0 0.0
    %1976 = vmatpush1.msra.mxu0 0.0
    %1977 = vmatprep.mubr.f32.mxu0 0.0
    %1978 = vmatmul.mubr.f32.gmra.mrb[0].mxu0 %v1911
    %v1979 = vpop.f32.mrb[0].mxu0
    %v1980 = vadd.f32 0.0, %v1979
    %v1981 = vpop.f32.mrb[0].mxu0
    %v1982 = vadd.f32 0.0, %v1981
    %1983 = vdwg.mxu0
    %1984 = vmatprep.subr.mxu0 %v86
    %1985 = vmatpush1.msra.mxu0 %v85
    %1986 = vmatprep.subr.mxu0 %v90
    %1987 = vmatpush1.msra.mxu0 %v89
    %1988 = vmatprep.subr.mxu0 %v94
    %1989 = vmatpush1.msra.mxu0 %v93
    %1990 = vmatprep.subr.mxu0 %v98
    %1991 = vmatpush1.msra.mxu0 %v97
    %1992 = vmatprep.subr.mxu0 %v102
    %1993 = vmatpush1.msra.mxu0 %v101
    %1994 = vmatprep.subr.mxu0 %v106
    %1995 = vmatpush1.msra.mxu0 %v105
    %1996 = vmatprep.subr.mxu0 %v110
    %1997 = vmatpush1.msra.mxu0 %v109
    %1998 = vmatprep.subr.mxu0 %v114
    %1999 = vmatpush1.msra.mxu0 %v113
    %2000 = vmatprep.subr.mxu0 %v118
    %2001 = vmatpush1.msra.mxu0 %v117
    %2002 = vmatprep.subr.mxu0 %v122
    %2003 = vmatpush1.msra.mxu0 %v121
    %2004 = vmatprep.subr.mxu0 %v126
    %2005 = vmatpush1.msra.mxu0 %v125
    %2006 = vmatprep.subr.mxu0 %v130
    %2007 = vmatpush1.msra.mxu0 %v129
    %2008 = vmatprep.subr.mxu0 0.0
    %2009 = vmatpush1.msra.mxu0 0.0
    %2010 = vmatprep.subr.mxu0 0.0
    %2011 = vmatpush1.msra.mxu0 0.0
    %2012 = vmatprep.subr.mxu0 0.0
    %2013 = vmatpush1.msra.mxu0 0.0
    %2014 = vmatprep.subr.mxu0 0.0
    %2015 = vmatpush1.msra.mxu0 0.0
    %2016 = vmatprep.subr.mxu0 0.0
    %2017 = vmatpush1.msra.mxu0 0.0
    %2018 = vmatprep.subr.mxu0 0.0
    %2019 = vmatpush1.msra.mxu0 0.0
    %2020 = vmatprep.subr.mxu0 0.0
    %2021 = vmatpush1.msra.mxu0 0.0
    %2022 = vmatprep.subr.mxu0 0.0
    %2023 = vmatpush1.msra.mxu0 0.0
    %2024 = vmatprep.subr.mxu0 0.0
    %2025 = vmatpush1.msra.mxu0 0.0
    %2026 = vmatprep.subr.mxu0 0.0
    %2027 = vmatpush1.msra.mxu0 0.0
    %2028 = vmatprep.subr.mxu0 0.0
    %2029 = vmatpush1.msra.mxu0 0.0
    %2030 = vmatprep.subr.mxu0 0.0
    %2031 = vmatpush1.msra.mxu0 0.0
    %2032 = vmatprep.subr.mxu0 0.0
    %2033 = vmatpush1.msra.mxu0 0.0
    %2034 = vmatprep.subr.mxu0 0.0
    %2035 = vmatpush1.msra.mxu0 0.0
    %2036 = vmatprep.subr.mxu0 0.0
    %2037 = vmatpush1.msra.mxu0 0.0
    %2038 = vmatprep.subr.mxu0 0.0
    %2039 = vmatpush1.msra.mxu0 0.0
    %2040 = vmatprep.subr.mxu0 0.0
    %2041 = vmatpush1.msra.mxu0 0.0
    %2042 = vmatprep.subr.mxu0 0.0
    %2043 = vmatpush1.msra.mxu0 0.0
    %2044 = vmatprep.subr.mxu0 0.0
    %2045 = vmatpush1.msra.mxu0 0.0
    %2046 = vmatprep.subr.mxu0 0.0
    %2047 = vmatpush1.msra.mxu0 0.0
    %2048 = vmatprep.mubr.f32.mxu0 0.0
    %2049 = vmatmul.mubr.f32.gmra.mrb[0].mxu0 %v1911
    %v2050 = vpop.f32.mrb[0].mxu0
    %v2051 = vadd.f32 0.0, %v2050
    %v2052 = vpop.f32.mrb[0].mxu0
    %v2053 = vadd.f32 0.0, %v2052
    %2054 = vdwg.mxu0
    %v2056 = vrot.slane %v1980, 2
    %v2058 = vadd.f32 %v228, %v2056
    %v2059 = vxor.u32 %v2058, 2147483648
    %v2060 = vmul.f32 %v2059, 1.442695
    %v2061 = vpow.pop %v2060
    %v2062 = vadd.f32 %v2061, 1.0
    %v2063 = vrcp.pop %v2062
    %v2064 = vmul.f32 1.0, %v2063
    %v2065 = vadd.f32 %v1980, %v334
    %v2067 = vrot.slane %v2065, 2
    %2068 = vrot.lane.b32.xlu0 %v2067, 64
    %v2069 = vpop.permute.xlu0 %2068
    %v2071 = vmul.f32 %v2064, %v2069
    %2073 = vrot.lane.b32.xlu0 %v2071, 64
    %v2074 = vpop.permute.xlu0 %2073
    %v2076 = vadd.f32 %v228, %v2074
    %v2077 = vtanh.pop %v2076
    %v2078 = vsub.f32 1.0, %v2064
    %2080 = vrot.lane.b32.xlu0 %v2077, 96
    %v2081 = vpop.permute.xlu0 %2080
    %v2083 = vmul.f32 %v2078, %v2081
    %v2084 = vrot.slane %v1830, 6
    %v2086 = vmul.f32 %v2064, %v2084
    %v2087 = vadd.f32 %v2083, %v2086
    %v2088 = vadd.f32 %v2051, %v549
    %2089 = vrot.lane.b32.xlu0 %v1980, 64
    %v2090 = vpop.permute.xlu0 %2089
    %v2092 = vadd.f32 %v2088, %v2090
    %v2093 = vxor.u32 %v2092, 2147483648
    %v2094 = vmul.f32 %v2093, 1.442695
    %v2095 = vpow.pop %v2094
    %v2096 = vadd.f32 %v2095, 1.0
    %v2097 = vrcp.pop %v2096
    %v2098 = vmul.f32 1.0, %v2097
    %2100 = vrot.lane.b32.xlu0 %v1982, 64
    %v2101 = vpop.permute.xlu0 %2100
    %v2103 = vadd.f32 %v2088, %v2101
    %v2104 = vxor.u32 %v2103, 2147483648
    %v2105 = vmul.f32 %v2104, 1.442695
    %v2106 = vpow.pop %v2105
    %v2107 = vadd.f32 %v2106, 1.0
    %v2108 = vrcp.pop %v2107
    %v2109 = vmul.f32 1.0, %v2108
    %v2110 = vadd.f32 %v1982, %v579
    %v2111 = vmul.f32 %v2098, %v2110
    %2113 = vrot.lane.b32.xlu0 %v2111, 64
    %v2114 = vpop.permute.xlu0 %2113
    %v2116 = vadd.f32 %v2088, %v2114
    %v2117 = vtanh.pop %v2116
    %v2118 = vsub.f32 1.0, %v2109
    %2120 = vrot.lane.b32.xlu0 %v2117, 96
    %v2121 = vpop.permute.xlu0 %2120
    %v2123 = vmul.f32 %v2118, %v2121
    %v2124 = vmul.f32 %v2109, %v1868
    %v2125 = vadd.f32 %v2123, %v2124
    %v2126 = vadd.f32 %v2053, %v836
    %v2127 = vadd.f32 %v2126, %v2101
    %v2128 = vxor.u32 %v2127, 2147483648
    %v2129 = vmul.f32 %v2128, 1.442695
    %v2130 = vpow.pop %v2129
    %v2131 = vadd.f32 %v2130, 1.0
    %v2132 = vrcp.pop %v2131
    %v2133 = vmul.f32 1.0, %v2132
    %v2134 = vadd.f32 %v2051, %v850
    %v2135 = vmul.f32 %v2133, %v2134
    %2137 = vrot.lane.b32.xlu0 %v2135, 64
    %v2138 = vpop.permute.xlu0 %2137
    %v2140 = vadd.f32 %v2126, %v2138
    %v2141 = vtanh.pop %v2140
    %v2142 = vsub.f32 1.0, %v2133
    %2144 = vrot.lane.b32.xlu0 %v2141, 96
    %v2145 = vpop.permute.xlu0 %2144
    %v2147 = vmul.f32 %v2142, %v2145
    %v2148 = vmul.f32 %v2133, %v1892
    %v2149 = vadd.f32 %v2147, %v2148
    %2151 = vrot.lane.b32.xlu0 %v2087, 96
    %v2152 = vpop.permute.xlu0 %2151
    %v2155 = vrot.slane %v2125, 2
    %2156 = vrot.lane.b32.xlu0 %v2155, 96
    %v2157 = vpop.permute.xlu0 %2156
    %v2160 = vrot.slane %v2149, 2
    %2161 = vrot.lane.b32.xlu0 %v2160, 32
    %v2162 = vpop.permute.xlu0 %2161
    %v2164 = vsel %vm149, %v2152, %v2157
    %v2165 = vsel %vm245, %v2164, %v2162
    %v2167 = vrot.slane %v2165, 6
    %v2168 = vsel %vm247, %v2167, 0
    %2170 = vmatprep.subr.mxu0 %v84
    %2171 = vmatpush1.msra.mxu0 %v83
    %2172 = vmatprep.subr.mxu0 %v88
    %2173 = vmatpush1.msra.mxu0 %v87
    %2174 = vmatprep.subr.mxu0 %v92
    %2175 = vmatpush1.msra.mxu0 %v91
    %2176 = vmatprep.subr.mxu0 %v96
    %2177 = vmatpush1.msra.mxu0 %v95
    %2178 = vmatprep.subr.mxu0 %v100
    %2179 = vmatpush1.msra.mxu0 %v99
    %2180 = vmatprep.subr.mxu0 %v104
    %2181 = vmatpush1.msra.mxu0 %v103
    %2182 = vmatprep.subr.mxu0 %v108
    %2183 = vmatpush1.msra.mxu0 %v107
    %2184 = vmatprep.subr.mxu0 %v112
    %2185 = vmatpush1.msra.mxu0 %v111
    %2186 = vmatprep.subr.mxu0 %v116
    %2187 = vmatpush1.msra.mxu0 %v115
    %2188 = vmatprep.subr.mxu0 %v120
    %2189 = vmatpush1.msra.mxu0 %v119
    %2190 = vmatprep.subr.mxu0 %v124
    %2191 = vmatpush1.msra.mxu0 %v123
    %2192 = vmatprep.subr.mxu0 %v128
    %2193 = vmatpush1.msra.mxu0 %v127
    %2194 = vmatprep.subr.mxu0 0.0
    %2195 = vmatpush1.msra.mxu0 0.0
    %2196 = vmatprep.subr.mxu0 0.0
    %2197 = vmatpush1.msra.mxu0 0.0
    %2198 = vmatprep.subr.mxu0 0.0
    %2199 = vmatpush1.msra.mxu0 0.0
    %2200 = vmatprep.subr.mxu0 0.0
    %2201 = vmatpush1.msra.mxu0 0.0
    %2202 = vmatprep.subr.mxu0 0.0
    %2203 = vmatpush1.msra.mxu0 0.0
    %2204 = vmatprep.subr.mxu0 0.0
    %2205 = vmatpush1.msra.mxu0 0.0
    %2206 = vmatprep.subr.mxu0 0.0
    %2207 = vmatpush1.msra.mxu0 0.0
    %2208 = vmatprep.subr.mxu0 0.0
    %2209 = vmatpush1.msra.mxu0 0.0
    %2210 = vmatprep.subr.mxu0 0.0
    %2211 = vmatpush1.msra.mxu0 0.0
    %2212 = vmatprep.subr.mxu0 0.0
    %2213 = vmatpush1.msra.mxu0 0.0
    %2214 = vmatprep.subr.mxu0 0.0
    %2215 = vmatpush1.msra.mxu0 0.0
    %2216 = vmatprep.subr.mxu0 0.0
    %2217 = vmatpush1.msra.mxu0 0.0
    %2218 = vmatprep.subr.mxu0 0.0
    %2219 = vmatpush1.msra.mxu0 0.0
    %2220 = vmatprep.subr.mxu0 0.0
    %2221 = vmatpush1.msra.mxu0 0.0
    %2222 = vmatprep.subr.mxu0 0.0
    %2223 = vmatpush1.msra.mxu0 0.0
    %2224 = vmatprep.subr.mxu0 0.0
    %2225 = vmatpush1.msra.mxu0 0.0
    %2226 = vmatprep.subr.mxu0 0.0
    %2227 = vmatpush1.msra.mxu0 0.0
    %2228 = vmatprep.subr.mxu0 0.0
    %2229 = vmatpush1.msra.mxu0 0.0
    %2230 = vmatprep.subr.mxu0 0.0
    %2231 = vmatpush1.msra.mxu0 0.0
    %2232 = vmatprep.subr.mxu0 0.0
    %2233 = vmatpush1.msra.mxu0 0.0
    %2234 = vmatprep.mubr.f32.mxu0 0.0
    %2235 = vmatmul.mubr.f32.gmra.mrb[0].mxu0 %v2168
    %v2236 = vpop.f32.mrb[0].mxu0
    %v2237 = vadd.f32 0.0, %v2236
    %v2238 = vpop.f32.mrb[0].mxu0
    %v2239 = vadd.f32 0.0, %v2238
    %2240 = vdwg.mxu0
    %2241 = vmatprep.subr.mxu0 %v86
    %2242 = vmatpush1.msra.mxu0 %v85
    %2243 = vmatprep.subr.mxu0 %v90
    %2244 = vmatpush1.msra.mxu0 %v89
    %2245 = vmatprep.subr.mxu0 %v94
    %2246 = vmatpush1.msra.mxu0 %v93
    %2247 = vmatprep.subr.mxu0 %v98
    %2248 = vmatpush1.msra.mxu0 %v97
    %2249 = vmatprep.subr.mxu0 %v102
    %2250 = vmatpush1.msra.mxu0 %v101
    %2251 = vmatprep.subr.mxu0 %v106
    %2252 = vmatpush1.msra.mxu0 %v105
    %2253 = vmatprep.subr.mxu0 %v110
    %2254 = vmatpush1.msra.mxu0 %v109
    %2255 = vmatprep.subr.mxu0 %v114
    %2256 = vmatpush1.msra.mxu0 %v113
    %2257 = vmatprep.subr.mxu0 %v118
    %2258 = vmatpush1.msra.mxu0 %v117
    %2259 = vmatprep.subr.mxu0 %v122
    %2260 = vmatpush1.msra.mxu0 %v121
    %2261 = vmatprep.subr.mxu0 %v126
    %2262 = vmatpush1.msra.mxu0 %v125
    %2263 = vmatprep.subr.mxu0 %v130
    %2264 = vmatpush1.msra.mxu0 %v129
    %2265 = vmatprep.subr.mxu0 0.0
    %2266 = vmatpush1.msra.mxu0 0.0
    %2267 = vmatprep.subr.mxu0 0.0
    %2268 = vmatpush1.msra.mxu0 0.0
    %2269 = vmatprep.subr.mxu0 0.0
    %2270 = vmatpush1.msra.mxu0 0.0
    %2271 = vmatprep.subr.mxu0 0.0
    %2272 = vmatpush1.msra.mxu0 0.0
    %2273 = vmatprep.subr.mxu0 0.0
    %2274 = vmatpush1.msra.mxu0 0.0
    %2275 = vmatprep.subr.mxu0 0.0
    %2276 = vmatpush1.msra.mxu0 0.0
    %2277 = vmatprep.subr.mxu0 0.0
    %2278 = vmatpush1.msra.mxu0 0.0
    %2279 = vmatprep.subr.mxu0 0.0
    %2280 = vmatpush1.msra.mxu0 0.0
    %2281 = vmatprep.subr.mxu0 0.0
    %2282 = vmatpush1.msra.mxu0 0.0
    %2283 = vmatprep.subr.mxu0 0.0
    %2284 = vmatpush1.msra.mxu0 0.0
    %2285 = vmatprep.subr.mxu0 0.0
    %2286 = vmatpush1.msra.mxu0 0.0
    %2287 = vmatprep.subr.mxu0 0.0
    %2288 = vmatpush1.msra.mxu0 0.0
    %2289 = vmatprep.subr.mxu0 0.0
    %2290 = vmatpush1.msra.mxu0 0.0
    %2291 = vmatprep.subr.mxu0 0.0
    %2292 = vmatpush1.msra.mxu0 0.0
    %2293 = vmatprep.subr.mxu0 0.0
    %2294 = vmatpush1.msra.mxu0 0.0
    %2295 = vmatprep.subr.mxu0 0.0
    %2296 = vmatpush1.msra.mxu0 0.0
    %2297 = vmatprep.subr.mxu0 0.0
    %2298 = vmatpush1.msra.mxu0 0.0
    %2299 = vmatprep.subr.mxu0 0.0
    %2300 = vmatpush1.msra.mxu0 0.0
    %2301 = vmatprep.subr.mxu0 0.0
    %2302 = vmatpush1.msra.mxu0 0.0
    %2303 = vmatprep.subr.mxu0 0.0
    %2304 = vmatpush1.msra.mxu0 0.0
    %2305 = vmatprep.mubr.f32.mxu0 0.0
    %2306 = vmatmul.mubr.f32.gmra.mrb[0].mxu0 %v2168
    %v2307 = vpop.f32.mrb[0].mxu0
    %v2308 = vadd.f32 0.0, %v2307
    %v2309 = vpop.f32.mrb[0].mxu0
    %v2310 = vadd.f32 0.0, %v2309
    %2311 = vdwg.mxu0
    %v2312 = vadd.f32 %v2308, %v549
    %2314 = vrot.lane.b32.xlu0 %v2237, 64
    %v2315 = vpop.permute.xlu0 %2314
    %v2317 = vadd.f32 %v2312, %v2315
    %v2318 = vxor.u32 %v2317, 2147483648
    %v2319 = vmul.f32 %v2318, 1.442695
    %v2320 = vpow.pop %v2319
    %v2321 = vadd.f32 %v2320, 1.0
    %v2322 = vrcp.pop %v2321
    %v2323 = vmul.f32 1.0, %v2322
    %2325 = vrot.lane.b32.xlu0 %v2239, 64
    %v2326 = vpop.permute.xlu0 %2325
    %v2328 = vadd.f32 %v2312, %v2326
    %v2329 = vxor.u32 %v2328, 2147483648
    %v2330 = vmul.f32 %v2329, 1.442695
    %v2331 = vpow.pop %v2330
    %v2332 = vadd.f32 %v2331, 1.0
    %v2333 = vrcp.pop %v2332
    %v2334 = vmul.f32 1.0, %v2333
    %v2335 = vadd.f32 %v2239, %v579
    %v2336 = vmul.f32 %v2323, %v2335
    %2338 = vrot.lane.b32.xlu0 %v2336, 64
    %v2339 = vpop.permute.xlu0 %2338
    %v2341 = vadd.f32 %v2312, %v2339
    %v2342 = vtanh.pop %v2341
    %v2343 = vsub.f32 1.0, %v2334
    %2345 = vrot.lane.b32.xlu0 %v2342, 96
    %v2346 = vpop.permute.xlu0 %2345
    %v2348 = vmul.f32 %v2343, %v2346
    %v2349 = vmul.f32 %v2334, %v2125
    %v2350 = vadd.f32 %v2348, %v2349
    %v2351 = vadd.f32 %v2310, %v836
    %v2352 = vadd.f32 %v2351, %v2326
    %v2353 = vxor.u32 %v2352, 2147483648
    %v2354 = vmul.f32 %v2353, 1.442695
    %v2355 = vpow.pop %v2354
    %v2356 = vadd.f32 %v2355, 1.0
    %v2357 = vrcp.pop %v2356
    %v2358 = vmul.f32 1.0, %v2357
    %v2359 = vadd.f32 %v2308, %v850
    %v2360 = vmul.f32 %v2358, %v2359
    %2362 = vrot.lane.b32.xlu0 %v2360, 64
    %v2363 = vpop.permute.xlu0 %2362
    %v2365 = vadd.f32 %v2351, %v2363
    %v2366 = vtanh.pop %v2365
    %v2367 = vsub.f32 1.0, %v2358
    %2369 = vrot.lane.b32.xlu0 %v2366, 96
    %v2370 = vpop.permute.xlu0 %2369
    %v2372 = vmul.f32 %v2367, %v2370
    %v2373 = vmul.f32 %v2358, %v2149
    %v2374 = vadd.f32 %v2372, %v2373
    %v2376 = vrot.slane %v2350, 2
    %2377 = vrot.lane.b32.xlu0 %v2376, 96
    %v2378 = vpop.permute.xlu0 %2377
    %v2381 = vrot.slane %v2374, 2
    %2382 = vrot.lane.b32.xlu0 %v2381, 32
    %v2383 = vpop.permute.xlu0 %2382
    %v2385 = vsel %vm149, %v2152, %v2378
    %v2386 = vsel %vm245, %v2385, %v2383
    %v2388 = vrot.slane %v2386, 6
    %v2389 = vsel %vm247, %v2388, 0
    %2391 = vmatprep.subr.mxu0 %v84
    %2392 = vmatpush1.msra.mxu0 %v83
    %2393 = vmatprep.subr.mxu0 %v88
    %2394 = vmatpush1.msra.mxu0 %v87
    %2395 = vmatprep.subr.mxu0 %v92
    %2396 = vmatpush1.msra.mxu0 %v91
    %2397 = vmatprep.subr.mxu0 %v96
    %2398 = vmatpush1.msra.mxu0 %v95
    %2399 = vmatprep.subr.mxu0 %v100
    %2400 = vmatpush1.msra.mxu0 %v99
    %2401 = vmatprep.subr.mxu0 %v104
    %2402 = vmatpush1.msra.mxu0 %v103
    %2403 = vmatprep.subr.mxu0 %v108
    %2404 = vmatpush1.msra.mxu0 %v107
    %2405 = vmatprep.subr.mxu0 %v112
    %2406 = vmatpush1.msra.mxu0 %v111
    %2407 = vmatprep.subr.mxu0 %v116
    %2408 = vmatpush1.msra.mxu0 %v115
    %2409 = vmatprep.subr.mxu0 %v120
    %2410 = vmatpush1.msra.mxu0 %v119
    %2411 = vmatprep.subr.mxu0 %v124
    %2412 = vmatpush1.msra.mxu0 %v123
    %2413 = vmatprep.subr.mxu0 %v128
    %2414 = vmatpush1.msra.mxu0 %v127
    %2415 = vmatprep.subr.mxu0 0.0
    %2416 = vmatpush1.msra.mxu0 0.0
    %2417 = vmatprep.subr.mxu0 0.0
    %2418 = vmatpush1.msra.mxu0 0.0
    %2419 = vmatprep.subr.mxu0 0.0
    %2420 = vmatpush1.msra.mxu0 0.0
    %2421 = vmatprep.subr.mxu0 0.0
    %2422 = vmatpush1.msra.mxu0 0.0
    %2423 = vmatprep.subr.mxu0 0.0
    %2424 = vmatpush1.msra.mxu0 0.0
    %2425 = vmatprep.subr.mxu0 0.0
    %2426 = vmatpush1.msra.mxu0 0.0
    %2427 = vmatprep.subr.mxu0 0.0
    %2428 = vmatpush1.msra.mxu0 0.0
    %2429 = vmatprep.subr.mxu0 0.0
    %2430 = vmatpush1.msra.mxu0 0.0
    %2431 = vmatprep.subr.mxu0 0.0
    %2432 = vmatpush1.msra.mxu0 0.0
    %2433 = vmatprep.subr.mxu0 0.0
    %2434 = vmatpush1.msra.mxu0 0.0
    %2435 = vmatprep.subr.mxu0 0.0
    %2436 = vmatpush1.msra.mxu0 0.0
    %2437 = vmatprep.subr.mxu0 0.0
    %2438 = vmatpush1.msra.mxu0 0.0
    %2439 = vmatprep.subr.mxu0 0.0
    %2440 = vmatpush1.msra.mxu0 0.0
    %2441 = vmatprep.subr.mxu0 0.0
    %2442 = vmatpush1.msra.mxu0 0.0
    %2443 = vmatprep.subr.mxu0 0.0
    %2444 = vmatpush1.msra.mxu0 0.0
    %2445 = vmatprep.subr.mxu0 0.0
    %2446 = vmatpush1.msra.mxu0 0.0
    %2447 = vmatprep.subr.mxu0 0.0
    %2448 = vmatpush1.msra.mxu0 0.0
    %2449 = vmatprep.subr.mxu0 0.0
    %2450 = vmatpush1.msra.mxu0 0.0
    %2451 = vmatprep.subr.mxu0 0.0
    %2452 = vmatpush1.msra.mxu0 0.0
    %2453 = vmatprep.subr.mxu0 0.0
    %2454 = vmatpush1.msra.mxu0 0.0
    %2455 = vmatprep.mubr.f32.mxu0 0.0
    %2456 = vmatmul.mubr.f32.gmra.mrb[0].mxu0 %v2389
    %v2457 = vpop.f32.mrb[0].mxu0
    %v2458 = vpop.f32.mrb[0].mxu0
    %v2459 = vadd.f32 0.0, %v2458
    %2460 = vdwg.mxu0
    %2461 = vmatprep.subr.mxu0 %v86
    %2462 = vmatpush1.msra.mxu0 %v85
    %2463 = vmatprep.subr.mxu0 %v90
    %2464 = vmatpush1.msra.mxu0 %v89
    %2465 = vmatprep.subr.mxu0 %v94
    %2466 = vmatpush1.msra.mxu0 %v93
    %2467 = vmatprep.subr.mxu0 %v98
    %2468 = vmatpush1.msra.mxu0 %v97
    %2469 = vmatprep.subr.mxu0 %v102
    %2470 = vmatpush1.msra.mxu0 %v101
    %2471 = vmatprep.subr.mxu0 %v106
    %2472 = vmatpush1.msra.mxu0 %v105
    %2473 = vmatprep.subr.mxu0 %v110
    %2474 = vmatpush1.msra.mxu0 %v109
    %2475 = vmatprep.subr.mxu0 %v114
    %2476 = vmatpush1.msra.mxu0 %v113
    %2477 = vmatprep.subr.mxu0 %v118
    %2478 = vmatpush1.msra.mxu0 %v117
    %2479 = vmatprep.subr.mxu0 %v122
    %2480 = vmatpush1.msra.mxu0 %v121
    %2481 = vmatprep.subr.mxu0 %v126
    %2482 = vmatpush1.msra.mxu0 %v125
    %2483 = vmatprep.subr.mxu0 %v130
    %2484 = vmatpush1.msra.mxu0 %v129
    %2485 = vmatprep.subr.mxu0 0.0
    %2486 = vmatpush1.msra.mxu0 0.0
    %2487 = vmatprep.subr.mxu0 0.0
    %2488 = vmatpush1.msra.mxu0 0.0
    %2489 = vmatprep.subr.mxu0 0.0
    %2490 = vmatpush1.msra.mxu0 0.0
    %2491 = vmatprep.subr.mxu0 0.0
    %2492 = vmatpush1.msra.mxu0 0.0
    %2493 = vmatprep.subr.mxu0 0.0
    %2494 = vmatpush1.msra.mxu0 0.0
    %2495 = vmatprep.subr.mxu0 0.0
    %2496 = vmatpush1.msra.mxu0 0.0
    %2497 = vmatprep.subr.mxu0 0.0
    %2498 = vmatpush1.msra.mxu0 0.0
    %2499 = vmatprep.subr.mxu0 0.0
    %2500 = vmatpush1.msra.mxu0 0.0
    %2501 = vmatprep.subr.mxu0 0.0
    %2502 = vmatpush1.msra.mxu0 0.0
    %2503 = vmatprep.subr.mxu0 0.0
    %2504 = vmatpush1.msra.mxu0 0.0
    %2505 = vmatprep.subr.mxu0 0.0
    %2506 = vmatpush1.msra.mxu0 0.0
    %2507 = vmatprep.subr.mxu0 0.0
    %2508 = vmatpush1.msra.mxu0 0.0
    %2509 = vmatprep.subr.mxu0 0.0
    %2510 = vmatpush1.msra.mxu0 0.0
    %2511 = vmatprep.subr.mxu0 0.0
    %2512 = vmatpush1.msra.mxu0 0.0
    %2513 = vmatprep.subr.mxu0 0.0
    %2514 = vmatpush1.msra.mxu0 0.0
    %2515 = vmatprep.subr.mxu0 0.0
    %2516 = vmatpush1.msra.mxu0 0.0
    %2517 = vmatprep.subr.mxu0 0.0
    %2518 = vmatpush1.msra.mxu0 0.0
    %2519 = vmatprep.subr.mxu0 0.0
    %2520 = vmatpush1.msra.mxu0 0.0
    %2521 = vmatprep.subr.mxu0 0.0
    %2522 = vmatpush1.msra.mxu0 0.0
    %2523 = vmatprep.subr.mxu0 0.0
    %2524 = vmatpush1.msra.mxu0 0.0
    %2525 = vmatprep.mubr.f32.mxu0 0.0
    %2526 = vmatmul.mubr.f32.gmra.mrb[0].mxu0 %v2389
    %v2527 = vpop.f32.mrb[0].mxu0
    %v2528 = vadd.f32 0.0, %v2527
    %v2529 = vpop.f32.mrb[0].mxu0
    %v2530 = vadd.f32 0.0, %v2529
    %2531 = vdwg.mxu0
    %v2532 = vadd.f32 %v2530, %v836
    %2534 = vrot.lane.b32.xlu0 %v2459, 64
    %v2535 = vpop.permute.xlu0 %2534
    %v2537 = vadd.f32 %v2532, %v2535
    %v2538 = vxor.u32 %v2537, 2147483648
    %v2539 = vmul.f32 %v2538, 1.442695
    %v2540 = vpow.pop %v2539
    %v2541 = vadd.f32 %v2540, 1.0
    %v2542 = vrcp.pop %v2541
    %v2543 = vmul.f32 1.0, %v2542
    %v2544 = vadd.f32 %v2528, %v850
    %v2545 = vmul.f32 %v2543, %v2544
    %2547 = vrot.lane.b32.xlu0 %v2545, 64
    %v2548 = vpop.permute.xlu0 %2547
    %v2550 = vadd.f32 %v2532, %v2548
    %v2551 = vtanh.pop %v2550
    %v2552 = vsub.f32 1.0, %v2543
    %2554 = vrot.lane.b32.xlu0 %v2551, 96
    %v2555 = vpop.permute.xlu0 %2554
    %v2557 = vmul.f32 %v2552, %v2555
    %v2558 = vmul.f32 %v2543, %v2374
    %v2559 = vadd.f32 %v2557, %v2558
    %2560 = vrot.lane.b32.xlu0 %v870, 96
    %v2561 = vpop.permute.xlu0 %2560
    %2563 = vrot.lane.b32.xlu0 %v1635, 64
    %v2564 = vpop.permute.xlu0 %2563
    %2566 = vrot.lane.b32.xlu0 %v1892, 96
    %v2567 = vpop.permute.xlu0 %2566
    %2569 = vrot.lane.b32.xlu0 %v2374, 32
    %v2570 = vpop.permute.xlu0 %2569
    %2573 = vrot.lane.b32.xlu0 %v2559, 64
    %v2574 = vpop.permute.xlu0 %2573
    %v2576 = vsel %vm149, %v2561, %v1127
    %v2577 = vsel %vm245, %v2576, %v1392
    %v2578 = vsel %vm247, %v2577, %v2564
    %v2579 = vsel %vm149, %v2567, %v2149
    %v2580 = vsel %vm245, %v2579, %v2570
    %v2581 = vsel %vm247, %v2580, %v2574
    %v2584 = vcombine.low %v2578, %v2581
    %v2586 = vunpack.c.l.s4 1983009808
    %v2587 = vunpack.c.0.s8 %v2586
    %v2588 = vlaneseq
    %v2589 = vshrl.u32 %v2588, 7
    %v2590 = vsub.s32 %v2587, %v2589
    %v2591 = vrot.slane %v2584, %v2590
    %2593 = vst [vmem:[#allocation10] sm:$0xf] %v2591
    // Predicated region
    $region42: #{tpu_custom_call.1} parent=1 // pred_check
      _
    $region43: #{tpu_custom_call.1} parent=1 // pred_check_branch
      %2595 = sbr.rel (0) target = $region45
    $region44: #{tpu_custom_call.1} parent=1 // pred_region
      %s2597 = ssub.s32 64, 64
      %2598 = vsyncadd [#allocation4], %s2597
      %s2600 = sshll.u32 [#allocation10], 4
      %s2601 = int_to_ptr.vmem [resolvable:$true] %s2600
      %2603 = dma.vmem_to_hbm [thread:$0]  %s2601, 64, %s6, [#allocation4]
    $region45: #{tpu_custom_call.1} parent=1 // pred_fallthru
      _
    // Predicated region
    $region46: #{tpu_custom_call.1} parent=1 // pred_check
      _
    $region47: #{tpu_custom_call.1} parent=1 // pred_check_branch
      %2605 = sbr.rel (0) target = $region49
    $region48: #{tpu_custom_call.1} parent=1 // pred_region
      %2606 = dma.done [#allocation4], 64
    $region49: #{tpu_custom_call.1} parent=1 // pred_fallthru
      _
    %2607 = vsyncpa [#allocation3], 1
    %2608 = vsyncpa [#allocation6], 1
    %2609 = vsyncpa [#allocation9], 1
    %2610 = vsyncpa [#allocation4], 1

</llo_original>
